<compile_context>
chip_gen: v5e
topology: v5e:2x2
jax: 0.10.0
libtpu: 0.0.40
codegen_flags: <defaults>
</compile_context>

<pallas_src>
import functools
import math

import jax
import jax.numpy as jnp
from jax.experimental import pallas as pl
from jax.experimental.pallas import tpu as pltpu

_DN = (((1,), (1,)), ((), ()))   # contract last dims of both operands: x @ W.T (torch Linear)


def _tpu_vmem_capacity():
    try:
        return int(pltpu.get_tpu_info().vmem_capacity_bytes)
    except Exception:
        return 64 * 1024 * 1024   # conservative fallback (v7x per-TC VMEM)


_VMEM_CAP = _tpu_vmem_capacity()
_VMEM_LIMIT = int(_VMEM_CAP * 3 // 4)                       # ~48 MiB on v7x, ~96 MiB on v5e/v6e
_ROW_TARGET = 512 if _VMEM_CAP >= (100 << 20) else 256      # larger row tiles on 128 MiB parts
_Q_TARGET = 256                                             # attention query-tile target


def _layernorm(x, gamma, beta, eps=1e-5):
    mu = jnp.mean(x, axis=-1, keepdims=True)
    var = jnp.mean((x - mu) ** 2, axis=-1, keepdims=True)
    return (x - mu) * jax.lax.rsqrt(var + eps) * gamma + beta


def _gelu_tanh(x):
    # TODO(synk): nn.GELU() default is the exact erf form; tanh approximation used here
    # (max abs deviation ~3e-3) because tanh lowers cleanly to the EUP on all TPU generations.
    c = math.sqrt(2.0 / math.pi)
    return 0.5 * x * (1.0 + jnp.tanh(c * (x + 0.044715 * (x * x * x))))


def _row_tile(length, target):
    """Row tile: full length if small, else a dividing multiple of 8 near `target`, else
    `target` itself (the grid then uses pl.cdiv and the tail rows are masked)."""
    if length <= target:
        return length
    for t in range(target, 7, -1):
        if length % t == 0 and t % 8 == 0:
            return t
    return target


def _head_group(num_heads, head_dim):
    """Heads per attention grid step so the lane block (group*Dh) is 128-aligned, or covers
    all heads (== E).  Keeps every attention load/store lane-dense with no head transposes."""
    for g in range(1, num_heads + 1):
        if num_heads % g == 0 and (g * head_dim) % 128 == 0:
            return g
    return num_heads


# --------------------------- kernel 1: LayerNorm + packed QKV projection ---------------------------
def ln_qkv_kernel(x_ref, g_ref, b_ref, w_ref, bias_ref, q_ref, k_ref, v_ref, *, e_dim):
    x = x_ref[0]                                                  # (TL, E) f32
    xn = _layernorm(x, g_ref[...], b_ref[...]).astype(jnp.bfloat16)
    # single fused (TL,E) x (E,3E) MXU call: packed [Wq; Wk; Wv], 1/sqrt(Dh) folded into Wq/bq
    qkv = jax.lax.dot_general(xn, w_ref[...], _DN, preferred_element_type=jnp.float32)
    qkv = (qkv + bias_ref[...]).astype(jnp.bfloat16)
    q_ref[0] = qkv[:, :e_dim]
    k_ref[0] = qkv[:, e_dim:2 * e_dim]
    v_ref[0] = qkv[:, 2 * e_dim:]


# ------------------- kernel 2: attention per (batch, query tile, head group) -------------------
def attn_kernel(q_ref, k_ref, v_ref, ctx_ref, *aw_refs,
                head_dim, group, inv_heads, with_weights):
    q = q_ref[0]                     # (TLq, group*Dh) bf16 (Q pre-scaled by 1/sqrt(Dh))
    k = k_ref[0]                     # (L,   group*Dh) bf16
    v = v_ref[0]                     # (L,   group*Dh) bf16

    ctx_parts = []
    aw_acc = None
    for j in range(group):           # static per-head loop inside the lane-aligned group
        lo, hi = j * head_dim, (j + 1) * head_dim
        s = jax.lax.dot_general(q[:, lo:hi], k[:, lo:hi], _DN,
                                preferred_element_type=jnp.float32)          # (TLq, L)
        s = s - jnp.max(s, axis=-1, keepdims=True)
        e = jnp.exp(s)
        p = e * pl.reciprocal(jnp.sum(e, axis=-1, keepdims=True), approx=True)
        # TODO(synk): attention dropout skipped (eval-mode identity); key_padding_mask /
        # attn_mask not supported (only the None case of the torch forward is implemented).
        ctx_parts.append(jnp.dot(p.astype(jnp.bfloat16), v[:, lo:hi],
                                 preferred_element_type=jnp.float32).astype(jnp.bfloat16))
        if with_weights:
            aw_acc = p if aw_acc is None else aw_acc + p

    # one lane-dense (TLq, group*Dh) store straight into (B, L, E) layout (no merge transpose)
    ctx_ref[0] = jnp.concatenate(ctx_parts, axis=-1) if group > 1 else ctx_parts[0]

    if with_weights:
        aw_ref = aw_refs[0]
        g = pl.program_id(2)
        contrib = aw_acc * inv_heads            # torch average_attn_weights=True

        @pl.when(g == 0)
        def _():
            aw_ref[0] = contrib                 # first group writes (no separate zero-init pass)

        @pl.when(g > 0)
        def _():
            aw_ref[0] += contrib


# ------------------- kernel 3: output projection + residual + MLP block ----------------------
def proj_mlp_kernel(ctx_ref, x_ref, wo_ref, bo_ref, g2_ref, be2_ref,
                    w1_ref, b1_ref, w2_ref, b2_ref, o_ref):
    ctx = ctx_ref[0]                                              # (TL, E) bf16
    attn_out = jax.lax.dot_general(ctx, wo_ref[...], _DN,
                                   preferred_element_type=jnp.float32) + bo_ref[...]
    # TODO(synk): post-attention dropout and the two MLP dropouts skipped (eval-mode identity).
    y1 = attn_out + x_ref[0]                                      # residual 1 (un-normalized input)

    zn = _layernorm(y1, g2_ref[...], be2_ref[...]).astype(jnp.bfloat16)
    h1 = jax.lax.dot_general(zn, w1_ref[...], _DN,
                             preferred_element_type=jnp.float32) + b1_ref[...]
    h1 = _gelu_tanh(h1).astype(jnp.bfloat16)
    h2 = jax.lax.dot_general(h1, w2_ref[...], _DN,
                             preferred_element_type=jnp.float32) + b2_ref[...]
    o_ref[0] = h2 + y1                                            # residual 2 (f32 residual stream)


# ------------------------------------------ wrapper ------------------------------------------
@functools.partial(jax.jit, static_argnums=(2, 3))
def encoder_block(x, params, num_heads, need_weights=True):
    (g1, be1, w_in, b_in, w_out, b_out, g2, be2, w1, b1, w2, b2) = params
    B, L, E = x.shape
    H = num_heads
    Dh = E // H
    FC = w1.shape[0]
    scale = 1.0 / math.sqrt(Dh)
    bf16 = jnp.bfloat16

    # pack torch's in_proj [Wq; Wk; Wv]; fold 1/sqrt(Dh) into the Q rows
    w_qkv = jnp.concatenate([w_in[:E] * scale, w_in[E:]], axis=0).astype(bf16)   # (3E, E)
    b_qkv = jnp.concatenate([b_in[:E] * scale, b_in[E:]]).reshape(1, 3 * E)
    g1r, be1r = g1.reshape(1, E), be1.reshape(1, E)
    g2r, be2r = g2.reshape(1, E), be2.reshape(1, E)
    wo, bo = w_out.astype(bf16), b_out.reshape(1, E)
    w1b, b1r = w1.astype(bf16), b1.reshape(1, FC)
    w2b, b2r = w2.astype(bf16), b2.reshape(1, E)

    TL = _row_tile(L, _ROW_TARGET)
    nt = pl.cdiv(L, TL)
    rep = lambda b, t: (0, 0)
    row = lambda b, t: (b, t, 0)

    # ---- kernel 1: LayerNorm + fused (packed) Q/K/V projection ----
    q, k, v = pl.pallas_call(
        functools.partial(ln_qkv_kernel, e_dim=E),
        out_shape=tuple(jax.ShapeDtypeStruct((B, L, E), bf16) for _ in range(3)),
        grid=(B, nt),
        in_specs=[
            pl.BlockSpec((1, TL, E), row),
            pl.BlockSpec((1, E), rep), pl.BlockSpec((1, E), rep),
            pl.BlockSpec((3 * E, E), rep),
            pl.BlockSpec((1, 3 * E), rep),
        ],
        out_specs=tuple(pl.BlockSpec((1, TL, E), row) for _ in range(3)),
        compiler_params=pltpu.CompilerParams(
            dimension_semantics=("parallel", "parallel"),
            vmem_limit_bytes=_VMEM_LIMIT),
    )(x, g1r, be1r, w_qkv, b_qkv)

    # ---- kernel 2: attention on the (B, L, E) layout directly (no head transposes) ----
    G = _head_group(H, Dh)            # heads per grid step; G*Dh is 128-aligned or == E
    GD = G * Dh
    ng = H // G
    TLq = _row_tile(L, _Q_TARGET)
    nq = pl.cdiv(L, TLq)

    q_spec = pl.BlockSpec((1, TLq, GD), lambda b, qi, g: (b, qi, g))
    kv_spec = pl.BlockSpec((1, L, GD), lambda b, qi, g: (b, 0, g))
    ctx_shape = jax.ShapeDtypeStruct((B, L, E), bf16)
    ctx_spec = pl.BlockSpec((1, TLq, GD), lambda b, qi, g: (b, qi, g))
    kernel2 = functools.partial(attn_kernel, head_dim=Dh, group=G,
                                inv_heads=1.0 / H, with_weights=need_weights)

    if need_weights:
        ctx, aw = pl.pallas_call(
            kernel2,
            out_shape=(ctx_shape, jax.ShapeDtypeStruct((B, L, L), jnp.float32)),
            grid=(B, nq, ng),
            in_specs=[q_spec, kv_spec, kv_spec],
            out_specs=(ctx_spec,
                       pl.BlockSpec((1, TLq, L), lambda b, qi, g: (b, qi, 0))),
            compiler_params=pltpu.CompilerParams(
                dimension_semantics=("parallel", "parallel", "arbitrary"),
                vmem_limit_bytes=_VMEM_LIMIT),
        )(q, k, v)
    else:
        ctx = pl.pallas_call(
            kernel2,
            out_shape=ctx_shape,
            grid=(B, nq, ng),
            in_specs=[q_spec, kv_spec, kv_spec],
            out_specs=ctx_spec,
            compiler_params=pltpu.CompilerParams(
                dimension_semantics=("parallel", "parallel", "parallel"),
                vmem_limit_bytes=_VMEM_LIMIT),
        )(q, k, v)
        aw = None

    # ---- kernel 3: single fused output projection + residual + MLP block ----
    y = pl.pallas_call(
        proj_mlp_kernel,
        out_shape=jax.ShapeDtypeStruct((B, L, E), jnp.float32),
        grid=(B, nt),
        in_specs=[
            pl.BlockSpec((1, TL, E), row),          # ctx (already in (B, L, E) layout)
            pl.BlockSpec((1, TL, E), row),          # original x (residual)
            pl.BlockSpec((E, E), rep), pl.BlockSpec((1, E), rep),
            pl.BlockSpec((1, E), rep), pl.BlockSpec((1, E), rep),
            pl.BlockSpec((FC, E), rep), pl.BlockSpec((1, FC), rep),
            pl.BlockSpec((E, FC), rep), pl.BlockSpec((1, E), rep),
        ],
        out_specs=pl.BlockSpec((1, TL, E), row),
        compiler_params=pltpu.CompilerParams(
            dimension_semantics=("parallel", "parallel"),
            vmem_limit_bytes=_VMEM_LIMIT),
    )(ctx, x, wo, bo, g2r, be2r, w1b, b1r, w2b, b2r)

    return y, aw


# ------------------------------------ pure-JAX reference -------------------------------------
def encoder_block_reference(x, params, num_heads):
    """f32 reference replicating torch EncoderBlock.forward (eval mode, exact-erf GELU)."""
    (g1, be1, w_in, b_in, w_out, b_out, g2, be2, w1, b1, w2, b2) = params
    B, L, E = x.shape
    H = num_heads
    Dh = E // H

    def ln(t, g, b):
        mu = t.mean(-1, keepdims=True)
        var = ((t - mu) ** 2).mean(-1, keepdims=True)
        return (t - mu) / jnp.sqrt(var + 1e-5) * g + b

    xn = ln(x, g1, be1)
    qkv = xn @ w_in.T + b_in
    Q, K, V = qkv[..., :E], qkv[..., E:2 * E], qkv[..., 2 * E:]
    Qh = Q.reshape(B, L, H, Dh).transpose(0, 2, 1, 3)
    Kh = K.reshape(B, L, H, Dh).transpose(0, 2, 1, 3)
    Vh = V.reshape(B, L, H, Dh).transpose(0, 2, 1, 3)
    s = jnp.einsum("bhqd,bhkd->bhqk", Qh, Kh) / math.sqrt(Dh)
    p = jax.nn.softmax(s, axis=-1)
    ctx = jnp.einsum("bhqk,bhkd->bhqd", p, Vh).transpose(0, 2, 1, 3).reshape(B, L, E)
    y1 = ctx @ w_out.T + b_out + x
    zn = ln(y1, g2, be2)
    h1 = jax.nn.gelu(zn @ w1.T + b1, approximate=False)
    y2 = h1 @ w2.T + b2
    return y1 + y2, p.mean(axis=1)


if __name__ == "__main__":
    B, L, E, H, FC = 2, 16, 256, 4, 512

    key = jax.random.PRNGKey(0)
    keys = jax.random.split(key, 8)

    x = jax.random.normal(keys[0], (B, L, E), jnp.float32)

    a_in = math.sqrt(6.0 / (2 * E))                 # xavier-uniform bound (torch MHA in_proj)
    w_in = jax.random.uniform(keys[1], (3 * E, E), jnp.float32, -a_in, a_in)
    b_in = 0.01 * jax.random.normal(keys[2], (3 * E,), jnp.float32)
    a_o = 1.0 / math.sqrt(E)
    w_out = jax.random.uniform(keys[3], (E, E), jnp.float32, -a_o, a_o)
    b_out = 0.01 * jax.random.normal(keys[4], (E,), jnp.float32)
    w1 = jax.random.uniform(keys[5], (FC, E), jnp.float32, -a_o, a_o)
    b1 = 0.01 * jax.random.normal(keys[6], (FC,), jnp.float32)
    a_2 = 1.0 / math.sqrt(FC)
    w2 = jax.random.uniform(keys[7], (E, FC), jnp.float32, -a_2, a_2)
    b2 = jnp.zeros((E,), jnp.float32)

    g1 = jnp.ones((E,), jnp.float32); be1 = jnp.zeros((E,), jnp.float32)
    g2 = jnp.ones((E,), jnp.float32); be2 = jnp.zeros((E,), jnp.float32)
    params = (g1, be1, w_in, b_in, w_out, b_out, g2, be2, w1, b1, w2, b2)

    out, attn_w = encoder_block(x, params, H, True)
    jax.block_until_ready((out, attn_w))

    ref_out, ref_w = encoder_block_reference(x, params, H)
    assert out.shape == (B, L, E) and attn_w.shape == (B, L, L)
    # kernel uses bf16 MXU operands, approximate reciprocal, tanh-GELU -> loose f32 tolerance
    assert jnp.allclose(out, ref_out, atol=5e-2, rtol=5e-2), \
        float(jnp.max(jnp.abs(out - ref_out)))
    assert jnp.allclose(attn_w, ref_w, atol=2e-2, rtol=2e-2), \
        float(jnp.max(jnp.abs(attn_w - ref_w)))

    # also exercise the need_weights=False fast path (no attention-weight output/accumulation)
    out_nw, aw_none = encoder_block(x, params, H, False)
    jax.block_until_ready(out_nw)
    assert aw_none is None
    assert jnp.allclose(out_nw, ref_out, atol=5e-2, rtol=5e-2)

    print("KERNEL_OK")
</pallas_src>

<mosaic_0001>
module attributes {stable_mosaic.version = 11 : i64} {
  func.func @ln_qkv_kernel(%arg0: i32, %arg1: i32, %arg2: memref<1x16x256xf32, #tpu.memory_space<vmem>>, %arg3: memref<1x256xf32, #tpu.memory_space<vmem>>, %arg4: memref<1x256xf32, #tpu.memory_space<vmem>>, %arg5: memref<768x256xbf16, #tpu.memory_space<vmem>>, %arg6: memref<1x768xf32, #tpu.memory_space<vmem>>, %arg7: memref<1x16x256xbf16, #tpu.memory_space<vmem>>, %arg8: memref<1x16x256xbf16, #tpu.memory_space<vmem>>, %arg9: memref<1x16x256xbf16, #tpu.memory_space<vmem>>) attributes {dimension_semantics = [#tpu.dimension_semantics<parallel>, #tpu.dimension_semantics<parallel>], iteration_bounds = array<i64: 2, 1>, scalar_prefetch = 0 : i64, scratch_operands = 0 : i64, tpu.core_type = #tpu.core_type<tc>, window_params = [{transform_indices = @transform_0, window_bounds = array<i64: 1, 16, 256>}, {pipeline_mode = #tpu.pipeline_mode<synchronous>, transform_indices = @transform_1, window_bounds = array<i64: 1, 256>}, {pipeline_mode = #tpu.pipeline_mode<synchronous>, transform_indices = @transform_2, window_bounds = array<i64: 1, 256>}, {pipeline_mode = #tpu.pipeline_mode<synchronous>, transform_indices = @transform_3, window_bounds = array<i64: 768, 256>}, {pipeline_mode = #tpu.pipeline_mode<synchronous>, transform_indices = @transform_4, window_bounds = array<i64: 1, 768>}, {transform_indices = @transform_5, window_bounds = array<i64: 1, 16, 256>}, {transform_indices = @transform_6, window_bounds = array<i64: 1, 16, 256>}, {transform_indices = @transform_7, window_bounds = array<i64: 1, 16, 256>}]} {
    %c0 = arith.constant 0 : index
    %c0_0 = arith.constant 0 : index
    %c0_1 = arith.constant 0 : index
    %0 = vector.load %arg2[%c0, %c0_0, %c0_1] : memref<1x16x256xf32, #tpu.memory_space<vmem>>, vector<1x16x256xf32>
    %1 = vector.shape_cast %0 : vector<1x16x256xf32> to vector<16x256xf32>
    %c0_2 = arith.constant 0 : index
    %c0_3 = arith.constant 0 : index
    %2 = vector.load %arg3[%c0_2, %c0_3] : memref<1x256xf32, #tpu.memory_space<vmem>>, vector<1x256xf32>
    %c0_4 = arith.constant 0 : index
    %c0_5 = arith.constant 0 : index
    %3 = vector.load %arg4[%c0_4, %c0_5] : memref<1x256xf32, #tpu.memory_space<vmem>>, vector<1x256xf32>
    %cst = arith.constant dense<0.000000e+00> : vector<16xf32>
    %4 = vector.multi_reduction <add>, %1, %cst [1] : vector<16x256xf32> to vector<16xf32>
    %5 = vector.shape_cast %4 : vector<16xf32> to vector<16x1xf32>
    %cst_6 = arith.constant 2.560000e+02 : f32
    %6 = vector.broadcast %cst_6 : f32 to vector<16x1xf32>
    %7 = arith.divf %5, %6 : vector<16x1xf32>
    %8 = vector.broadcast %7 : vector<16x1xf32> to vector<16x256xf32>
    %9 = arith.subf %1, %8 : vector<16x256xf32>
    %10 = arith.mulf %9, %9 : vector<16x256xf32>
    %cst_7 = arith.constant dense<0.000000e+00> : vector<16xf32>
    %11 = vector.multi_reduction <add>, %10, %cst_7 [1] : vector<16x256xf32> to vector<16xf32>
    %12 = vector.shape_cast %11 : vector<16xf32> to vector<16x1xf32>
    %cst_8 = arith.constant 2.560000e+02 : f32
    %13 = vector.broadcast %cst_8 : f32 to vector<16x1xf32>
    %14 = arith.divf %12, %13 : vector<16x1xf32>
    %15 = vector.broadcast %7 : vector<16x1xf32> to vector<16x256xf32>
    %16 = arith.subf %1, %15 : vector<16x256xf32>
    %cst_9 = arith.constant 9.99999974E-6 : f32
    %17 = vector.broadcast %cst_9 : f32 to vector<16x1xf32>
    %18 = arith.addf %14, %17 : vector<16x1xf32>
    %19 = math.rsqrt %18 : vector<16x1xf32>
    %20 = vector.broadcast %19 : vector<16x1xf32> to vector<16x256xf32>
    %21 = arith.mulf %16, %20 : vector<16x256xf32>
    %22 = vector.broadcast %2 : vector<1x256xf32> to vector<16x256xf32>
    %23 = arith.mulf %21, %22 : vector<16x256xf32>
    %24 = vector.broadcast %3 : vector<1x256xf32> to vector<16x256xf32>
    %25 = arith.addf %23, %24 : vector<16x256xf32>
    %26 = arith.truncf %25 : vector<16x256xf32> to vector<16x256xbf16>
    %c0_10 = arith.constant 0 : index
    %c0_11 = arith.constant 0 : index
    %27 = vector.load %arg5[%c0_10, %c0_11] : memref<768x256xbf16, #tpu.memory_space<vmem>>, vector<768x256xbf16>
    %cst_12 = arith.constant dense<0.000000e+00> : vector<16x768xf32>
    %28 = tpu.matmul %26, %27, %cst_12 {dimension_numbers = #tpu.dot_dimension_numbers<[1], [1], [0], [0], [0, 0, 1, 0], [], []>} : vector<16x256xbf16>, vector<768x256xbf16>, vector<16x768xf32> -> vector<16x768xf32>
    %c0_13 = arith.constant 0 : index
    %c0_14 = arith.constant 0 : index
    %29 = vector.load %arg6[%c0_13, %c0_14] : memref<1x768xf32, #tpu.memory_space<vmem>>, vector<1x768xf32>
    %30 = vector.broadcast %29 : vector<1x768xf32> to vector<16x768xf32>
    %31 = arith.addf %28, %30 : vector<16x768xf32>
    %32 = arith.truncf %31 : vector<16x768xf32> to vector<16x768xbf16>
    %33 = vector.extract_strided_slice %32 {offsets = [0, 0], sizes = [16, 256], strides = [1, 1]} : vector<16x768xbf16> to vector<16x256xbf16>
    %c0_15 = arith.constant 0 : index
    %c0_16 = arith.constant 0 : index
    %c0_17 = arith.constant 0 : index
    %34 = vector.load %arg7[%c0_15, %c0_16, %c0_17] : memref<1x16x256xbf16, #tpu.memory_space<vmem>>, vector<1x16x256xbf16>
    %35 = vector.shape_cast %34 : vector<1x16x256xbf16> to vector<16x256xbf16>
    %36 = vector.shape_cast %33 : vector<16x256xbf16> to vector<1x16x256xbf16>
    tpu.vector_store %arg7[%c0_15, %c0_16, %c0_17], %36 {strides = array<i32>} : memref<1x16x256xbf16, #tpu.memory_space<vmem>>, vector<1x16x256xbf16>,
    %37 = vector.extract_strided_slice %32 {offsets = [0, 256], sizes = [16, 256], strides = [1, 1]} : vector<16x768xbf16> to vector<16x256xbf16>
    %c0_18 = arith.constant 0 : index
    %c0_19 = arith.constant 0 : index
    %c0_20 = arith.constant 0 : index
    %38 = vector.load %arg8[%c0_18, %c0_19, %c0_20] : memref<1x16x256xbf16, #tpu.memory_space<vmem>>, vector<1x16x256xbf16>
    %39 = vector.shape_cast %38 : vector<1x16x256xbf16> to vector<16x256xbf16>
    %40 = vector.shape_cast %37 : vector<16x256xbf16> to vector<1x16x256xbf16>
    tpu.vector_store %arg8[%c0_18, %c0_19, %c0_20], %40 {strides = array<i32>} : memref<1x16x256xbf16, #tpu.memory_space<vmem>>, vector<1x16x256xbf16>,
    %41 = vector.extract_strided_slice %32 {offsets = [0, 512], sizes = [16, 256], strides = [1, 1]} : vector<16x768xbf16> to vector<16x256xbf16>
    %c0_21 = arith.constant 0 : index
    %c0_22 = arith.constant 0 : index
    %c0_23 = arith.constant 0 : index
    %42 = vector.load %arg9[%c0_21, %c0_22, %c0_23] : memref<1x16x256xbf16, #tpu.memory_space<vmem>>, vector<1x16x256xbf16>
    %43 = vector.shape_cast %42 : vector<1x16x256xbf16> to vector<16x256xbf16>
    %44 = vector.shape_cast %41 : vector<16x256xbf16> to vector<1x16x256xbf16>
    tpu.vector_store %arg9[%c0_21, %c0_22, %c0_23], %44 {strides = array<i32>} : memref<1x16x256xbf16, #tpu.memory_space<vmem>>, vector<1x16x256xbf16>,
    return
  }
  func.func @transform_0(%arg0: i32, %arg1: i32) -> (i32, i32, i32) {
    %c0_i32 = arith.constant 0 : i32
    %c0_i32_0 = arith.constant 0 : i32
    return %arg0, %arg1, %c0_i32 : i32, i32, i32
  }
  func.func @transform_1(%arg0: i32, %arg1: i32) -> (i32, i32) {
    %c0_i32 = arith.constant 0 : i32
    %c0_i32_0 = arith.constant 0 : i32
    %c0_i32_1 = arith.constant 0 : i32
    return %c0_i32, %c0_i32_0 : i32, i32
  }
  func.func @transform_2(%arg0: i32, %arg1: i32) -> (i32, i32) {
    %c0_i32 = arith.constant 0 : i32
    %c0_i32_0 = arith.constant 0 : i32
    %c0_i32_1 = arith.constant 0 : i32
    return %c0_i32, %c0_i32_0 : i32, i32
  }
  func.func @transform_3(%arg0: i32, %arg1: i32) -> (i32, i32) {
    %c0_i32 = arith.constant 0 : i32
    %c0_i32_0 = arith.constant 0 : i32
    %c0_i32_1 = arith.constant 0 : i32
    return %c0_i32, %c0_i32_0 : i32, i32
  }
  func.func @transform_4(%arg0: i32, %arg1: i32) -> (i32, i32) {
    %c0_i32 = arith.constant 0 : i32
    %c0_i32_0 = arith.constant 0 : i32
    %c0_i32_1 = arith.constant 0 : i32
    return %c0_i32, %c0_i32_0 : i32, i32
  }
  func.func @transform_5(%arg0: i32, %arg1: i32) -> (i32, i32, i32) {
    %c0_i32 = arith.constant 0 : i32
    %c0_i32_0 = arith.constant 0 : i32
    return %arg0, %arg1, %c0_i32 : i32, i32, i32
  }
  func.func @transform_6(%arg0: i32, %arg1: i32) -> (i32, i32, i32) {
    %c0_i32 = arith.constant 0 : i32
    %c0_i32_0 = arith.constant 0 : i32
    return %arg0, %arg1, %c0_i32 : i32, i32, i32
  }
  func.func @transform_7(%arg0: i32, %arg1: i32) -> (i32, i32, i32) {
    %c0_i32 = arith.constant 0 : i32
    %c0_i32_0 = arith.constant 0 : i32
    return %arg0, %arg1, %c0_i32 : i32, i32, i32
  }
}

module attributes {stable_mosaic.version = 11 : i64} {
  func.func @attn_kernel(%arg0: i32, %arg1: i32, %arg2: i32, %arg3: memref<1x16x128xbf16, #tpu.memory_space<vmem>>, %arg4: memref<1x16x128xbf16, #tpu.memory_space<vmem>>, %arg5: memref<1x16x128xbf16, #tpu.memory_space<vmem>>, %arg6: memref<1x16x128xbf16, #tpu.memory_space<vmem>>, %arg7: memref<1x16x16xf32, #tpu.memory_space<vmem>>) attributes {dimension_semantics = [#tpu.dimension_semantics<parallel>, #tpu.dimension_semantics<parallel>, #tpu.dimension_semantics<arbitrary>], iteration_bounds = array<i64: 2, 1, 2>, scalar_prefetch = 0 : i64, scratch_operands = 0 : i64, tpu.core_type = #tpu.core_type<tc>, window_params = [{transform_indices = @transform_0, window_bounds = array<i64: 1, 16, 128>}, {transform_indices = @transform_1, window_bounds = array<i64: 1, 16, 128>}, {transform_indices = @transform_2, window_bounds = array<i64: 1, 16, 128>}, {transform_indices = @transform_3, window_bounds = array<i64: 1, 16, 128>}, {transform_indices = @transform_4, window_bounds = array<i64: 1, 16, 16>}]} {
    %c0 = arith.constant 0 : index
    %c0_0 = arith.constant 0 : index
    %c0_1 = arith.constant 0 : index
    %0 = vector.load %arg3[%c0, %c0_0, %c0_1] : memref<1x16x128xbf16, #tpu.memory_space<vmem>>, vector<1x16x128xbf16>
    %1 = vector.shape_cast %0 : vector<1x16x128xbf16> to vector<16x128xbf16>
    %c0_2 = arith.constant 0 : index
    %c0_3 = arith.constant 0 : index
    %c0_4 = arith.constant 0 : index
    %2 = vector.load %arg4[%c0_2, %c0_3, %c0_4] : memref<1x16x128xbf16, #tpu.memory_space<vmem>>, vector<1x16x128xbf16>
    %3 = vector.shape_cast %2 : vector<1x16x128xbf16> to vector<16x128xbf16>
    %c0_5 = arith.constant 0 : index
    %c0_6 = arith.constant 0 : index
    %c0_7 = arith.constant 0 : index
    %4 = vector.load %arg5[%c0_5, %c0_6, %c0_7] : memref<1x16x128xbf16, #tpu.memory_space<vmem>>, vector<1x16x128xbf16>
    %5 = vector.shape_cast %4 : vector<1x16x128xbf16> to vector<16x128xbf16>
    %6 = vector.extract_strided_slice %1 {offsets = [0, 0], sizes = [16, 64], strides = [1, 1]} : vector<16x128xbf16> to vector<16x64xbf16>
    %7 = vector.extract_strided_slice %3 {offsets = [0, 0], sizes = [16, 64], strides = [1, 1]} : vector<16x128xbf16> to vector<16x64xbf16>
    %cst = arith.constant dense<0.000000e+00> : vector<16x16xf32>
    %8 = tpu.matmul %6, %7, %cst {dimension_numbers = #tpu.dot_dimension_numbers<[1], [1], [0], [0], [0, 0, 1, 0], [], []>} : vector<16x64xbf16>, vector<16x64xbf16>, vector<16x16xf32> -> vector<16x16xf32>
    %cst_8 = arith.constant dense<0xFF800000> : vector<16xf32>
    %9 = vector.multi_reduction <maximumf>, %8, %cst_8 [1] : vector<16x16xf32> to vector<16xf32>
    %10 = vector.shape_cast %9 : vector<16xf32> to vector<16x1xf32>
    %11 = vector.broadcast %10 : vector<16x1xf32> to vector<16x16xf32>
    %12 = arith.subf %8, %11 : vector<16x16xf32>
    %13 = math.exp %12 : vector<16x16xf32>
    %cst_9 = arith.constant dense<0.000000e+00> : vector<16xf32>
    %14 = vector.multi_reduction <add>, %13, %cst_9 [1] : vector<16x16xf32> to vector<16xf32>
    %15 = vector.shape_cast %14 : vector<16xf32> to vector<16x1xf32>
    %16 = tpu.reciprocal %15 {approx = true} : vector<16x1xf32> -> vector<16x1xf32>
    %17 = vector.broadcast %16 : vector<16x1xf32> to vector<16x16xf32>
    %18 = arith.mulf %13, %17 : vector<16x16xf32>
    %19 = arith.truncf %18 : vector<16x16xf32> to vector<16x16xbf16>
    %20 = vector.extract_strided_slice %5 {offsets = [0, 0], sizes = [16, 64], strides = [1, 1]} : vector<16x128xbf16> to vector<16x64xbf16>
    %cst_10 = arith.constant dense<0.000000e+00> : vector<16x64xf32>
    %21 = tpu.matmul %19, %20, %cst_10 {dimension_numbers = #tpu.dot_dimension_numbers<[1], [0], [0], [1], [0, 0, 1, 1], [], []>} : vector<16x16xbf16>, vector<16x64xbf16>, vector<16x64xf32> -> vector<16x64xf32>
    %22 = arith.truncf %21 : vector<16x64xf32> to vector<16x64xbf16>
    %23 = vector.extract_strided_slice %1 {offsets = [0, 64], sizes = [16, 64], strides = [1, 1]} : vector<16x128xbf16> to vector<16x64xbf16>
    %24 = vector.extract_strided_slice %3 {offsets = [0, 64], sizes = [16, 64], strides = [1, 1]} : vector<16x128xbf16> to vector<16x64xbf16>
    %cst_11 = arith.constant dense<0.000000e+00> : vector<16x16xf32>
    %25 = tpu.matmul %23, %24, %cst_11 {dimension_numbers = #tpu.dot_dimension_numbers<[1], [1], [0], [0], [0, 0, 1, 0], [], []>} : vector<16x64xbf16>, vector<16x64xbf16>, vector<16x16xf32> -> vector<16x16xf32>
    %cst_12 = arith.constant dense<0xFF800000> : vector<16xf32>
    %26 = vector.multi_reduction <maximumf>, %25, %cst_12 [1] : vector<16x16xf32> to vector<16xf32>
    %27 = vector.shape_cast %26 : vector<16xf32> to vector<16x1xf32>
    %28 = vector.broadcast %27 : vector<16x1xf32> to vector<16x16xf32>
    %29 = arith.subf %25, %28 : vector<16x16xf32>
    %30 = math.exp %29 : vector<16x16xf32>
    %cst_13 = arith.constant dense<0.000000e+00> : vector<16xf32>
    %31 = vector.multi_reduction <add>, %30, %cst_13 [1] : vector<16x16xf32> to vector<16xf32>
    %32 = vector.shape_cast %31 : vector<16xf32> to vector<16x1xf32>
    %33 = tpu.reciprocal %32 {approx = true} : vector<16x1xf32> -> vector<16x1xf32>
    %34 = vector.broadcast %33 : vector<16x1xf32> to vector<16x16xf32>
    %35 = arith.mulf %30, %34 : vector<16x16xf32>
    %36 = arith.truncf %35 : vector<16x16xf32> to vector<16x16xbf16>
    %37 = vector.extract_strided_slice %5 {offsets = [0, 64], sizes = [16, 64], strides = [1, 1]} : vector<16x128xbf16> to vector<16x64xbf16>
    %cst_14 = arith.constant dense<0.000000e+00> : vector<16x64xf32>
    %38 = tpu.matmul %36, %37, %cst_14 {dimension_numbers = #tpu.dot_dimension_numbers<[1], [0], [0], [1], [0, 0, 1, 1], [], []>} : vector<16x16xbf16>, vector<16x64xbf16>, vector<16x64xf32> -> vector<16x64xf32>
    %39 = arith.truncf %38 : vector<16x64xf32> to vector<16x64xbf16>
    %40 = arith.addf %18, %35 : vector<16x16xf32>
    %41 = tpu.concatenate %22, %39 in 1 : vector<16x64xbf16>, vector<16x64xbf16> -> vector<16x128xbf16>
    %c0_15 = arith.constant 0 : index
    %c0_16 = arith.constant 0 : index
    %c0_17 = arith.constant 0 : index
    %42 = vector.load %arg6[%c0_15, %c0_16, %c0_17] : memref<1x16x128xbf16, #tpu.memory_space<vmem>>, vector<1x16x128xbf16>
    %43 = vector.shape_cast %42 : vector<1x16x128xbf16> to vector<16x128xbf16>
    %44 = vector.shape_cast %41 : vector<16x128xbf16> to vector<1x16x128xbf16>
    tpu.vector_store %arg6[%c0_15, %c0_16, %c0_17], %44 {strides = array<i32>} : memref<1x16x128xbf16, #tpu.memory_space<vmem>>, vector<1x16x128xbf16>,
    %cst_18 = arith.constant 2.500000e-01 : f32
    %45 = vector.broadcast %cst_18 : f32 to vector<16x16xf32>
    %46 = arith.mulf %40, %45 : vector<16x16xf32>
    %c0_i32 = arith.constant 0 : i32
    %47 = arith.cmpi eq, %arg2, %c0_i32 : i32
    %48 = arith.extui %47 : i1 to i32
    %c0_i32_19 = arith.constant 0 : i32
    %49 = arith.cmpi ne, %48, %c0_i32_19 : i32
    scf.if %49 {
      %c0_22 = arith.constant 0 : index
      %c0_23 = arith.constant 0 : index
      %c0_24 = arith.constant 0 : index
      %53 = vector.load %arg7[%c0_22, %c0_23, %c0_24] : memref<1x16x16xf32, #tpu.memory_space<vmem>>, vector<1x16x16xf32>
      %54 = vector.shape_cast %53 : vector<1x16x16xf32> to vector<16x16xf32>
      %55 = vector.shape_cast %46 : vector<16x16xf32> to vector<1x16x16xf32>
      tpu.vector_store %arg7[%c0_22, %c0_23, %c0_24], %55 {strides = array<i32>} : memref<1x16x16xf32, #tpu.memory_space<vmem>>, vector<1x16x16xf32>,
    } else {
    }
    %c0_i32_20 = arith.constant 0 : i32
    %50 = arith.cmpi sgt, %arg2, %c0_i32_20 : i32
    %51 = arith.extui %50 : i1 to i32
    %c0_i32_21 = arith.constant 0 : i32
    %52 = arith.cmpi ne, %51, %c0_i32_21 : i32
    scf.if %52 {
      %c0_22 = arith.constant 0 : index
      %c0_23 = arith.constant 0 : index
      %c0_24 = arith.constant 0 : index
      %53 = vector.load %arg7[%c0_22, %c0_23, %c0_24] : memref<1x16x16xf32, #tpu.memory_space<vmem>>, vector<1x16x16xf32>
      %54 = vector.shape_cast %53 : vector<1x16x16xf32> to vector<16x16xf32>
      %55 = arith.addf %54, %46 : vector<16x16xf32>
      %c0_25 = arith.constant 0 : index
      %c0_26 = arith.constant 0 : index
      %c0_27 = arith.constant 0 : index
      %56 = vector.load %arg7[%c0_25, %c0_26, %c0_27] : memref<1x16x16xf32, #tpu.memory_space<vmem>>, vector<1x16x16xf32>
      %57 = vector.shape_cast %56 : vector<1x16x16xf32> to vector<16x16xf32>
      %58 = vector.shape_cast %55 : vector<16x16xf32> to vector<1x16x16xf32>
      tpu.vector_store %arg7[%c0_25, %c0_26, %c0_27], %58 {strides = array<i32>} : memref<1x16x16xf32, #tpu.memory_space<vmem>>, vector<1x16x16xf32>,
    } else {
    }
    return
  }
  func.func @transform_0(%arg0: i32, %arg1: i32, %arg2: i32) -> (i32, i32, i32) {
    %c0_i32 = arith.constant 0 : i32
    return %arg0, %arg1, %arg2 : i32, i32, i32
  }
  func.func @transform_1(%arg0: i32, %arg1: i32, %arg2: i32) -> (i32, i32, i32) {
    %c0_i32 = arith.constant 0 : i32
    %c0_i32_0 = arith.constant 0 : i32
    return %arg0, %c0_i32, %arg2 : i32, i32, i32
  }
  func.func @transform_2(%arg0: i32, %arg1: i32, %arg2: i32) -> (i32, i32, i32) {
    %c0_i32 = arith.constant 0 : i32
    %c0_i32_0 = arith.constant 0 : i32
    return %arg0, %c0_i32, %arg2 : i32, i32, i32
  }
  func.func @transform_3(%arg0: i32, %arg1: i32, %arg2: i32) -> (i32, i32, i32) {
    %c0_i32 = arith.constant 0 : i32
    return %arg0, %arg1, %arg2 : i32, i32, i32
  }
  func.func @transform_4(%arg0: i32, %arg1: i32, %arg2: i32) -> (i32, i32, i32) {
    %c0_i32 = arith.constant 0 : i32
    %c0_i32_0 = arith.constant 0 : i32
    return %arg0, %arg1, %c0_i32 : i32, i32, i32
  }
}

module attributes {stable_mosaic.version = 11 : i64} {
  func.func @proj_mlp_kernel(%arg0: i32, %arg1: i32, %arg2: memref<1x16x256xbf16, #tpu.memory_space<vmem>>, %arg3: memref<1x16x256xf32, #tpu.memory_space<vmem>>, %arg4: memref<256x256xbf16, #tpu.memory_space<vmem>>, %arg5: memref<1x256xf32, #tpu.memory_space<vmem>>, %arg6: memref<1x256xf32, #tpu.memory_space<vmem>>, %arg7: memref<1x256xf32, #tpu.memory_space<vmem>>, %arg8: memref<512x256xbf16, #tpu.memory_space<vmem>>, %arg9: memref<1x512xf32, #tpu.memory_space<vmem>>, %arg10: memref<256x512xbf16, #tpu.memory_space<vmem>>, %arg11: memref<1x256xf32, #tpu.memory_space<vmem>>, %arg12: memref<1x16x256xf32, #tpu.memory_space<vmem>>) attributes {dimension_semantics = [#tpu.dimension_semantics<parallel>, #tpu.dimension_semantics<parallel>], iteration_bounds = array<i64: 2, 1>, scalar_prefetch = 0 : i64, scratch_operands = 0 : i64, tpu.core_type = #tpu.core_type<tc>, window_params = [{transform_indices = @transform_0, window_bounds = array<i64: 1, 16, 256>}, {transform_indices = @transform_1, window_bounds = array<i64: 1, 16, 256>}, {pipeline_mode = #tpu.pipeline_mode<synchronous>, transform_indices = @transform_2, window_bounds = array<i64: 256, 256>}, {pipeline_mode = #tpu.pipeline_mode<synchronous>, transform_indices = @transform_3, window_bounds = array<i64: 1, 256>}, {pipeline_mode = #tpu.pipeline_mode<synchronous>, transform_indices = @transform_4, window_bounds = array<i64: 1, 256>}, {pipeline_mode = #tpu.pipeline_mode<synchronous>, transform_indices = @transform_5, window_bounds = array<i64: 1, 256>}, {pipeline_mode = #tpu.pipeline_mode<synchronous>, transform_indices = @transform_6, window_bounds = array<i64: 512, 256>}, {pipeline_mode = #tpu.pipeline_mode<synchronous>, transform_indices = @transform_7, window_bounds = array<i64: 1, 512>}, {pipeline_mode = #tpu.pipeline_mode<synchronous>, transform_indices = @transform_8, window_bounds = array<i64: 256, 512>}, {pipeline_mode = #tpu.pipeline_mode<synchronous>, transform_indices = @transform_9, window_bounds = array<i64: 1, 256>}, {transform_indices = @transform_10, window_bounds = array<i64: 1, 16, 256>}]} {
    %c0 = arith.constant 0 : index
    %c0_0 = arith.constant 0 : index
    %c0_1 = arith.constant 0 : index
    %0 = vector.load %arg2[%c0, %c0_0, %c0_1] : memref<1x16x256xbf16, #tpu.memory_space<vmem>>, vector<1x16x256xbf16>
    %1 = vector.shape_cast %0 : vector<1x16x256xbf16> to vector<16x256xbf16>
    %c0_2 = arith.constant 0 : index
    %c0_3 = arith.constant 0 : index
    %2 = vector.load %arg4[%c0_2, %c0_3] : memref<256x256xbf16, #tpu.memory_space<vmem>>, vector<256x256xbf16>
    %cst = arith.constant dense<0.000000e+00> : vector<16x256xf32>
    %3 = tpu.matmul %1, %2, %cst {dimension_numbers = #tpu.dot_dimension_numbers<[1], [1], [0], [0], [0, 0, 1, 0], [], []>} : vector<16x256xbf16>, vector<256x256xbf16>, vector<16x256xf32> -> vector<16x256xf32>
    %c0_4 = arith.constant 0 : index
    %c0_5 = arith.constant 0 : index
    %4 = vector.load %arg5[%c0_4, %c0_5] : memref<1x256xf32, #tpu.memory_space<vmem>>, vector<1x256xf32>
    %5 = vector.broadcast %4 : vector<1x256xf32> to vector<16x256xf32>
    %6 = arith.addf %3, %5 : vector<16x256xf32>
    %c0_6 = arith.constant 0 : index
    %c0_7 = arith.constant 0 : index
    %c0_8 = arith.constant 0 : index
    %7 = vector.load %arg3[%c0_6, %c0_7, %c0_8] : memref<1x16x256xf32, #tpu.memory_space<vmem>>, vector<1x16x256xf32>
    %8 = vector.shape_cast %7 : vector<1x16x256xf32> to vector<16x256xf32>
    %9 = arith.addf %6, %8 : vector<16x256xf32>
    %c0_9 = arith.constant 0 : index
    %c0_10 = arith.constant 0 : index
    %10 = vector.load %arg6[%c0_9, %c0_10] : memref<1x256xf32, #tpu.memory_space<vmem>>, vector<1x256xf32>
    %c0_11 = arith.constant 0 : index
    %c0_12 = arith.constant 0 : index
    %11 = vector.load %arg7[%c0_11, %c0_12] : memref<1x256xf32, #tpu.memory_space<vmem>>, vector<1x256xf32>
    %cst_13 = arith.constant dense<0.000000e+00> : vector<16xf32>
    %12 = vector.multi_reduction <add>, %9, %cst_13 [1] : vector<16x256xf32> to vector<16xf32>
    %13 = vector.shape_cast %12 : vector<16xf32> to vector<16x1xf32>
    %cst_14 = arith.constant 2.560000e+02 : f32
    %14 = vector.broadcast %cst_14 : f32 to vector<16x1xf32>
    %15 = arith.divf %13, %14 : vector<16x1xf32>
    %16 = vector.broadcast %15 : vector<16x1xf32> to vector<16x256xf32>
    %17 = arith.subf %9, %16 : vector<16x256xf32>
    %18 = arith.mulf %17, %17 : vector<16x256xf32>
    %cst_15 = arith.constant dense<0.000000e+00> : vector<16xf32>
    %19 = vector.multi_reduction <add>, %18, %cst_15 [1] : vector<16x256xf32> to vector<16xf32>
    %20 = vector.shape_cast %19 : vector<16xf32> to vector<16x1xf32>
    %cst_16 = arith.constant 2.560000e+02 : f32
    %21 = vector.broadcast %cst_16 : f32 to vector<16x1xf32>
    %22 = arith.divf %20, %21 : vector<16x1xf32>
    %23 = vector.broadcast %15 : vector<16x1xf32> to vector<16x256xf32>
    %24 = arith.subf %9, %23 : vector<16x256xf32>
    %cst_17 = arith.constant 9.99999974E-6 : f32
    %25 = vector.broadcast %cst_17 : f32 to vector<16x1xf32>
    %26 = arith.addf %22, %25 : vector<16x1xf32>
    %27 = math.rsqrt %26 : vector<16x1xf32>
    %28 = vector.broadcast %27 : vector<16x1xf32> to vector<16x256xf32>
    %29 = arith.mulf %24, %28 : vector<16x256xf32>
    %30 = vector.broadcast %10 : vector<1x256xf32> to vector<16x256xf32>
    %31 = arith.mulf %29, %30 : vector<16x256xf32>
    %32 = vector.broadcast %11 : vector<1x256xf32> to vector<16x256xf32>
    %33 = arith.addf %31, %32 : vector<16x256xf32>
    %34 = arith.truncf %33 : vector<16x256xf32> to vector<16x256xbf16>
    %c0_18 = arith.constant 0 : index
    %c0_19 = arith.constant 0 : index
    %35 = vector.load %arg8[%c0_18, %c0_19] : memref<512x256xbf16, #tpu.memory_space<vmem>>, vector<512x256xbf16>
    %cst_20 = arith.constant dense<0.000000e+00> : vector<16x512xf32>
    %36 = tpu.matmul %34, %35, %cst_20 {dimension_numbers = #tpu.dot_dimension_numbers<[1], [1], [0], [0], [0, 0, 1, 0], [], []>} : vector<16x256xbf16>, vector<512x256xbf16>, vector<16x512xf32> -> vector<16x512xf32>
    %c0_21 = arith.constant 0 : index
    %c0_22 = arith.constant 0 : index
    %37 = vector.load %arg9[%c0_21, %c0_22] : memref<1x512xf32, #tpu.memory_space<vmem>>, vector<1x512xf32>
    %38 = vector.broadcast %37 : vector<1x512xf32> to vector<16x512xf32>
    %39 = arith.addf %36, %38 : vector<16x512xf32>
    %cst_23 = arith.constant 5.000000e-01 : f32
    %40 = vector.broadcast %cst_23 : f32 to vector<16x512xf32>
    %41 = arith.mulf %40, %39 : vector<16x512xf32>
    %42 = arith.mulf %39, %39 : vector<16x512xf32>
    %43 = arith.mulf %42, %39 : vector<16x512xf32>
    %cst_24 = arith.constant 4.471500e-02 : f32
    %44 = vector.broadcast %cst_24 : f32 to vector<16x512xf32>
    %45 = arith.mulf %44, %43 : vector<16x512xf32>
    %46 = arith.addf %39, %45 : vector<16x512xf32>
    %cst_25 = arith.constant 0.797884583 : f32
    %47 = vector.broadcast %cst_25 : f32 to vector<16x512xf32>
    %48 = arith.mulf %47, %46 : vector<16x512xf32>
    %49 = math.tanh %48 : vector<16x512xf32>
    %cst_26 = arith.constant 1.000000e+00 : f32
    %50 = vector.broadcast %cst_26 : f32 to vector<16x512xf32>
    %51 = arith.addf %50, %49 : vector<16x512xf32>
    %52 = arith.mulf %41, %51 : vector<16x512xf32>
    %53 = arith.truncf %52 : vector<16x512xf32> to vector<16x512xbf16>
    %c0_27 = arith.constant 0 : index
    %c0_28 = arith.constant 0 : index
    %54 = vector.load %arg10[%c0_27, %c0_28] : memref<256x512xbf16, #tpu.memory_space<vmem>>, vector<256x512xbf16>
    %cst_29 = arith.constant dense<0.000000e+00> : vector<16x256xf32>
    %55 = tpu.matmul %53, %54, %cst_29 {dimension_numbers = #tpu.dot_dimension_numbers<[1], [1], [0], [0], [0, 0, 1, 0], [], []>} : vector<16x512xbf16>, vector<256x512xbf16>, vector<16x256xf32> -> vector<16x256xf32>
    %c0_30 = arith.constant 0 : index
    %c0_31 = arith.constant 0 : index
    %56 = vector.load %arg11[%c0_30, %c0_31] : memref<1x256xf32, #tpu.memory_space<vmem>>, vector<1x256xf32>
    %57 = vector.broadcast %56 : vector<1x256xf32> to vector<16x256xf32>
    %58 = arith.addf %55, %57 : vector<16x256xf32>
    %59 = arith.addf %58, %9 : vector<16x256xf32>
    %c0_32 = arith.constant 0 : index
    %c0_33 = arith.constant 0 : index
    %c0_34 = arith.constant 0 : index
    %60 = vector.load %arg12[%c0_32, %c0_33, %c0_34] : memref<1x16x256xf32, #tpu.memory_space<vmem>>, vector<1x16x256xf32>
    %61 = vector.shape_cast %60 : vector<1x16x256xf32> to vector<16x256xf32>
    %62 = vector.shape_cast %59 : vector<16x256xf32> to vector<1x16x256xf32>
    tpu.vector_store %arg12[%c0_32, %c0_33, %c0_34], %62 {strides = array<i32>} : memref<1x16x256xf32, #tpu.memory_space<vmem>>, vector<1x16x256xf32>,
    return
  }
  func.func @transform_0(%arg0: i32, %arg1: i32) -> (i32, i32, i32) {
    %c0_i32 = arith.constant 0 : i32
    %c0_i32_0 = arith.constant 0 : i32
    return %arg0, %arg1, %c0_i32 : i32, i32, i32
  }
  func.func @transform_1(%arg0: i32, %arg1: i32) -> (i32, i32, i32) {
    %c0_i32 = arith.constant 0 : i32
    %c0_i32_0 = arith.constant 0 : i32
    return %arg0, %arg1, %c0_i32 : i32, i32, i32
  }
  func.func @transform_2(%arg0: i32, %arg1: i32) -> (i32, i32) {
    %c0_i32 = arith.constant 0 : i32
    %c0_i32_0 = arith.constant 0 : i32
    %c0_i32_1 = arith.constant 0 : i32
    return %c0_i32, %c0_i32_0 : i32, i32
  }
  func.func @transform_3(%arg0: i32, %arg1: i32) -> (i32, i32) {
    %c0_i32 = arith.constant 0 : i32
    %c0_i32_0 = arith.constant 0 : i32
    %c0_i32_1 = arith.constant 0 : i32
    return %c0_i32, %c0_i32_0 : i32, i32
  }
  func.func @transform_4(%arg0: i32, %arg1: i32) -> (i32, i32) {
    %c0_i32 = arith.constant 0 : i32
    %c0_i32_0 = arith.constant 0 : i32
    %c0_i32_1 = arith.constant 0 : i32
    return %c0_i32, %c0_i32_0 : i32, i32
  }
  func.func @transform_5(%arg0: i32, %arg1: i32) -> (i32, i32) {
    %c0_i32 = arith.constant 0 : i32
    %c0_i32_0 = arith.constant 0 : i32
    %c0_i32_1 = arith.constant 0 : i32
    return %c0_i32, %c0_i32_0 : i32, i32
  }
  func.func @transform_6(%arg0: i32, %arg1: i32) -> (i32, i32) {
    %c0_i32 = arith.constant 0 : i32
    %c0_i32_0 = arith.constant 0 : i32
    %c0_i32_1 = arith.constant 0 : i32
    return %c0_i32, %c0_i32_0 : i32, i32
  }
  func.func @transform_7(%arg0: i32, %arg1: i32) -> (i32, i32) {
    %c0_i32 = arith.constant 0 : i32
    %c0_i32_0 = arith.constant 0 : i32
    %c0_i32_1 = arith.constant 0 : i32
    return %c0_i32, %c0_i32_0 : i32, i32
  }
  func.func @transform_8(%arg0: i32, %arg1: i32) -> (i32, i32) {
    %c0_i32 = arith.constant 0 : i32
    %c0_i32_0 = arith.constant 0 : i32
    %c0_i32_1 = arith.constant 0 : i32
    return %c0_i32, %c0_i32_0 : i32, i32
  }
  func.func @transform_9(%arg0: i32, %arg1: i32) -> (i32, i32) {
    %c0_i32 = arith.constant 0 : i32
    %c0_i32_0 = arith.constant 0 : i32
    %c0_i32_1 = arith.constant 0 : i32
    return %c0_i32, %c0_i32_0 : i32, i32
  }
  func.func @transform_10(%arg0: i32, %arg1: i32) -> (i32, i32, i32) {
    %c0_i32 = arith.constant 0 : i32
    %c0_i32_0 = arith.constant 0 : i32
    return %arg0, %arg1, %c0_i32 : i32, i32, i32
  }
}

</mosaic_0001>

<llo_original>
// kernel: encoder_block.4
$region0: #{encoder_block.4}
  #allocation0 [shape = 'u32[]', space=smem, size = 0x4, offset = 0x4, fixed_abs, tag = 'smem constant byte address 0x4 - core index']
  #allocation1 [shape = 'u32[72,128]{1,0:T(1,128)}', space=vmem, size = 0x9000, scoped, tag = 'internal scratch']
  %s0 = inlined_call_operand.vmem [shape: bf16[2,16,256], index: 0, kind: input, shape index: {}]
  %s1 = inlined_call_operand.vmem [shape: bf16[2,16,256], index: 1, kind: input, shape index: {}]
  %s2 = inlined_call_operand.vmem [shape: bf16[2,16,256], index: 2, kind: input, shape index: {}]
  %s3 = inlined_call_operand.vmem [shape: bf16[2,16,256], index: 3, kind: output, shape index: {0}]
  %s4 = inlined_call_operand.hbm [shape: f32[2,16,16], index: 4, kind: output, shape index: {1}]
  %5 = xla_tuple %s3, %s4
  %s6 = sld [smem:[#allocation0]]
  $region221: #{encoder_block.4} parent=0
    _
  %s8 = ssub.s32 1, %s6
  %s9 = scalar_select 0, %s8, %s6
  $region1: #{encoder_block.4} parent=0
    #allocation2 [shape = 'u8[8192]{0}', space=vmem, size = 0x2000, scoped, tag = 'input window, operand 0']
    #allocation3 [shape = 'u8[8192]{0}', space=vmem, size = 0x2000, scoped, tag = 'input window, operand 1']
    #allocation4 [shape = 'u8[8192]{0}', space=vmem, size = 0x2000, scoped, tag = 'input window, operand 2']
    #allocation5 [shape = 'u8[8192]{0}', space=vmem, size = 0x2000, scoped, tag = 'output window, operand 0']
    #allocation6 [shape = 'u8[16384]{0}', space=vmem, size = 0x4000, scoped, tag = 'output window, operand 1']
    #allocation7 [shape = 's32[2]{0}', space=sflag, size = 0x8, scoped, tag = 'scoped memory for encoder_block.4']
    %10 = vsyncpa [#allocation7], 0
    %s11 = scalar_lea.sflag [#allocation7], 1
    %12 = vsyncpa %s11, 0
    loop: start=0, step=1, limit=6
    $region2: #{encoder_block.4} parent=1 // loop_pre_header
      _
    $region3: #{encoder_block.4} parent=1 // loop_header
      %s14 = sphi 0, %s18
      %p15 = scmp.ge.s32.totalorder %s14, 6
      %s21 = sphi 0, %s40
      %s22 = sphi 0, %s36
      %s23 = sphi 0, %s32
      %s24 = sphi 0, %s21
      %s25 = sphi 0, %s22
      %s26 = sphi 0, %s23
      %s27 = sphi 0, %s24
      %s28 = sphi 0, %s25
      %s29 = sphi 0, %s26
      %s47 = sphi 0, %s49
      %s50 = sphi 0, %s47
      %s51 = sphi 0, %s50
      %s67 = sphi 0, %s51
      %s75 = sphi 0, %s77
      %s78 = sphi 0, %s75
      %s79 = sphi 0, %s78
      %s95 = sphi 0, %s79
      %s103 = sphi 0, %s105
      %s106 = sphi 0, %s103
      %s107 = sphi 0, %s106
      %s123 = sphi 0, %s107
      %s133 = sphi 0, %s135
      %s136 = sphi 0, %s133
      %s137 = sphi 0, %s136
      %s153 = sphi 0, %s137
      %s161 = sphi 0, %s163
      %s164 = sphi 0, %s161
      %s165 = sphi 0, %s164
      %s181 = sphi 0, %s165
    $region4: #{encoder_block.4} parent=1 // loop_header_branch
      %17 = sbr.rel (%p15) target = $region8
    $region5: #{encoder_block.4} parent=1 // loop_body
      %s19 = ssub.s32 %s14, 1
      %s20 = ssub.s32 %s14, 2
      %s30 = sadd.s32 1, %s23
      %p31 = scmp.ge.s32.totalorder %s30, 2
      %s32 = scalar_select %p31, 0, %s30
      %s33 = sadd.s32 1, %s22
      %s34 = scalar_select %p31, %s33, %s22
      %p35 = scmp.ge.s32.totalorder %s34, 1
      %s36 = scalar_select %p35, 0, %s34
      %s37 = sadd.s32 1, %s21
      %s38 = scalar_select %p35, %s37, %s21
      %p39 = scmp.ge.s32.totalorder %s38, 2
      %s40 = scalar_select %p39, 0, %s38
      %s41 = ssub.s32 %s21, %s40
      %s42 = ssub.s32 %s22, %s36
      %s43 = sor.u32 %s41, %s42
      %s44 = ssub.s32 %s23, %s32
      %s45 = sor.u32 %s43, %s44
      %p46 = scmp.eq.s32.totalorder %s45, 0
      %s48 = sadd.s32 %s47, 1
      %s49 = scalar_select %p46, %s47, %s48
      %p52 = pneg %p46
      %p53 = scmp.eq.s32.totalorder %s14, 3
      %p54 = por %p52, %p53
      %p55 = scmp.ne.s32.totalorder %s47, %s50
      %p56 = scmp.eq.s32.totalorder %s14, 0
      %p57 = por %p55, %p56
      %p58 = scmp.ne.s32.totalorder %s47, %s50
      %p59 = scmp.eq.s32.totalorder %s19, 3
      %p60 = por %p58, %p59
      %p61 = scmp.ne.s32.totalorder %s50, %s51
      %p62 = scmp.eq.s32.totalorder %s19, 0
      %p63 = por %p61, %p62
      %p64 = scmp.ne.s32.totalorder %s50, %s51
      %p65 = scmp.eq.s32.totalorder %s20, 3
      %p66 = por %p64, %p65
      %p68 = scmp.ne.s32.totalorder %s51, %s67
      %p69 = scmp.eq.s32.totalorder %s20, 0
      %p70 = por %p68, %p69
      %s71 = ssub.s32 %s21, %s40
      %s72 = ssub.s32 %s23, %s32
      %s73 = sor.u32 %s71, %s72
      %p74 = scmp.eq.s32.totalorder %s73, 0
      %s76 = sadd.s32 %s75, 1
      %s77 = scalar_select %p74, %s75, %s76
      %p80 = pneg %p74
      %p81 = scmp.eq.s32.totalorder %s14, 3
      %p82 = por %p80, %p81
      %p83 = scmp.ne.s32.totalorder %s75, %s78
      %p84 = scmp.eq.s32.totalorder %s14, 0
      %p85 = por %p83, %p84
      %p86 = scmp.ne.s32.totalorder %s75, %s78
      %p87 = scmp.eq.s32.totalorder %s19, 3
      %p88 = por %p86, %p87
      %p89 = scmp.ne.s32.totalorder %s78, %s79
      %p90 = scmp.eq.s32.totalorder %s19, 0
      %p91 = por %p89, %p90
      %p92 = scmp.ne.s32.totalorder %s78, %s79
      %p93 = scmp.eq.s32.totalorder %s20, 3
      %p94 = por %p92, %p93
      %p96 = scmp.ne.s32.totalorder %s79, %s95
      %p97 = scmp.eq.s32.totalorder %s20, 0
      %p98 = por %p96, %p97
      %s99 = ssub.s32 %s21, %s40
      %s100 = ssub.s32 %s23, %s32
      %s101 = sor.u32 %s99, %s100
      %p102 = scmp.eq.s32.totalorder %s101, 0
      %s104 = sadd.s32 %s103, 1
      %s105 = scalar_select %p102, %s103, %s104
      %p108 = pneg %p102
      %p109 = scmp.eq.s32.totalorder %s14, 3
      %p110 = por %p108, %p109
      %p111 = scmp.ne.s32.totalorder %s103, %s106
      %p112 = scmp.eq.s32.totalorder %s14, 0
      %p113 = por %p111, %p112
      %p114 = scmp.ne.s32.totalorder %s103, %s106
      %p115 = scmp.eq.s32.totalorder %s19, 3
      %p116 = por %p114, %p115
      %p117 = scmp.ne.s32.totalorder %s106, %s107
      %p118 = scmp.eq.s32.totalorder %s19, 0
      %p119 = por %p117, %p118
      %p120 = scmp.ne.s32.totalorder %s106, %s107
      %p121 = scmp.eq.s32.totalorder %s20, 3
      %p122 = por %p120, %p121
      %p124 = scmp.ne.s32.totalorder %s107, %s123
      %p125 = scmp.eq.s32.totalorder %s20, 0
      %p126 = por %p124, %p125
      %s127 = ssub.s32 %s21, %s40
      %s128 = ssub.s32 %s22, %s36
      %s129 = sor.u32 %s127, %s128
      %s130 = ssub.s32 %s23, %s32
      %s131 = sor.u32 %s129, %s130
      %p132 = scmp.eq.s32.totalorder %s131, 0
      %s134 = sadd.s32 %s133, 1
      %s135 = scalar_select %p132, %s133, %s134
      %p138 = pneg %p132
      %p139 = scmp.eq.s32.totalorder %s14, 3
      %p140 = por %p138, %p139
      %p141 = scmp.ne.s32.totalorder %s133, %s136
      %p142 = scmp.eq.s32.totalorder %s14, 0
      %p143 = por %p141, %p142
      %p144 = scmp.ne.s32.totalorder %s133, %s136
      %p145 = scmp.eq.s32.totalorder %s19, 3
      %p146 = por %p144, %p145
      %p147 = scmp.ne.s32.totalorder %s136, %s137
      %p148 = scmp.eq.s32.totalorder %s19, 0
      %p149 = por %p147, %p148
      %p150 = scmp.ne.s32.totalorder %s136, %s137
      %p151 = scmp.eq.s32.totalorder %s20, 3
      %p152 = por %p150, %p151
      %p154 = scmp.ne.s32.totalorder %s137, %s153
      %p155 = scmp.eq.s32.totalorder %s20, 0
      %p156 = por %p154, %p155
      %s157 = ssub.s32 %s21, %s40
      %s158 = ssub.s32 %s22, %s36
      %s159 = sor.u32 %s157, %s158
      %p160 = scmp.eq.s32.totalorder %s159, 0
      %s162 = sadd.s32 %s161, 1
      %s163 = scalar_select %p160, %s161, %s162
      %p166 = pneg %p160
      %p167 = scmp.eq.s32.totalorder %s14, 3
      %p168 = por %p166, %p167
      %p169 = scmp.ne.s32.totalorder %s161, %s164
      %p170 = scmp.eq.s32.totalorder %s14, 0
      %p171 = por %p169, %p170
      %p172 = scmp.ne.s32.totalorder %s161, %s164
      %p173 = scmp.eq.s32.totalorder %s19, 3
      %p174 = por %p172, %p173
      %p175 = scmp.ne.s32.totalorder %s164, %s165
      %p176 = scmp.eq.s32.totalorder %s19, 0
      %p177 = por %p175, %p176
      %p178 = scmp.ne.s32.totalorder %s164, %s165
      %p179 = scmp.eq.s32.totalorder %s20, 3
      %p180 = por %p178, %p179
      %p182 = scmp.ne.s32.totalorder %s165, %s181
      %p183 = scmp.eq.s32.totalorder %s20, 0
      %p184 = por %p182, %p183
      %p185 = scmp.le.s32.totalorder 1, %s14
      %p186 = scmp.lt.s32.totalorder %s14, 5
      %p187 = pnand %p185, %p186
      %p188 = pneg %p187
      // Predicated region
      $region9: #{encoder_block.4} parent=5 // pred_check
        _
      $region10: #{encoder_block.4} parent=5 // pred_check_branch
        %190 = sbr.rel (%p187) target = $region12
      $region11: #{encoder_block.4} parent=5 // pred_region
        %s191 = ssub.s32 %s14, 1
      $region12: #{encoder_block.4} parent=5 // pred_fallthru
        _
      %p192 = scmp.lt.s32.totalorder %s14, 4
      // Predicated region
      $region13: #{encoder_block.4} parent=5 // pred_check
        %p193 = pneg %p192
      $region14: #{encoder_block.4} parent=5 // pred_check_branch
        %195 = sbr.rel (%p193) target = $region16
      $region15: #{encoder_block.4} parent=5 // pred_region
        // Predicated region
        $region17: #{encoder_block.4} parent=15 // pred_check
          %p196 = pneg %p57
        $region18: #{encoder_block.4} parent=15 // pred_check_branch
          %198 = sbr.rel (%p196) target = $region20
        $region19: #{encoder_block.4} parent=15 // pred_region
          %s199 = sand.u32 %s47, 1
          %s200 = sand.u32 %s47, 1
          %s201 = smul.addr %s200, 8
          %s202 = scalar_lea.vmem [#allocation2], %s201
          %s203 = smul.u32 2, %s22
          %s204 = smul.addr %s203, 2
          %s205 = sadd.s32 %s23, %s204
          %s206 = smul.addr %s21, 4
          %s207 = sadd.s32 %s205, %s206
          %s208 = smul.addr %s207, 4
          %s209 = scalar_lea.vmem %s0, %s208
          // Predicated region
          $region21: #{encoder_block.4} parent=19 // pred_check
            _
          $region22: #{encoder_block.4} parent=19 // pred_check_branch
            %211 = sbr.rel (0) target = $region24
          $region23: #{encoder_block.4} parent=19 // pred_region
            // Predicated region
            $region25: #{encoder_block.4} parent=23 // pred_check
              _
            $region26: #{encoder_block.4} parent=23 // pred_check_branch
              %213 = sbr.rel target = $region28
            $region27: #{encoder_block.4} parent=23 // pred_region
              // Predicated region
              $region40: #{encoder_block.4} parent=27 // pred_check
                _
              $region41: #{encoder_block.4} parent=27 // pred_check_branch
                %231 = sbr.rel (0) target = $region43
              $region42: #{encoder_block.4} parent=27 // pred_region
                loop: start=0, step=1, limit=1
                $region44: #{encoder_block.4} parent=42 // loop_pre_header
                  _
                $region45: #{encoder_block.4} parent=42 // loop_header
                  %s233 = sphi 0, %s237
                  %p234 = scmp.ge.s32.totalorder %s233, 1
                  %s238 = sphi %s209, %s209
                  %s239 = sphi %s202, %s202
                $region46: #{encoder_block.4} parent=42 // loop_header_branch
                  %236 = sbr.rel (%p234) target = $region50
                $region47: #{encoder_block.4} parent=42 // loop_body
                  _
                $region48: #{encoder_block.4} parent=42 // loop_footer
                  %s237 = sadd.s32 1, %s233
                $region49: #{encoder_block.4} parent=42 // loop_footer_branch
                  %232 = sbr.rel target = $region45
                $region50: #{encoder_block.4} parent=42 // loop_exit
                  _
                %s241 = ssub.s32 16, 1
                loop: start=0, step=1, limit=1
                $region51: #{encoder_block.4} parent=42 // loop_pre_header
                  _
                $region52: #{encoder_block.4} parent=42 // loop_header
                  %s243 = sphi 0, %s247
                  %p244 = scmp.ge.s32.totalorder %s243, 1
                  %s248 = sphi %s209, %s209
                  %s249 = sphi %s202, %s202
                $region53: #{encoder_block.4} parent=42 // loop_header_branch
                  %246 = sbr.rel (%p244) target = $region57
                $region54: #{encoder_block.4} parent=42 // loop_body
                  %v250 = vld [vmem:[%s248] sm:%s241]
                  %251 = vst [vmem:[%s249] sm:%s241] %v250
                  %v252 = vld [vmem:[%s248 + $0x8] sm:%s241]
                  %253 = vst [vmem:[%s249 + $0x4] sm:%s241] %v252
                $region55: #{encoder_block.4} parent=42 // loop_footer
                  %s247 = sadd.s32 1, %s243
                $region56: #{encoder_block.4} parent=42 // loop_footer_branch
                  %242 = sbr.rel target = $region52
                $region57: #{encoder_block.4} parent=42 // loop_exit
                  _
              $region43: #{encoder_block.4} parent=27 // pred_fallthru
                _
            $region28: #{encoder_block.4} parent=23 // pred_fallthru
              _
            // Predicated region
            $region29: #{encoder_block.4} parent=23 // pred_check
              _
            $region30: #{encoder_block.4} parent=23 // pred_check_branch
              %215 = sbr.rel (0) target = $region32
            $region31: #{encoder_block.4} parent=23 // pred_region
              %s217 = ssub.s32 16, 1
              loop: start=0, step=1, limit=1
              $region33: #{encoder_block.4} parent=31 // loop_pre_header
                _
              $region34: #{encoder_block.4} parent=31 // loop_header
                %s219 = sphi 0, %s223
                %p220 = scmp.ge.s32.totalorder %s219, 1
                %s224 = sphi %s209, %s209
                %s225 = sphi %s202, %s202
              $region35: #{encoder_block.4} parent=31 // loop_header_branch
                %222 = sbr.rel (%p220) target = $region39
              $region36: #{encoder_block.4} parent=31 // loop_body
                %v226 = vld [vmem:[%s224] sm:%s217]
                %227 = vst [vmem:[%s225] sm:%s217] %v226
                %v228 = vld [vmem:[%s224 + $0x8] sm:%s217]
                %229 = vst [vmem:[%s225 + $0x4] sm:%s217] %v228
              $region37: #{encoder_block.4} parent=31 // loop_footer
                %s223 = sadd.s32 1, %s219
              $region38: #{encoder_block.4} parent=31 // loop_footer_branch
                %218 = sbr.rel target = $region34
              $region39: #{encoder_block.4} parent=31 // loop_exit
                _
            $region32: #{encoder_block.4} parent=23 // pred_fallthru
              _
          $region24: #{encoder_block.4} parent=19 // pred_fallthru
            _
          %254 = vnop
        $region20: #{encoder_block.4} parent=15 // pred_fallthru
          _
        // Predicated region
        $region58: #{encoder_block.4} parent=15 // pred_check
          %p255 = pneg %p85
        $region59: #{encoder_block.4} parent=15 // pred_check_branch
          %257 = sbr.rel (%p255) target = $region61
        $region60: #{encoder_block.4} parent=15 // pred_region
          %s258 = sand.u32 %s75, 1
          %s259 = sand.u32 %s75, 1
          %s260 = smul.addr %s259, 8
          %s261 = scalar_lea.vmem [#allocation3], %s260
          %s262 = smul.addr %s21, 4
          %s263 = sadd.s32 %s23, %s262
          %s264 = smul.addr %s263, 4
          %s265 = scalar_lea.vmem %s1, %s264
          // Predicated region
          $region62: #{encoder_block.4} parent=60 // pred_check
            _
          $region63: #{encoder_block.4} parent=60 // pred_check_branch
            %267 = sbr.rel (0) target = $region65
          $region64: #{encoder_block.4} parent=60 // pred_region
            // Predicated region
            $region66: #{encoder_block.4} parent=64 // pred_check
              _
            $region67: #{encoder_block.4} parent=64 // pred_check_branch
              %269 = sbr.rel target = $region69
            $region68: #{encoder_block.4} parent=64 // pred_region
              // Predicated region
              $region81: #{encoder_block.4} parent=68 // pred_check
                _
              $region82: #{encoder_block.4} parent=68 // pred_check_branch
                %287 = sbr.rel (0) target = $region84
              $region83: #{encoder_block.4} parent=68 // pred_region
                loop: start=0, step=1, limit=1
                $region85: #{encoder_block.4} parent=83 // loop_pre_header
                  _
                $region86: #{encoder_block.4} parent=83 // loop_header
                  %s289 = sphi 0, %s293
                  %p290 = scmp.ge.s32.totalorder %s289, 1
                  %s294 = sphi %s265, %s265
                  %s295 = sphi %s261, %s261
                $region87: #{encoder_block.4} parent=83 // loop_header_branch
                  %292 = sbr.rel (%p290) target = $region91
                $region88: #{encoder_block.4} parent=83 // loop_body
                  _
                $region89: #{encoder_block.4} parent=83 // loop_footer
                  %s293 = sadd.s32 1, %s289
                $region90: #{encoder_block.4} parent=83 // loop_footer_branch
                  %288 = sbr.rel target = $region86
                $region91: #{encoder_block.4} parent=83 // loop_exit
                  _
                %s297 = ssub.s32 16, 1
                loop: start=0, step=1, limit=1
                $region92: #{encoder_block.4} parent=83 // loop_pre_header
                  _
                $region93: #{encoder_block.4} parent=83 // loop_header
                  %s299 = sphi 0, %s303
                  %p300 = scmp.ge.s32.totalorder %s299, 1
                  %s304 = sphi %s265, %s265
                  %s305 = sphi %s261, %s261
                $region94: #{encoder_block.4} parent=83 // loop_header_branch
                  %302 = sbr.rel (%p300) target = $region98
                $region95: #{encoder_block.4} parent=83 // loop_body
                  %v306 = vld [vmem:[%s304] sm:%s297]
                  %307 = vst [vmem:[%s305] sm:%s297] %v306
                  %v308 = vld [vmem:[%s304 + $0x8] sm:%s297]
                  %309 = vst [vmem:[%s305 + $0x4] sm:%s297] %v308
                $region96: #{encoder_block.4} parent=83 // loop_footer
                  %s303 = sadd.s32 1, %s299
                $region97: #{encoder_block.4} parent=83 // loop_footer_branch
                  %298 = sbr.rel target = $region93
                $region98: #{encoder_block.4} parent=83 // loop_exit
                  _
              $region84: #{encoder_block.4} parent=68 // pred_fallthru
                _
            $region69: #{encoder_block.4} parent=64 // pred_fallthru
              _
            // Predicated region
            $region70: #{encoder_block.4} parent=64 // pred_check
              _
            $region71: #{encoder_block.4} parent=64 // pred_check_branch
              %271 = sbr.rel (0) target = $region73
            $region72: #{encoder_block.4} parent=64 // pred_region
              %s273 = ssub.s32 16, 1
              loop: start=0, step=1, limit=1
              $region74: #{encoder_block.4} parent=72 // loop_pre_header
                _
              $region75: #{encoder_block.4} parent=72 // loop_header
                %s275 = sphi 0, %s279
                %p276 = scmp.ge.s32.totalorder %s275, 1
                %s280 = sphi %s265, %s265
                %s281 = sphi %s261, %s261
              $region76: #{encoder_block.4} parent=72 // loop_header_branch
                %278 = sbr.rel (%p276) target = $region80
              $region77: #{encoder_block.4} parent=72 // loop_body
                %v282 = vld [vmem:[%s280] sm:%s273]
                %283 = vst [vmem:[%s281] sm:%s273] %v282
                %v284 = vld [vmem:[%s280 + $0x8] sm:%s273]
                %285 = vst [vmem:[%s281 + $0x4] sm:%s273] %v284
              $region78: #{encoder_block.4} parent=72 // loop_footer
                %s279 = sadd.s32 1, %s275
              $region79: #{encoder_block.4} parent=72 // loop_footer_branch
                %274 = sbr.rel target = $region75
              $region80: #{encoder_block.4} parent=72 // loop_exit
                _
            $region73: #{encoder_block.4} parent=64 // pred_fallthru
              _
          $region65: #{encoder_block.4} parent=60 // pred_fallthru
            _
          %310 = vnop
        $region61: #{encoder_block.4} parent=15 // pred_fallthru
          _
        // Predicated region
        $region99: #{encoder_block.4} parent=15 // pred_check
          %p311 = pneg %p113
        $region100: #{encoder_block.4} parent=15 // pred_check_branch
          %313 = sbr.rel (%p311) target = $region102
        $region101: #{encoder_block.4} parent=15 // pred_region
          %s314 = sand.u32 %s103, 1
          %s315 = sand.u32 %s103, 1
          %s316 = smul.addr %s315, 8
          %s317 = scalar_lea.vmem [#allocation4], %s316
          %s318 = smul.addr %s21, 4
          %s319 = sadd.s32 %s23, %s318
          %s320 = smul.addr %s319, 4
          %s321 = scalar_lea.vmem %s2, %s320
          // Predicated region
          $region103: #{encoder_block.4} parent=101 // pred_check
            _
          $region104: #{encoder_block.4} parent=101 // pred_check_branch
            %323 = sbr.rel (0) target = $region106
          $region105: #{encoder_block.4} parent=101 // pred_region
            // Predicated region
            $region107: #{encoder_block.4} parent=105 // pred_check
              _
            $region108: #{encoder_block.4} parent=105 // pred_check_branch
              %325 = sbr.rel target = $region110
            $region109: #{encoder_block.4} parent=105 // pred_region
              // Predicated region
              $region122: #{encoder_block.4} parent=109 // pred_check
                _
              $region123: #{encoder_block.4} parent=109 // pred_check_branch
                %343 = sbr.rel (0) target = $region125
              $region124: #{encoder_block.4} parent=109 // pred_region
                loop: start=0, step=1, limit=1
                $region126: #{encoder_block.4} parent=124 // loop_pre_header
                  _
                $region127: #{encoder_block.4} parent=124 // loop_header
                  %s345 = sphi 0, %s349
                  %p346 = scmp.ge.s32.totalorder %s345, 1
                  %s350 = sphi %s321, %s321
                  %s351 = sphi %s317, %s317
                $region128: #{encoder_block.4} parent=124 // loop_header_branch
                  %348 = sbr.rel (%p346) target = $region132
                $region129: #{encoder_block.4} parent=124 // loop_body
                  _
                $region130: #{encoder_block.4} parent=124 // loop_footer
                  %s349 = sadd.s32 1, %s345
                $region131: #{encoder_block.4} parent=124 // loop_footer_branch
                  %344 = sbr.rel target = $region127
                $region132: #{encoder_block.4} parent=124 // loop_exit
                  _
                %s353 = ssub.s32 16, 1
                loop: start=0, step=1, limit=1
                $region133: #{encoder_block.4} parent=124 // loop_pre_header
                  _
                $region134: #{encoder_block.4} parent=124 // loop_header
                  %s355 = sphi 0, %s359
                  %p356 = scmp.ge.s32.totalorder %s355, 1
                  %s360 = sphi %s321, %s321
                  %s361 = sphi %s317, %s317
                $region135: #{encoder_block.4} parent=124 // loop_header_branch
                  %358 = sbr.rel (%p356) target = $region139
                $region136: #{encoder_block.4} parent=124 // loop_body
                  %v362 = vld [vmem:[%s360] sm:%s353]
                  %363 = vst [vmem:[%s361] sm:%s353] %v362
                  %v364 = vld [vmem:[%s360 + $0x8] sm:%s353]
                  %365 = vst [vmem:[%s361 + $0x4] sm:%s353] %v364
                $region137: #{encoder_block.4} parent=124 // loop_footer
                  %s359 = sadd.s32 1, %s355
                $region138: #{encoder_block.4} parent=124 // loop_footer_branch
                  %354 = sbr.rel target = $region134
                $region139: #{encoder_block.4} parent=124 // loop_exit
                  _
              $region125: #{encoder_block.4} parent=109 // pred_fallthru
                _
            $region110: #{encoder_block.4} parent=105 // pred_fallthru
              _
            // Predicated region
            $region111: #{encoder_block.4} parent=105 // pred_check
              _
            $region112: #{encoder_block.4} parent=105 // pred_check_branch
              %327 = sbr.rel (0) target = $region114
            $region113: #{encoder_block.4} parent=105 // pred_region
              %s329 = ssub.s32 16, 1
              loop: start=0, step=1, limit=1
              $region115: #{encoder_block.4} parent=113 // loop_pre_header
                _
              $region116: #{encoder_block.4} parent=113 // loop_header
                %s331 = sphi 0, %s335
                %p332 = scmp.ge.s32.totalorder %s331, 1
                %s336 = sphi %s321, %s321
                %s337 = sphi %s317, %s317
              $region117: #{encoder_block.4} parent=113 // loop_header_branch
                %334 = sbr.rel (%p332) target = $region121
              $region118: #{encoder_block.4} parent=113 // loop_body
                %v338 = vld [vmem:[%s336] sm:%s329]
                %339 = vst [vmem:[%s337] sm:%s329] %v338
                %v340 = vld [vmem:[%s336 + $0x8] sm:%s329]
                %341 = vst [vmem:[%s337 + $0x4] sm:%s329] %v340
              $region119: #{encoder_block.4} parent=113 // loop_footer
                %s335 = sadd.s32 1, %s331
              $region120: #{encoder_block.4} parent=113 // loop_footer_branch
                %330 = sbr.rel target = $region116
              $region121: #{encoder_block.4} parent=113 // loop_exit
                _
            $region114: #{encoder_block.4} parent=105 // pred_fallthru
              _
          $region106: #{encoder_block.4} parent=101 // pred_fallthru
            _
          %366 = vnop
        $region102: #{encoder_block.4} parent=15 // pred_fallthru
          _
      $region16: #{encoder_block.4} parent=5 // pred_fallthru
        _
      %p367 = scmp.le.s32.totalorder 1, %s14
      %p368 = scmp.lt.s32.totalorder %s14, 5
      %p369 = pnand %p367, %p368
      %p370 = pneg %p369
      // Predicated region
      $region140: #{encoder_block.4} parent=5 // pred_check
        _
      $region141: #{encoder_block.4} parent=5 // pred_check_branch
        %372 = sbr.rel (%p369) target = $region143
      $region142: #{encoder_block.4} parent=5 // pred_region
        %s373 = ssub.s32 %s14, 1
        %s374 = sand.u32 %s50, 1
        %s375 = sand.u32 %s50, 1
        %s376 = smul.addr %s375, 8
        %s377 = scalar_lea.vmem [#allocation2], %s376
        // Predicated region
        $region144: #{encoder_block.4} parent=142 // pred_check
          %p378 = pneg %p63
        $region145: #{encoder_block.4} parent=142 // pred_check_branch
          %380 = sbr.rel (%p378) target = $region147
        $region146: #{encoder_block.4} parent=142 // pred_region
          _
        $region147: #{encoder_block.4} parent=142 // pred_fallthru
          _
        %s381 = sand.u32 %s78, 1
        %s382 = sand.u32 %s78, 1
        %s383 = smul.addr %s382, 8
        %s384 = scalar_lea.vmem [#allocation3], %s383
        // Predicated region
        $region148: #{encoder_block.4} parent=142 // pred_check
          %p385 = pneg %p91
        $region149: #{encoder_block.4} parent=142 // pred_check_branch
          %387 = sbr.rel (%p385) target = $region151
        $region150: #{encoder_block.4} parent=142 // pred_region
          _
        $region151: #{encoder_block.4} parent=142 // pred_fallthru
          _
        %s388 = sand.u32 %s106, 1
        %s389 = sand.u32 %s106, 1
        %s390 = smul.addr %s389, 8
        %s391 = scalar_lea.vmem [#allocation4], %s390
        // Predicated region
        $region152: #{encoder_block.4} parent=142 // pred_check
          %p392 = pneg %p119
        $region153: #{encoder_block.4} parent=142 // pred_check_branch
          %394 = sbr.rel (%p392) target = $region155
        $region154: #{encoder_block.4} parent=142 // pred_region
          _
        $region155: #{encoder_block.4} parent=142 // pred_fallthru
          _
        %s395 = sand.u32 %s50, 1
        %s396 = sand.u32 %s50, 1
        %s397 = smul.addr %s396, 8
        %s398 = scalar_lea.vmem [#allocation2], %s397
        %p399 = pneg %p63
        %p400 = pneg %p60
        %s401 = sand.u32 %s78, 1
        %s402 = sand.u32 %s78, 1
        %s403 = smul.addr %s402, 8
        %s404 = scalar_lea.vmem [#allocation3], %s403
        %p405 = pneg %p91
        %p406 = pneg %p88
        %s407 = sand.u32 %s106, 1
        %s408 = sand.u32 %s106, 1
        %s409 = smul.addr %s408, 8
        %s410 = scalar_lea.vmem [#allocation4], %s409
        %p411 = pneg %p119
        %p412 = pneg %p116
        %p413 = pneg %p149
        %p414 = pneg %p146
        %s415 = sand.u32 %s136, 1
        %s416 = sand.u32 %s136, 1
        %s417 = smul.addr %s416, 8
        %s418 = scalar_lea.vmem [#allocation5], %s417
        %p419 = pneg %p177
        %p420 = pneg %p174
        %s421 = sand.u32 %s164, 1
        %s422 = scalar_lea.sflag [#allocation7], %s421
        %s423 = sand.u32 %s164, 1
        %s424 = smul.addr %s423, 16
        %s425 = scalar_lea.vmem [#allocation6], %s424
        %s426 = smul.u32 2, %s25
        %s427 = smul.u32 2, %s25
        %s428 = smul.u32 2, %s25
        %v430 = vld [vmem:[%s377] sm:$0xf]
        %v431 = vld [vmem:[%s377 + $0x4] sm:$0xf]
        %v432 = vld [vmem:[%s384] sm:$0xf]
        %v433 = vld [vmem:[%s384 + $0x4] sm:$0xf]
        %v434 = vld [vmem:[%s391] sm:$0xf]
        %v435 = vld [vmem:[%s391 + $0x4] sm:$0xf]
        %v438 = vunpack.c.l.b16 %v430
        %v439 = vunpack.c.l.b16 %v431
        %v440 = vpack.c.b16 %v439, %v438
        %v443 = vunpack.c.l.b16 %v432
        %v444 = vunpack.c.l.b16 %v433
        %v445 = vpack.c.b16 %v444, %v443
        %vm446 = vcmask 523264
        %v448 = vsel %vm446, %v440, 0
        %v451 = vsel %vm446, %v445, 0
        %453 = vmatpush.bf16.xpose.msra.mxu0 0
        %454 = vmatpush.bf16.xpose.msra.mxu0 0
        %455 = vmatpush.bf16.xpose.msra.mxu0 0
        %456 = vmatpush.bf16.xpose.msra.mxu0 0
        %457 = vmatpush.bf16.xpose.msra.mxu0 0
        %458 = vmatpush.bf16.xpose.msra.mxu0 0
        %459 = vmatpush.bf16.xpose.msra.mxu0 0
        %460 = vmatpush.bf16.xpose.msra.mxu0 %v451
        %461 = vmatmul.bf16.gmra.mxu0 %v448
        %v462 = vpop.f32.mrf.mxu0
        %v463 = vadd.f32 0.0, %v462
        %v464 = vpop.f32.mrf.mxu0
        %v465 = vadd.f32 0.0, %v464
        %466 = vdwg.mxu0
        %vm467 = vcmask 130048
        %v468 = vsel %vm467, %v463, -inf
        %469 = vmax.xlane.f32.xlu0 %v468
        %v470 = vpop.xlane.xlu0 %469
        %v471 = vsel %vm467, %v465, -inf
        %472 = vmax.xlane.f32.xlu0 %v471
        %v473 = vpop.xlane.xlu0 %472
        %v474 = vsub.f32 %v463, %v470
        %v475 = vsub.f32 %v465, %v473
        %v476 = vmul.f32 %v474, 1.442695
        %v477 = vpow.pop %v476
        %v478 = vmul.f32 %v475, 1.442695
        %v479 = vpow.pop %v478
        %v480 = vsel %vm467, %v477, 0.0
        %481 = vadd.xlane.f32.xlu0 %v480
        %v482 = vpop.xlane.xlu0 %481
        %v483 = vsel %vm467, %v479, 0.0
        %484 = vadd.xlane.f32.xlu0 %v483
        %v485 = vpop.xlane.xlu0 %484
        %v486 = vrcp.pop %v482
        %v487 = vrcp.pop %v485
        %v488 = vmul.f32 %v477, %v486
        %v489 = vmul.f32 %v479, %v487
        %v490 = vpack.c.bf16 %v489, %v488
        %v493 = vunpack.c.l.b16 %v434
        %v494 = vunpack.c.l.b16 %v435
        %v495 = vpack.c.b16 %v494, %v493
        %v498 = vsel %vm467, %v490, 0
        %500 = vmatpush.bf16.msra.mxu0 0
        %501 = vmatpush.bf16.msra.mxu0 0
        %502 = vmatpush.bf16.msra.mxu0 0
        %503 = vmatpush.bf16.msra.mxu0 0
        %504 = vmatpush.bf16.msra.mxu0 0
        %505 = vmatpush.bf16.msra.mxu0 0
        %506 = vmatpush.bf16.msra.mxu0 0
        %507 = vmatpush.bf16.msra.mxu0 %v495
        %508 = vmatmul.bf16.gmra.mxu0 %v498
        %v509 = vpop.f32.mrf.mxu0
        %v510 = vadd.f32 0.0, %v509
        %v511 = vpop.f32.mrf.mxu0
        %v512 = vadd.f32 0.0, %v511
        %513 = vdwg.mxu0
        %v514 = vpack.c.bf16 %v510, %v510
        %v515 = vpack.c.bf16 %v512, %v512
        %516 = vrot.lane.b32.xlu0 %v440, 64
        %v517 = vpop.permute.xlu0 %516
        %518 = vrot.lane.b32.xlu0 %v445, 64
        %v519 = vpop.permute.xlu0 %518
        %v521 = vsel %vm446, %v517, 0
        %v524 = vsel %vm446, %v519, 0
        %526 = vmatpush.bf16.xpose.msra.mxu0 0
        %527 = vmatpush.bf16.xpose.msra.mxu0 0
        %528 = vmatpush.bf16.xpose.msra.mxu0 0
        %529 = vmatpush.bf16.xpose.msra.mxu0 0
        %530 = vmatpush.bf16.xpose.msra.mxu0 0
        %531 = vmatpush.bf16.xpose.msra.mxu0 0
        %532 = vmatpush.bf16.xpose.msra.mxu0 0
        %533 = vmatpush.bf16.xpose.msra.mxu0 %v524
        %534 = vmatmul.bf16.gmra.mxu0 %v521
        %v535 = vpop.f32.mrf.mxu0
        %v536 = vadd.f32 0.0, %v535
        %v537 = vpop.f32.mrf.mxu0
        %v538 = vadd.f32 0.0, %v537
        %539 = vdwg.mxu0
        %v540 = vsel %vm467, %v536, -inf
        %541 = vmax.xlane.f32.xlu0 %v540
        %v542 = vpop.xlane.xlu0 %541
        %v543 = vsel %vm467, %v538, -inf
        %544 = vmax.xlane.f32.xlu0 %v543
        %v545 = vpop.xlane.xlu0 %544
        %v546 = vsub.f32 %v536, %v542
        %v547 = vsub.f32 %v538, %v545
        %v548 = vmul.f32 %v546, 1.442695
        %v549 = vpow.pop %v548
        %v550 = vmul.f32 %v547, 1.442695
        %v551 = vpow.pop %v550
        %v552 = vsel %vm467, %v549, 0.0
        %553 = vadd.xlane.f32.xlu0 %v552
        %v554 = vpop.xlane.xlu0 %553
        %v555 = vsel %vm467, %v551, 0.0
        %556 = vadd.xlane.f32.xlu0 %v555
        %v557 = vpop.xlane.xlu0 %556
        %v558 = vrcp.pop %v554
        %v559 = vrcp.pop %v557
        %v560 = vmul.f32 %v549, %v558
        %v561 = vmul.f32 %v551, %v559
        %v562 = vpack.c.bf16 %v561, %v560
        %563 = vrot.lane.b32.xlu0 %v495, 64
        %v564 = vpop.permute.xlu0 %563
        %v567 = vsel %vm467, %v562, 0
        %569 = vmatpush.bf16.msra.mxu0 0
        %570 = vmatpush.bf16.msra.mxu0 0
        %571 = vmatpush.bf16.msra.mxu0 0
        %572 = vmatpush.bf16.msra.mxu0 0
        %573 = vmatpush.bf16.msra.mxu0 0
        %574 = vmatpush.bf16.msra.mxu0 0
        %575 = vmatpush.bf16.msra.mxu0 0
        %576 = vmatpush.bf16.msra.mxu0 %v564
        %577 = vmatmul.bf16.gmra.mxu0 %v567
        %v578 = vpop.f32.mrf.mxu0
        %v579 = vadd.f32 0.0, %v578
        %v580 = vpop.f32.mrf.mxu0
        %v581 = vadd.f32 0.0, %v580
        %582 = vdwg.mxu0
        %v583 = vpack.c.bf16 %v579, %v579
        %v584 = vpack.c.bf16 %v581, %v581
        %v585 = vadd.f32 %v488, %v560
        %v586 = vadd.f32 %v489, %v561
        %v589 = vunpack.c.l.b16 %v514
        %v590 = vunpack.c.l.b16 %v515
        %v591 = vpack.c.b16 %v590, %v589
        %v594 = vunpack.c.l.b16 %v583
        %v595 = vunpack.c.l.b16 %v584
        %v596 = vpack.c.b16 %v595, %v594
        %597 = vrot.lane.b32.xlu0 %v596, 64
        %v598 = vpop.permute.xlu0 %597
        %v601 = vsel %vm446, %v591, %v598
        %v603 = vunpack.c.l.b16 %v601
        %v604 = vunpack.c.h.b16 %v601
        %v605 = vpack.c.b16 %v603, %v603
        %v606 = vpack.c.b16 %v604, %v604
        %609 = vst [vmem:[%s418] sm:$0xf] %v605
        %610 = vst [vmem:[%s418 + $0x4] sm:$0xf] %v606
        %v611 = vmul.f32 %v585, 0.25
        %v612 = vmul.f32 %v586, 0.25
        %p613 = scmp.eq.s32.totalorder %s26, 0
        // Predicated region
        $region156: #{encoder_block.4} parent=142 // pred_check
          %p614 = pneg %p613
        $region157: #{encoder_block.4} parent=142 // pred_check_branch
          %616 = sbr.rel (%p614) target = $region159
        $region158: #{encoder_block.4} parent=142 // pred_region
          %617 = vst.msk [vmem:[%s425] sm:$0xff] %vm467, %v611
          %618 = vst.msk [vmem:[%s425 + $0x8] sm:$0xff] %vm467, %v612
        $region159: #{encoder_block.4} parent=142 // pred_fallthru
          _
        %p619 = scmp.gt.s32.totalorder %s26, 0
        // Predicated region
        $region160: #{encoder_block.4} parent=142 // pred_check
          %p620 = pneg %p619
        $region161: #{encoder_block.4} parent=142 // pred_check_branch
          %622 = sbr.rel (%p620) target = $region163
        $region162: #{encoder_block.4} parent=142 // pred_region
          %v623 = vld [vmem:[%s425] sm:$0xff]
          %v624 = vld [vmem:[%s425 + $0x8] sm:$0xff]
          %v625 = vadd.f32 %v623, %v611
          %v626 = vadd.f32 %v624, %v612
          %627 = vst.msk [vmem:[%s425] sm:$0xff] %vm467, %v625
          %628 = vst.msk [vmem:[%s425 + $0x8] sm:$0xff] %vm467, %v626
        $region163: #{encoder_block.4} parent=142 // pred_fallthru
          _
        %s629 = sand.u32 %s136, 1
        %s630 = sand.u32 %s136, 1
        %s631 = smul.addr %s630, 8
        %s632 = scalar_lea.vmem [#allocation5], %s631
        %s633 = sand.u32 %s164, 1
        %s634 = scalar_lea.sflag [#allocation7], %s633
        %s635 = sand.u32 %s164, 1
        %s636 = smul.addr %s635, 16
        %s637 = scalar_lea.vmem [#allocation6], %s636
        // Predicated region
        $region164: #{encoder_block.4} parent=142 // pred_check
          %p638 = pneg %p146
        $region165: #{encoder_block.4} parent=142 // pred_check_branch
          %640 = sbr.rel (%p638) target = $region167
        $region166: #{encoder_block.4} parent=142 // pred_region
          %s641 = smul.u32 2, %s25
          %s642 = smul.addr %s641, 2
          %s643 = sadd.s32 %s26, %s642
          %s644 = smul.addr %s24, 4
          %s645 = sadd.s32 %s643, %s644
          %s646 = smul.addr %s645, 4
          %s647 = scalar_lea.vmem %s3, %s646
          // Predicated region
          $region168: #{encoder_block.4} parent=166 // pred_check
            _
          $region169: #{encoder_block.4} parent=166 // pred_check_branch
            %649 = sbr.rel (0) target = $region171
          $region170: #{encoder_block.4} parent=166 // pred_region
            // Predicated region
            $region172: #{encoder_block.4} parent=170 // pred_check
              _
            $region173: #{encoder_block.4} parent=170 // pred_check_branch
              %651 = sbr.rel target = $region175
            $region174: #{encoder_block.4} parent=170 // pred_region
              // Predicated region
              $region187: #{encoder_block.4} parent=174 // pred_check
                _
              $region188: #{encoder_block.4} parent=174 // pred_check_branch
                %669 = sbr.rel (0) target = $region190
              $region189: #{encoder_block.4} parent=174 // pred_region
                loop: start=0, step=1, limit=1
                $region191: #{encoder_block.4} parent=189 // loop_pre_header
                  _
                $region192: #{encoder_block.4} parent=189 // loop_header
                  %s671 = sphi 0, %s675
                  %p672 = scmp.ge.s32.totalorder %s671, 1
                  %s676 = sphi %s632, %s632
                  %s677 = sphi %s647, %s647
                $region193: #{encoder_block.4} parent=189 // loop_header_branch
                  %674 = sbr.rel (%p672) target = $region197
                $region194: #{encoder_block.4} parent=189 // loop_body
                  _
                $region195: #{encoder_block.4} parent=189 // loop_footer
                  %s675 = sadd.s32 1, %s671
                $region196: #{encoder_block.4} parent=189 // loop_footer_branch
                  %670 = sbr.rel target = $region192
                $region197: #{encoder_block.4} parent=189 // loop_exit
                  _
                %s679 = ssub.s32 16, 1
                loop: start=0, step=1, limit=1
                $region198: #{encoder_block.4} parent=189 // loop_pre_header
                  _
                $region199: #{encoder_block.4} parent=189 // loop_header
                  %s681 = sphi 0, %s685
                  %p682 = scmp.ge.s32.totalorder %s681, 1
                  %s686 = sphi %s632, %s632
                  %s687 = sphi %s647, %s647
                $region200: #{encoder_block.4} parent=189 // loop_header_branch
                  %684 = sbr.rel (%p682) target = $region204
                $region201: #{encoder_block.4} parent=189 // loop_body
                  %v688 = vld [vmem:[%s686] sm:%s679]
                  %689 = vst [vmem:[%s687] sm:%s679] %v688
                  %v690 = vld [vmem:[%s686 + $0x4] sm:%s679]
                  %691 = vst [vmem:[%s687 + $0x8] sm:%s679] %v690
                $region202: #{encoder_block.4} parent=189 // loop_footer
                  %s685 = sadd.s32 1, %s681
                $region203: #{encoder_block.4} parent=189 // loop_footer_branch
                  %680 = sbr.rel target = $region199
                $region204: #{encoder_block.4} parent=189 // loop_exit
                  _
              $region190: #{encoder_block.4} parent=174 // pred_fallthru
                _
            $region175: #{encoder_block.4} parent=170 // pred_fallthru
              _
            // Predicated region
            $region176: #{encoder_block.4} parent=170 // pred_check
              _
            $region177: #{encoder_block.4} parent=170 // pred_check_branch
              %653 = sbr.rel (0) target = $region179
            $region178: #{encoder_block.4} parent=170 // pred_region
              %s655 = ssub.s32 16, 1
              loop: start=0, step=1, limit=1
              $region180: #{encoder_block.4} parent=178 // loop_pre_header
                _
              $region181: #{encoder_block.4} parent=178 // loop_header
                %s657 = sphi 0, %s661
                %p658 = scmp.ge.s32.totalorder %s657, 1
                %s662 = sphi %s632, %s632
                %s663 = sphi %s647, %s647
              $region182: #{encoder_block.4} parent=178 // loop_header_branch
                %660 = sbr.rel (%p658) target = $region186
              $region183: #{encoder_block.4} parent=178 // loop_body
                %v664 = vld [vmem:[%s662] sm:%s655]
                %665 = vst [vmem:[%s663] sm:%s655] %v664
                %v666 = vld [vmem:[%s662 + $0x4] sm:%s655]
                %667 = vst [vmem:[%s663 + $0x8] sm:%s655] %v666
              $region184: #{encoder_block.4} parent=178 // loop_footer
                %s661 = sadd.s32 1, %s657
              $region185: #{encoder_block.4} parent=178 // loop_footer_branch
                %656 = sbr.rel target = $region181
              $region186: #{encoder_block.4} parent=178 // loop_exit
                _
            $region179: #{encoder_block.4} parent=170 // pred_fallthru
              _
          $region171: #{encoder_block.4} parent=166 // pred_fallthru
            _
          %692 = vnop
        $region167: #{encoder_block.4} parent=142 // pred_fallthru
          _
        // Predicated region
        $region205: #{encoder_block.4} parent=142 // pred_check
          %p693 = pneg %p174
        $region206: #{encoder_block.4} parent=142 // pred_check_branch
          %695 = sbr.rel (%p693) target = $region208
        $region207: #{encoder_block.4} parent=142 // pred_region
          %s696 = smul.u32 2, %s25
          %698 = vsyncadd %s634, 0
          %s699 = smul.addr %s24, 2
          %s700 = sadd.s32 %s696, %s699
          %s701 = smul.addr %s700, 8
          %s702 = scalar_lea.hbm %s4, %s701
          %s703 = sshll.u32 %s637, 4
          %s704 = int_to_ptr.vmem [resolvable:$true] %s703
          %s705 = sshll.u32 %s702, 4
          %s706 = int_to_ptr.hbm [resolvable:$true] %s705
          %711 = dma.vmem_to_hbm [thread:$0]  %s704, 256, %s706, %s634, 128, 128, 8
        $region208: #{encoder_block.4} parent=142 // pred_fallthru
          _
      $region143: #{encoder_block.4} parent=5 // pred_fallthru
        _
      %p712 = scmp.le.s32.totalorder 2, %s14
      // Predicated region
      $region209: #{encoder_block.4} parent=5 // pred_check
        %p713 = pneg %p712
      $region210: #{encoder_block.4} parent=5 // pred_check_branch
        %715 = sbr.rel (%p713) target = $region212
      $region211: #{encoder_block.4} parent=5 // pred_region
        %s716 = ssub.s32 %s14, 2
        // Predicated region
        $region213: #{encoder_block.4} parent=211 // pred_check
          %p717 = pneg %p152
        $region214: #{encoder_block.4} parent=211 // pred_check_branch
          %719 = sbr.rel (%p717) target = $region216
        $region215: #{encoder_block.4} parent=211 // pred_region
          %s720 = sand.u32 %s137, 1
          %s721 = sand.u32 %s137, 1
          %s722 = smul.addr %s721, 8
          %s723 = scalar_lea.vmem [#allocation5], %s722
        $region216: #{encoder_block.4} parent=211 // pred_fallthru
          _
        // Predicated region
        $region217: #{encoder_block.4} parent=211 // pred_check
          %p724 = pneg %p180
        $region218: #{encoder_block.4} parent=211 // pred_check_branch
          %726 = sbr.rel (%p724) target = $region220
        $region219: #{encoder_block.4} parent=211 // pred_region
          %s727 = sand.u32 %s165, 1
          %s728 = scalar_lea.sflag [#allocation7], %s727
          %s729 = sand.u32 %s165, 1
          %s730 = smul.addr %s729, 16
          %s731 = scalar_lea.vmem [#allocation6], %s730
          %733 = dma.done %s728, 256
        $region220: #{encoder_block.4} parent=211 // pred_fallthru
          _
      $region212: #{encoder_block.4} parent=5 // pred_fallthru
        _
    $region6: #{encoder_block.4} parent=1 // loop_footer
      %s18 = sadd.s32 1, %s14
    $region7: #{encoder_block.4} parent=1 // loop_footer_branch
      %13 = sbr.rel target = $region3
    $region8: #{encoder_block.4} parent=1 // loop_exit
      _
    %734 = vsyncpa [#allocation7], 1
    %s735 = scalar_lea.sflag [#allocation7], 1
    %736 = vsyncpa %s735, 1

// kernel: encoder_block.3
$region0: #{encoder_block.3}
  #allocation0 [shape = 'u32[]', space=smem, size = 0x4, offset = 0x4, fixed_abs, tag = 'smem constant byte address 0x4 - core index']
  #allocation1 [shape = 'u32[72,128]{1,0:T(1,128)}', space=vmem, size = 0x9000, scoped, tag = 'internal scratch']
  %s0 = inlined_call_operand.vmem [shape: f32[2,16,256], index: 0, kind: input, shape index: {}]
  %s1 = inlined_call_operand.vmem [shape: f32[1,256], index: 1, kind: input, shape index: {}]
  %s2 = inlined_call_operand.vmem [shape: f32[1,256], index: 2, kind: input, shape index: {}]
  %s3 = inlined_call_operand.vmem [shape: bf16[768,256], index: 3, kind: input, shape index: {}]
  %s4 = inlined_call_operand.vmem [shape: f32[1,768], index: 4, kind: input, shape index: {}]
  %s5 = inlined_call_operand.vmem [shape: bf16[2,16,256], index: 5, kind: output, shape index: {0}]
  %s6 = inlined_call_operand.vmem [shape: bf16[2,16,256], index: 6, kind: output, shape index: {1}]
  %s7 = inlined_call_operand.vmem [shape: bf16[2,16,256], index: 7, kind: output, shape index: {2}]
  %8 = xla_tuple %s5, %s6, %s7
  %s9 = sld [smem:[#allocation0]]
  $region69: #{encoder_block.3} parent=0
    _
  %s11 = ssub.s32 1, %s9
  %s12 = scalar_select 0, %s11, %s9
  loop: start=0, step=1, limit=4
  $region2: #{encoder_block.3} parent=0 // loop_pre_header
    _
  $region3: #{encoder_block.3} parent=0 // loop_header
    %s14 = sphi 0, %s18
    %p15 = scmp.ge.s32.totalorder %s14, 4
    %s21 = sphi 0, %s33
    %s22 = sphi 0, %s29
    %s23 = sphi 0, %s21
    %s24 = sphi 0, %s22
    %s25 = sphi 0, %s23
    %s26 = sphi 0, %s24
    %s38 = sphi 0, %s40
    %s41 = sphi 0, %s38
    %s42 = sphi 0, %s41
    %s58 = sphi 0, %s42
    %s62 = sphi 0, %s62
    %s64 = sphi 0, %s62
    %s65 = sphi 0, %s64
    %s79 = sphi 0, %s65
    %s83 = sphi 0, %s83
    %s85 = sphi 0, %s83
    %s86 = sphi 0, %s85
    %s100 = sphi 0, %s86
    %s104 = sphi 0, %s104
    %s106 = sphi 0, %s104
    %s107 = sphi 0, %s106
    %s121 = sphi 0, %s107
    %s125 = sphi 0, %s125
    %s127 = sphi 0, %s125
    %s128 = sphi 0, %s127
    %s142 = sphi 0, %s128
    %s150 = sphi 0, %s152
    %s153 = sphi 0, %s150
    %s154 = sphi 0, %s153
    %s170 = sphi 0, %s154
    %s178 = sphi 0, %s180
    %s181 = sphi 0, %s178
    %s182 = sphi 0, %s181
    %s198 = sphi 0, %s182
    %s206 = sphi 0, %s208
    %s209 = sphi 0, %s206
    %s210 = sphi 0, %s209
    %s226 = sphi 0, %s210
  $region4: #{encoder_block.3} parent=0 // loop_header_branch
    %17 = sbr.rel (%p15) target = $region8
  $region5: #{encoder_block.3} parent=0 // loop_body
    %s19 = ssub.s32 %s14, 1
    %s20 = ssub.s32 %s14, 2
    %s27 = sadd.s32 1, %s22
    %p28 = scmp.ge.s32.totalorder %s27, 1
    %s29 = scalar_select %p28, 0, %s27
    %s30 = sadd.s32 1, %s21
    %s31 = scalar_select %p28, %s30, %s21
    %p32 = scmp.ge.s32.totalorder %s31, 2
    %s33 = scalar_select %p32, 0, %s31
    %s34 = ssub.s32 %s21, %s33
    %s35 = ssub.s32 %s22, %s29
    %s36 = sor.u32 %s34, %s35
    %p37 = scmp.eq.s32.totalorder %s36, 0
    %s39 = sadd.s32 %s38, 1
    %s40 = scalar_select %p37, %s38, %s39
    %p43 = pneg %p37
    %p44 = scmp.eq.s32.totalorder %s14, 1
    %p45 = por %p43, %p44
    %p46 = scmp.ne.s32.totalorder %s38, %s41
    %p47 = scmp.eq.s32.totalorder %s14, 0
    %p48 = por %p46, %p47
    %p49 = scmp.ne.s32.totalorder %s38, %s41
    %p50 = scmp.eq.s32.totalorder %s19, 1
    %p51 = por %p49, %p50
    %p52 = scmp.ne.s32.totalorder %s41, %s42
    %p53 = scmp.eq.s32.totalorder %s19, 0
    %p54 = por %p52, %p53
    %p55 = scmp.ne.s32.totalorder %s41, %s42
    %p56 = scmp.eq.s32.totalorder %s20, 1
    %p57 = por %p55, %p56
    %p59 = scmp.ne.s32.totalorder %s42, %s58
    %p60 = scmp.eq.s32.totalorder %s20, 0
    %p61 = por %p59, %p60
    %s63 = sadd.s32 %s62, 1
    %p66 = scmp.eq.s32.totalorder %s14, 1
    %p67 = scmp.ne.s32.totalorder %s62, %s64
    %p68 = scmp.eq.s32.totalorder %s14, 0
    %p69 = por %p67, %p68
    %p70 = scmp.ne.s32.totalorder %s62, %s64
    %p71 = scmp.eq.s32.totalorder %s19, 1
    %p72 = por %p70, %p71
    %p73 = scmp.ne.s32.totalorder %s64, %s65
    %p74 = scmp.eq.s32.totalorder %s19, 0
    %p75 = por %p73, %p74
    %p76 = scmp.ne.s32.totalorder %s64, %s65
    %p77 = scmp.eq.s32.totalorder %s20, 1
    %p78 = por %p76, %p77
    %p80 = scmp.ne.s32.totalorder %s65, %s79
    %p81 = scmp.eq.s32.totalorder %s20, 0
    %p82 = por %p80, %p81
    %s84 = sadd.s32 %s83, 1
    %p87 = scmp.eq.s32.totalorder %s14, 1
    %p88 = scmp.ne.s32.totalorder %s83, %s85
    %p89 = scmp.eq.s32.totalorder %s14, 0
    %p90 = por %p88, %p89
    %p91 = scmp.ne.s32.totalorder %s83, %s85
    %p92 = scmp.eq.s32.totalorder %s19, 1
    %p93 = por %p91, %p92
    %p94 = scmp.ne.s32.totalorder %s85, %s86
    %p95 = scmp.eq.s32.totalorder %s19, 0
    %p96 = por %p94, %p95
    %p97 = scmp.ne.s32.totalorder %s85, %s86
    %p98 = scmp.eq.s32.totalorder %s20, 1
    %p99 = por %p97, %p98
    %p101 = scmp.ne.s32.totalorder %s86, %s100
    %p102 = scmp.eq.s32.totalorder %s20, 0
    %p103 = por %p101, %p102
    %s105 = sadd.s32 %s104, 1
    %p108 = scmp.eq.s32.totalorder %s14, 1
    %p109 = scmp.ne.s32.totalorder %s104, %s106
    %p110 = scmp.eq.s32.totalorder %s14, 0
    %p111 = por %p109, %p110
    %p112 = scmp.ne.s32.totalorder %s104, %s106
    %p113 = scmp.eq.s32.totalorder %s19, 1
    %p114 = por %p112, %p113
    %p115 = scmp.ne.s32.totalorder %s106, %s107
    %p116 = scmp.eq.s32.totalorder %s19, 0
    %p117 = por %p115, %p116
    %p118 = scmp.ne.s32.totalorder %s106, %s107
    %p119 = scmp.eq.s32.totalorder %s20, 1
    %p120 = por %p118, %p119
    %p122 = scmp.ne.s32.totalorder %s107, %s121
    %p123 = scmp.eq.s32.totalorder %s20, 0
    %p124 = por %p122, %p123
    %s126 = sadd.s32 %s125, 1
    %p129 = scmp.eq.s32.totalorder %s14, 1
    %p130 = scmp.ne.s32.totalorder %s125, %s127
    %p131 = scmp.eq.s32.totalorder %s14, 0
    %p132 = por %p130, %p131
    %p133 = scmp.ne.s32.totalorder %s125, %s127
    %p134 = scmp.eq.s32.totalorder %s19, 1
    %p135 = por %p133, %p134
    %p136 = scmp.ne.s32.totalorder %s127, %s128
    %p137 = scmp.eq.s32.totalorder %s19, 0
    %p138 = por %p136, %p137
    %p139 = scmp.ne.s32.totalorder %s127, %s128
    %p140 = scmp.eq.s32.totalorder %s20, 1
    %p141 = por %p139, %p140
    %p143 = scmp.ne.s32.totalorder %s128, %s142
    %p144 = scmp.eq.s32.totalorder %s20, 0
    %p145 = por %p143, %p144
    %s146 = ssub.s32 %s21, %s33
    %s147 = ssub.s32 %s22, %s29
    %s148 = sor.u32 %s146, %s147
    %p149 = scmp.eq.s32.totalorder %s148, 0
    %s151 = sadd.s32 %s150, 1
    %s152 = scalar_select %p149, %s150, %s151
    %p155 = pneg %p149
    %p156 = scmp.eq.s32.totalorder %s14, 1
    %p157 = por %p155, %p156
    %p158 = scmp.ne.s32.totalorder %s150, %s153
    %p159 = scmp.eq.s32.totalorder %s14, 0
    %p160 = por %p158, %p159
    %p161 = scmp.ne.s32.totalorder %s150, %s153
    %p162 = scmp.eq.s32.totalorder %s19, 1
    %p163 = por %p161, %p162
    %p164 = scmp.ne.s32.totalorder %s153, %s154
    %p165 = scmp.eq.s32.totalorder %s19, 0
    %p166 = por %p164, %p165
    %p167 = scmp.ne.s32.totalorder %s153, %s154
    %p168 = scmp.eq.s32.totalorder %s20, 1
    %p169 = por %p167, %p168
    %p171 = scmp.ne.s32.totalorder %s154, %s170
    %p172 = scmp.eq.s32.totalorder %s20, 0
    %p173 = por %p171, %p172
    %s174 = ssub.s32 %s21, %s33
    %s175 = ssub.s32 %s22, %s29
    %s176 = sor.u32 %s174, %s175
    %p177 = scmp.eq.s32.totalorder %s176, 0
    %s179 = sadd.s32 %s178, 1
    %s180 = scalar_select %p177, %s178, %s179
    %p183 = pneg %p177
    %p184 = scmp.eq.s32.totalorder %s14, 1
    %p185 = por %p183, %p184
    %p186 = scmp.ne.s32.totalorder %s178, %s181
    %p187 = scmp.eq.s32.totalorder %s14, 0
    %p188 = por %p186, %p187
    %p189 = scmp.ne.s32.totalorder %s178, %s181
    %p190 = scmp.eq.s32.totalorder %s19, 1
    %p191 = por %p189, %p190
    %p192 = scmp.ne.s32.totalorder %s181, %s182
    %p193 = scmp.eq.s32.totalorder %s19, 0
    %p194 = por %p192, %p193
    %p195 = scmp.ne.s32.totalorder %s181, %s182
    %p196 = scmp.eq.s32.totalorder %s20, 1
    %p197 = por %p195, %p196
    %p199 = scmp.ne.s32.totalorder %s182, %s198
    %p200 = scmp.eq.s32.totalorder %s20, 0
    %p201 = por %p199, %p200
    %s202 = ssub.s32 %s21, %s33
    %s203 = ssub.s32 %s22, %s29
    %s204 = sor.u32 %s202, %s203
    %p205 = scmp.eq.s32.totalorder %s204, 0
    %s207 = sadd.s32 %s206, 1
    %s208 = scalar_select %p205, %s206, %s207
    %p211 = pneg %p205
    %p212 = scmp.eq.s32.totalorder %s14, 1
    %p213 = por %p211, %p212
    %p214 = scmp.ne.s32.totalorder %s206, %s209
    %p215 = scmp.eq.s32.totalorder %s14, 0
    %p216 = por %p214, %p215
    %p217 = scmp.ne.s32.totalorder %s206, %s209
    %p218 = scmp.eq.s32.totalorder %s19, 1
    %p219 = por %p217, %p218
    %p220 = scmp.ne.s32.totalorder %s209, %s210
    %p221 = scmp.eq.s32.totalorder %s19, 0
    %p222 = por %p220, %p221
    %p223 = scmp.ne.s32.totalorder %s209, %s210
    %p224 = scmp.eq.s32.totalorder %s20, 1
    %p225 = por %p223, %p224
    %p227 = scmp.ne.s32.totalorder %s210, %s226
    %p228 = scmp.eq.s32.totalorder %s20, 0
    %p229 = por %p227, %p228
    %p230 = scmp.le.s32.totalorder 1, %s14
    %p231 = scmp.lt.s32.totalorder %s14, 3
    %p232 = pnand %p230, %p231
    %p233 = pneg %p232
    // Predicated region
    $region9: #{encoder_block.3} parent=5 // pred_check
      _
    $region10: #{encoder_block.3} parent=5 // pred_check_branch
      %235 = sbr.rel (%p232) target = $region12
    $region11: #{encoder_block.3} parent=5 // pred_region
      %s236 = ssub.s32 %s14, 1
      // Predicated region
      $region13: #{encoder_block.3} parent=11 // pred_check
        %p237 = pneg %p75
      $region14: #{encoder_block.3} parent=11 // pred_check_branch
        %239 = sbr.rel (%p237) target = $region16
      $region15: #{encoder_block.3} parent=11 // pred_region
        _
      $region16: #{encoder_block.3} parent=11 // pred_fallthru
        _
      // Predicated region
      $region17: #{encoder_block.3} parent=11 // pred_check
        %p240 = pneg %p96
      $region18: #{encoder_block.3} parent=11 // pred_check_branch
        %242 = sbr.rel (%p240) target = $region20
      $region19: #{encoder_block.3} parent=11 // pred_region
        _
      $region20: #{encoder_block.3} parent=11 // pred_fallthru
        _
      // Predicated region
      $region21: #{encoder_block.3} parent=11 // pred_check
        %p243 = pneg %p117
      $region22: #{encoder_block.3} parent=11 // pred_check_branch
        %245 = sbr.rel (%p243) target = $region24
      $region23: #{encoder_block.3} parent=11 // pred_region
        _
      $region24: #{encoder_block.3} parent=11 // pred_fallthru
        _
      // Predicated region
      $region25: #{encoder_block.3} parent=11 // pred_check
        %p246 = pneg %p138
      $region26: #{encoder_block.3} parent=11 // pred_check_branch
        %248 = sbr.rel (%p246) target = $region28
      $region27: #{encoder_block.3} parent=11 // pred_region
        _
      $region28: #{encoder_block.3} parent=11 // pred_fallthru
        _
    $region12: #{encoder_block.3} parent=5 // pred_fallthru
      _
    %p249 = scmp.lt.s32.totalorder %s14, 2
    // Predicated region
    $region29: #{encoder_block.3} parent=5 // pred_check
      %p250 = pneg %p249
    $region30: #{encoder_block.3} parent=5 // pred_check_branch
      %252 = sbr.rel (%p250) target = $region32
    $region31: #{encoder_block.3} parent=5 // pred_region
      // Predicated region
      $region33: #{encoder_block.3} parent=31 // pred_check
        %p253 = pneg %p48
      $region34: #{encoder_block.3} parent=31 // pred_check_branch
        %255 = sbr.rel (%p253) target = $region36
      $region35: #{encoder_block.3} parent=31 // pred_region
        %s256 = smul.u32 2, %s22
        %p257 = scmp.lt.s32.totalorder %s21, 1
        %s258 = scalar_select %p257, %s21, 1
        %p259 = scmp.lt.s32.totalorder %s256, 1
        %s260 = scalar_select %p259, %s256, 1
        %s261 = smul.addr %s260, 2
        %s262 = smul.addr %s258, 4
        %s263 = sadd.s32 %s261, %s262
        %s264 = smul.addr %s263, 8
        %s265 = scalar_lea.vmem %s0, %s264
        %s266 = smul.u32 2, %s22
      $region36: #{encoder_block.3} parent=31 // pred_fallthru
        _
    $region32: #{encoder_block.3} parent=5 // pred_fallthru
      _
    %p267 = scmp.le.s32.totalorder 1, %s14
    %p268 = scmp.lt.s32.totalorder %s14, 3
    %p269 = pnand %p267, %p268
    %p270 = pneg %p269
    // Predicated region
    $region37: #{encoder_block.3} parent=5 // pred_check
      _
    $region38: #{encoder_block.3} parent=5 // pred_check_branch
      %272 = sbr.rel (%p269) target = $region40
    $region39: #{encoder_block.3} parent=5 // pred_region
      %s273 = ssub.s32 %s14, 1
      %s274 = smul.u32 2, %s24
      %p275 = scmp.lt.s32.totalorder %s23, 1
      %s276 = scalar_select %p275, %s23, 1
      %p277 = scmp.lt.s32.totalorder %s274, 1
      %s278 = scalar_select %p277, %s274, 1
      %s279 = smul.addr %s278, 2
      %s280 = smul.addr %s276, 4
      %s281 = sadd.s32 %s279, %s280
      %s282 = smul.addr %s281, 8
      %s283 = scalar_lea.vmem %s0, %s282
      %p284 = pneg %p54
      %p285 = pneg %p51
      %p286 = pneg %p75
      %p287 = pneg %p72
      %p288 = pneg %p96
      %p289 = pneg %p93
      %p290 = pneg %p117
      %p291 = pneg %p114
      %p292 = pneg %p138
      %p293 = pneg %p135
      %p294 = pneg %p166
      %p295 = pneg %p163
      %s296 = smul.u32 2, %s24
      %p297 = scmp.lt.s32.totalorder %s23, 1
      %s298 = scalar_select %p297, %s23, 1
      %p299 = scmp.lt.s32.totalorder %s296, 1
      %s300 = scalar_select %p299, %s296, 1
      %s301 = smul.addr %s300, 2
      %s302 = smul.addr %s298, 4
      %s303 = sadd.s32 %s301, %s302
      %s304 = smul.addr %s303, 4
      %s305 = scalar_lea.vmem %s5, %s304
      %p306 = pneg %p194
      %p307 = pneg %p191
      %s308 = smul.u32 2, %s24
      %p309 = scmp.lt.s32.totalorder %s23, 1
      %s310 = scalar_select %p309, %s23, 1
      %p311 = scmp.lt.s32.totalorder %s308, 1
      %s312 = scalar_select %p311, %s308, 1
      %s313 = smul.addr %s312, 2
      %s314 = smul.addr %s310, 4
      %s315 = sadd.s32 %s313, %s314
      %s316 = smul.addr %s315, 4
      %s317 = scalar_lea.vmem %s6, %s316
      %p318 = pneg %p222
      %p319 = pneg %p219
      %s320 = smul.u32 2, %s24
      %p321 = scmp.lt.s32.totalorder %s23, 1
      %s322 = scalar_select %p321, %s23, 1
      %p323 = scmp.lt.s32.totalorder %s320, 1
      %s324 = scalar_select %p323, %s320, 1
      %s325 = smul.addr %s324, 2
      %s326 = smul.addr %s322, 4
      %s327 = sadd.s32 %s325, %s326
      %s328 = smul.addr %s327, 4
      %s329 = scalar_lea.vmem %s7, %s328
      %s330 = smul.u32 2, %s24
      %p331 = scmp.lt.s32.totalorder %s23, 1
      %s332 = scalar_select %p331, %s23, 1
      %p333 = scmp.lt.s32.totalorder %s330, 1
      %s334 = scalar_select %p333, %s330, 1
      %s335 = smul.addr %s334, 2
      %s336 = smul.addr %s332, 4
      %s337 = sadd.s32 %s335, %s336
      %s338 = smul.addr %s337, 8
      %s339 = scalar_lea.vmem %s0, %s338
      %s340 = smul.u32 2, %s24
      %s341 = smul.u32 2, %s24
      %p342 = scmp.lt.s32.totalorder %s23, 1
      %s343 = scalar_select %p342, %s23, 1
      %p344 = scmp.lt.s32.totalorder %s341, 1
      %s345 = scalar_select %p344, %s341, 1
      %s346 = smul.addr %s345, 2
      %s347 = smul.addr %s343, 4
      %s348 = sadd.s32 %s346, %s347
      %s349 = smul.addr %s348, 4
      %s350 = scalar_lea.vmem %s5, %s349
      %s351 = smul.u32 2, %s24
      %s352 = smul.u32 2, %s24
      %p353 = scmp.lt.s32.totalorder %s23, 1
      %s354 = scalar_select %p353, %s23, 1
      %p355 = scmp.lt.s32.totalorder %s352, 1
      %s356 = scalar_select %p355, %s352, 1
      %s357 = smul.addr %s356, 2
      %s358 = smul.addr %s354, 4
      %s359 = sadd.s32 %s357, %s358
      %s360 = smul.addr %s359, 4
      %s361 = scalar_lea.vmem %s6, %s360
      %s362 = smul.u32 2, %s24
      %s363 = smul.u32 2, %s24
      %p364 = scmp.lt.s32.totalorder %s23, 1
      %s365 = scalar_select %p364, %s23, 1
      %p366 = scmp.lt.s32.totalorder %s363, 1
      %s367 = scalar_select %p366, %s363, 1
      %s368 = smul.addr %s367, 2
      %s369 = smul.addr %s365, 4
      %s370 = sadd.s32 %s368, %s369
      %s371 = smul.addr %s370, 4
      %s372 = scalar_lea.vmem %s7, %s371
      %s373 = smul.u32 2, %s24
      %v374 = vld [vmem:[%s339] sm:$0xff]
      %v375 = vld [vmem:[%s339 + $0x8] sm:$0xff]
      %v376 = vld [vmem:[%s339 + $0x10] sm:$0xff]
      %v377 = vld [vmem:[%s339 + $0x18] sm:$0xff]
      %v378 = vld [vmem:[%s1] sm:$0x3]
      %v379 = vld [vmem:[%s2] sm:$0x3]
      %v380 = vadd.f32 %v374, %v375
      %381 = vadd.xlane.f32.xlu0 %v380
      %v382 = vpop.xlane.xlu0 %381
      %v383 = vadd.f32 %v376, %v377
      %384 = vadd.xlane.f32.xlu0 %v383
      %v385 = vpop.xlane.xlu0 %384
      %v386 = vrcp.pop 256.0
      %v387 = vmul.f32 256.0, %v386
      %v388 = vsub.f32 1.0, %v387
      %v389 = vmul.f32 %v386, %v388
      %v390 = vadd.f32 %v386, %v389
      %vm391 = vweird.f32 %v386
      %v392 = vsel %vm391, %v386, %v390
      %v393 = vmul.f32 %v382, %v392
      %v394 = vmul.f32 %v385, %v392
      %v395 = vsub.f32 %v374, %v393
      %v396 = vsub.f32 %v375, %v393
      %v397 = vsub.f32 %v376, %v394
      %v398 = vsub.f32 %v377, %v394
      %v399 = vmul.f32 %v395, %v395
      %v400 = vmul.f32 %v396, %v396
      %v401 = vmul.f32 %v397, %v397
      %v402 = vmul.f32 %v398, %v398
      %v403 = vadd.f32 %v399, %v400
      %404 = vadd.xlane.f32.xlu0 %v403
      %v405 = vpop.xlane.xlu0 %404
      %v406 = vadd.f32 %v401, %v402
      %407 = vadd.xlane.f32.xlu0 %v406
      %v408 = vpop.xlane.xlu0 %407
      %v409 = vmul.f32 %v405, %v392
      %v410 = vmul.f32 %v408, %v392
      %v411 = vadd.f32 %v409, 1e-05
      %v412 = vadd.f32 %v410, 1e-05
      %v413 = vrsqrt.pop %v411
      %v414 = vmul.f32 %v413, %v411
      %v415 = vmul.f32 %v414, %v413
      %v416 = vmul.f32 0.5, %v415
      %v417 = vsub.f32 1.5, %v416
      %v418 = vmul.f32 %v413, %v417
      %vm419 = vweird.f32 %v411
      %vm420 = vweird.f32 %v413
      %vm421 = vmor %vm419, %vm420
      %v422 = vsel %vm421, %v413, %v418
      %v423 = vrsqrt.pop %v412
      %v424 = vmul.f32 %v423, %v412
      %v425 = vmul.f32 %v424, %v423
      %v426 = vmul.f32 0.5, %v425
      %v427 = vsub.f32 1.5, %v426
      %v428 = vmul.f32 %v423, %v427
      %vm429 = vweird.f32 %v412
      %vm430 = vweird.f32 %v423
      %vm431 = vmor %vm429, %vm430
      %v432 = vsel %vm431, %v423, %v428
      %v433 = vmul.f32 %v395, %v422
      %v434 = vmul.f32 %v396, %v422
      %v435 = vmul.f32 %v397, %v432
      %v436 = vmul.f32 %v398, %v432
      %v438 = vperm.slane %v378, 0
      %v439 = vperm.slane %v378, 1
      %v442 = vmul.f32 %v433, %v438
      %v443 = vmul.f32 %v434, %v439
      %v444 = vmul.f32 %v435, %v438
      %v445 = vmul.f32 %v436, %v439
      %v447 = vperm.slane %v379, 0
      %v448 = vperm.slane %v379, 1
      %v451 = vadd.f32 %v442, %v447
      %v452 = vadd.f32 %v443, %v448
      %v453 = vadd.f32 %v444, %v447
      %v454 = vadd.f32 %v445, %v448
      %v455 = vpack.c.bf16 %v453, %v451
      %v456 = vpack.c.bf16 %v454, %v452
      %v457 = vld [vmem:[%s3] sm:$0xff]
      %v458 = vld [vmem:[%s3 + $0x8] sm:$0xff]
      %v459 = vld [vmem:[%s3 + $0x10] sm:$0xff]
      %v460 = vld [vmem:[%s3 + $0x18] sm:$0xff]
      %v461 = vld [vmem:[%s3 + $0x20] sm:$0xff]
      %v462 = vld [vmem:[%s3 + $0x28] sm:$0xff]
      %v463 = vld [vmem:[%s3 + $0x30] sm:$0xff]
      %v464 = vld [vmem:[%s3 + $0x38] sm:$0xff]
      %v465 = vld [vmem:[%s3 + $0x40] sm:$0xff]
      %v466 = vld [vmem:[%s3 + $0x48] sm:$0xff]
      %v467 = vld [vmem:[%s3 + $0x50] sm:$0xff]
      %v468 = vld [vmem:[%s3 + $0x58] sm:$0xff]
      %v469 = vld [vmem:[%s3 + $0x60] sm:$0xff]
      %v470 = vld [vmem:[%s3 + $0x68] sm:$0xff]
      %v471 = vld [vmem:[%s3 + $0x70] sm:$0xff]
      %v472 = vld [vmem:[%s3 + $0x78] sm:$0xff]
      %v473 = vld [vmem:[%s3 + $0x80] sm:$0xff]
      %v474 = vld [vmem:[%s3 + $0x88] sm:$0xff]
      %v475 = vld [vmem:[%s3 + $0x90] sm:$0xff]
      %v476 = vld [vmem:[%s3 + $0x98] sm:$0xff]
      %v477 = vld [vmem:[%s3 + $0xa0] sm:$0xff]
      %v478 = vld [vmem:[%s3 + $0xa8] sm:$0xff]
      %v479 = vld [vmem:[%s3 + $0xb0] sm:$0xff]
      %v480 = vld [vmem:[%s3 + $0xb8] sm:$0xff]
      %v481 = vld [vmem:[%s3 + $0xc0] sm:$0xff]
      %v482 = vld [vmem:[%s3 + $0xc8] sm:$0xff]
      %v483 = vld [vmem:[%s3 + $0xd0] sm:$0xff]
      %v484 = vld [vmem:[%s3 + $0xd8] sm:$0xff]
      %v485 = vld [vmem:[%s3 + $0xe0] sm:$0xff]
      %v486 = vld [vmem:[%s3 + $0xe8] sm:$0xff]
      %v487 = vld [vmem:[%s3 + $0xf0] sm:$0xff]
      %v488 = vld [vmem:[%s3 + $0xf8] sm:$0xff]
      %v489 = vld [vmem:[%s3 + $0x100] sm:$0xff]
      %v490 = vld [vmem:[%s3 + $0x108] sm:$0xff]
      %v491 = vld [vmem:[%s3 + $0x110] sm:$0xff]
      %v492 = vld [vmem:[%s3 + $0x118] sm:$0xff]
      %v493 = vld [vmem:[%s3 + $0x120] sm:$0xff]
      %v494 = vld [vmem:[%s3 + $0x128] sm:$0xff]
      %v495 = vld [vmem:[%s3 + $0x130] sm:$0xff]
      %v496 = vld [vmem:[%s3 + $0x138] sm:$0xff]
      %v497 = vld [vmem:[%s3 + $0x140] sm:$0xff]
      %v498 = vld [vmem:[%s3 + $0x148] sm:$0xff]
      %v499 = vld [vmem:[%s3 + $0x150] sm:$0xff]
      %v500 = vld [vmem:[%s3 + $0x158] sm:$0xff]
      %v501 = vld [vmem:[%s3 + $0x160] sm:$0xff]
      %v502 = vld [vmem:[%s3 + $0x168] sm:$0xff]
      %v503 = vld [vmem:[%s3 + $0x170] sm:$0xff]
      %v504 = vld [vmem:[%s3 + $0x178] sm:$0xff]
      %v505 = vld [vmem:[%s3 + $0x180] sm:$0xff]
      %v506 = vld [vmem:[%s3 + $0x188] sm:$0xff]
      %v507 = vld [vmem:[%s3 + $0x190] sm:$0xff]
      %v508 = vld [vmem:[%s3 + $0x198] sm:$0xff]
      %v509 = vld [vmem:[%s3 + $0x1a0] sm:$0xff]
      %v510 = vld [vmem:[%s3 + $0x1a8] sm:$0xff]
      %v511 = vld [vmem:[%s3 + $0x1b0] sm:$0xff]
      %v512 = vld [vmem:[%s3 + $0x1b8] sm:$0xff]
      %v513 = vld [vmem:[%s3 + $0x1c0] sm:$0xff]
      %v514 = vld [vmem:[%s3 + $0x1c8] sm:$0xff]
      %v515 = vld [vmem:[%s3 + $0x1d0] sm:$0xff]
      %v516 = vld [vmem:[%s3 + $0x1d8] sm:$0xff]
      %v517 = vld [vmem:[%s3 + $0x1e0] sm:$0xff]
      %v518 = vld [vmem:[%s3 + $0x1e8] sm:$0xff]
      %v519 = vld [vmem:[%s3 + $0x1f0] sm:$0xff]
      %v520 = vld [vmem:[%s3 + $0x1f8] sm:$0xff]
      %v521 = vld [vmem:[%s3 + $0x200] sm:$0xff]
      %v522 = vld [vmem:[%s3 + $0x208] sm:$0xff]
      %v523 = vld [vmem:[%s3 + $0x210] sm:$0xff]
      %v524 = vld [vmem:[%s3 + $0x218] sm:$0xff]
      %v525 = vld [vmem:[%s3 + $0x220] sm:$0xff]
      %v526 = vld [vmem:[%s3 + $0x228] sm:$0xff]
      %v527 = vld [vmem:[%s3 + $0x230] sm:$0xff]
      %v528 = vld [vmem:[%s3 + $0x238] sm:$0xff]
      %v529 = vld [vmem:[%s3 + $0x240] sm:$0xff]
      %v530 = vld [vmem:[%s3 + $0x248] sm:$0xff]
      %v531 = vld [vmem:[%s3 + $0x250] sm:$0xff]
      %v532 = vld [vmem:[%s3 + $0x258] sm:$0xff]
      %v533 = vld [vmem:[%s3 + $0x260] sm:$0xff]
      %v534 = vld [vmem:[%s3 + $0x268] sm:$0xff]
      %v535 = vld [vmem:[%s3 + $0x270] sm:$0xff]
      %v536 = vld [vmem:[%s3 + $0x278] sm:$0xff]
      %v537 = vld [vmem:[%s3 + $0x280] sm:$0xff]
      %v538 = vld [vmem:[%s3 + $0x288] sm:$0xff]
      %v539 = vld [vmem:[%s3 + $0x290] sm:$0xff]
      %v540 = vld [vmem:[%s3 + $0x298] sm:$0xff]
      %v541 = vld [vmem:[%s3 + $0x2a0] sm:$0xff]
      %v542 = vld [vmem:[%s3 + $0x2a8] sm:$0xff]
      %v543 = vld [vmem:[%s3 + $0x2b0] sm:$0xff]
      %v544 = vld [vmem:[%s3 + $0x2b8] sm:$0xff]
      %v545 = vld [vmem:[%s3 + $0x2c0] sm:$0xff]
      %v546 = vld [vmem:[%s3 + $0x2c8] sm:$0xff]
      %v547 = vld [vmem:[%s3 + $0x2d0] sm:$0xff]
      %v548 = vld [vmem:[%s3 + $0x2d8] sm:$0xff]
      %v549 = vld [vmem:[%s3 + $0x2e0] sm:$0xff]
      %v550 = vld [vmem:[%s3 + $0x2e8] sm:$0xff]
      %v551 = vld [vmem:[%s3 + $0x2f0] sm:$0xff]
      %v552 = vld [vmem:[%s3 + $0x2f8] sm:$0xff]
      %v553 = vld [vmem:[%s4] sm:$0x3f]
      %v555 = vperm.slane %v553, 0
      %v556 = vperm.slane %v553, 1
      %v557 = vperm.slane %v553, 2
      %v558 = vperm.slane %v553, 3
      %v559 = vperm.slane %v553, 4
      %v560 = vperm.slane %v553, 5
      %v663 = vunpack.c.l.b16 %v457
      %v664 = vunpack.c.h.b16 %v457
      %v665 = vunpack.c.l.b16 %v458
      %v666 = vunpack.c.h.b16 %v458
      %v667 = vunpack.c.l.b16 %v459
      %v668 = vunpack.c.h.b16 %v459
      %v669 = vunpack.c.l.b16 %v460
      %v670 = vunpack.c.h.b16 %v460
      %v671 = vunpack.c.l.b16 %v461
      %v672 = vunpack.c.h.b16 %v461
      %v673 = vunpack.c.l.b16 %v462
      %v674 = vunpack.c.h.b16 %v462
      %v675 = vunpack.c.l.b16 %v463
      %v676 = vunpack.c.h.b16 %v463
      %v677 = vunpack.c.l.b16 %v464
      %v678 = vunpack.c.h.b16 %v464
      %v679 = vunpack.c.l.b16 %v465
      %v680 = vunpack.c.h.b16 %v465
      %v681 = vunpack.c.l.b16 %v466
      %v682 = vunpack.c.h.b16 %v466
      %v683 = vunpack.c.l.b16 %v467
      %v684 = vunpack.c.h.b16 %v467
      %v685 = vunpack.c.l.b16 %v468
      %v686 = vunpack.c.h.b16 %v468
      %v687 = vunpack.c.l.b16 %v469
      %v688 = vunpack.c.h.b16 %v469
      %v689 = vunpack.c.l.b16 %v470
      %v690 = vunpack.c.h.b16 %v470
      %v691 = vunpack.c.l.b16 %v471
      %v692 = vunpack.c.h.b16 %v471
      %v693 = vunpack.c.l.b16 %v472
      %v694 = vunpack.c.h.b16 %v472
      %v695 = vunpack.c.l.b16 %v473
      %v696 = vunpack.c.h.b16 %v473
      %v697 = vunpack.c.l.b16 %v474
      %v698 = vunpack.c.h.b16 %v474
      %v699 = vunpack.c.l.b16 %v475
      %v700 = vunpack.c.h.b16 %v475
      %v701 = vunpack.c.l.b16 %v476
      %v702 = vunpack.c.h.b16 %v476
      %v703 = vunpack.c.l.b16 %v477
      %v704 = vunpack.c.h.b16 %v477
      %v705 = vunpack.c.l.b16 %v478
      %v706 = vunpack.c.h.b16 %v478
      %v707 = vunpack.c.l.b16 %v479
      %v708 = vunpack.c.h.b16 %v479
      %v709 = vunpack.c.l.b16 %v480
      %v710 = vunpack.c.h.b16 %v480
      %v711 = vunpack.c.l.b16 %v481
      %v712 = vunpack.c.h.b16 %v481
      %v713 = vunpack.c.l.b16 %v482
      %v714 = vunpack.c.h.b16 %v482
      %v715 = vunpack.c.l.b16 %v483
      %v716 = vunpack.c.h.b16 %v483
      %v717 = vunpack.c.l.b16 %v484
      %v718 = vunpack.c.h.b16 %v484
      %v719 = vunpack.c.l.b16 %v485
      %v720 = vunpack.c.h.b16 %v485
      %v721 = vunpack.c.l.b16 %v486
      %v722 = vunpack.c.h.b16 %v486
      %v723 = vunpack.c.l.b16 %v487
      %v724 = vunpack.c.h.b16 %v487
      %v725 = vunpack.c.l.b16 %v488
      %v726 = vunpack.c.h.b16 %v488
      %v727 = vunpack.c.l.b16 %v489
      %v728 = vunpack.c.h.b16 %v489
      %v729 = vunpack.c.l.b16 %v490
      %v730 = vunpack.c.h.b16 %v490
      %v731 = vunpack.c.l.b16 %v491
      %v732 = vunpack.c.h.b16 %v491
      %v733 = vunpack.c.l.b16 %v492
      %v734 = vunpack.c.h.b16 %v492
      %v735 = vunpack.c.l.b16 %v493
      %v736 = vunpack.c.h.b16 %v493
      %v737 = vunpack.c.l.b16 %v494
      %v738 = vunpack.c.h.b16 %v494
      %v739 = vunpack.c.l.b16 %v495
      %v740 = vunpack.c.h.b16 %v495
      %v741 = vunpack.c.l.b16 %v496
      %v742 = vunpack.c.h.b16 %v496
      %v743 = vunpack.c.l.b16 %v497
      %v744 = vunpack.c.h.b16 %v497
      %v745 = vunpack.c.l.b16 %v498
      %v746 = vunpack.c.h.b16 %v498
      %v747 = vunpack.c.l.b16 %v499
      %v748 = vunpack.c.h.b16 %v499
      %v749 = vunpack.c.l.b16 %v500
      %v750 = vunpack.c.h.b16 %v500
      %v751 = vunpack.c.l.b16 %v501
      %v752 = vunpack.c.h.b16 %v501
      %v753 = vunpack.c.l.b16 %v502
      %v754 = vunpack.c.h.b16 %v502
      %v755 = vunpack.c.l.b16 %v503
      %v756 = vunpack.c.h.b16 %v503
      %v757 = vunpack.c.l.b16 %v504
      %v758 = vunpack.c.h.b16 %v504
      %v759 = vunpack.c.l.b16 %v505
      %v760 = vunpack.c.h.b16 %v505
      %v761 = vunpack.c.l.b16 %v506
      %v762 = vunpack.c.h.b16 %v506
      %v763 = vunpack.c.l.b16 %v507
      %v764 = vunpack.c.h.b16 %v507
      %v765 = vunpack.c.l.b16 %v508
      %v766 = vunpack.c.h.b16 %v508
      %v767 = vunpack.c.l.b16 %v509
      %v768 = vunpack.c.h.b16 %v509
      %v769 = vunpack.c.l.b16 %v510
      %v770 = vunpack.c.h.b16 %v510
      %v771 = vunpack.c.l.b16 %v511
      %v772 = vunpack.c.h.b16 %v511
      %v773 = vunpack.c.l.b16 %v512
      %v774 = vunpack.c.h.b16 %v512
      %v775 = vunpack.c.l.b16 %v513
      %v776 = vunpack.c.h.b16 %v513
      %v777 = vunpack.c.l.b16 %v514
      %v778 = vunpack.c.h.b16 %v514
      %v779 = vunpack.c.l.b16 %v515
      %v780 = vunpack.c.h.b16 %v515
      %v781 = vunpack.c.l.b16 %v516
      %v782 = vunpack.c.h.b16 %v516
      %v783 = vunpack.c.l.b16 %v517
      %v784 = vunpack.c.h.b16 %v517
      %v785 = vunpack.c.l.b16 %v518
      %v786 = vunpack.c.h.b16 %v518
      %v787 = vunpack.c.l.b16 %v519
      %v788 = vunpack.c.h.b16 %v519
      %v789 = vunpack.c.l.b16 %v520
      %v790 = vunpack.c.h.b16 %v520
      %v791 = vunpack.c.l.b16 %v521
      %v792 = vunpack.c.h.b16 %v521
      %v793 = vunpack.c.l.b16 %v522
      %v794 = vunpack.c.h.b16 %v522
      %v795 = vunpack.c.l.b16 %v523
      %v796 = vunpack.c.h.b16 %v523
      %v797 = vunpack.c.l.b16 %v524
      %v798 = vunpack.c.h.b16 %v524
      %v799 = vunpack.c.l.b16 %v525
      %v800 = vunpack.c.h.b16 %v525
      %v801 = vunpack.c.l.b16 %v526
      %v802 = vunpack.c.h.b16 %v526
      %v803 = vunpack.c.l.b16 %v527
      %v804 = vunpack.c.h.b16 %v527
      %v805 = vunpack.c.l.b16 %v528
      %v806 = vunpack.c.h.b16 %v528
      %v807 = vunpack.c.l.b16 %v529
      %v808 = vunpack.c.h.b16 %v529
      %v809 = vunpack.c.l.b16 %v530
      %v810 = vunpack.c.h.b16 %v530
      %v811 = vunpack.c.l.b16 %v531
      %v812 = vunpack.c.h.b16 %v531
      %v813 = vunpack.c.l.b16 %v532
      %v814 = vunpack.c.h.b16 %v532
      %v815 = vunpack.c.l.b16 %v533
      %v816 = vunpack.c.h.b16 %v533
      %v817 = vunpack.c.l.b16 %v534
      %v818 = vunpack.c.h.b16 %v534
      %v819 = vunpack.c.l.b16 %v535
      %v820 = vunpack.c.h.b16 %v535
      %v821 = vunpack.c.l.b16 %v536
      %v822 = vunpack.c.h.b16 %v536
      %v823 = vunpack.c.l.b16 %v537
      %v824 = vunpack.c.h.b16 %v537
      %v825 = vunpack.c.l.b16 %v538
      %v826 = vunpack.c.h.b16 %v538
      %v827 = vunpack.c.l.b16 %v539
      %v828 = vunpack.c.h.b16 %v539
      %v829 = vunpack.c.l.b16 %v540
      %v830 = vunpack.c.h.b16 %v540
      %v831 = vunpack.c.l.b16 %v541
      %v832 = vunpack.c.h.b16 %v541
      %v833 = vunpack.c.l.b16 %v542
      %v834 = vunpack.c.h.b16 %v542
      %v835 = vunpack.c.l.b16 %v543
      %v836 = vunpack.c.h.b16 %v543
      %v837 = vunpack.c.l.b16 %v544
      %v838 = vunpack.c.h.b16 %v544
      %v839 = vunpack.c.l.b16 %v545
      %v840 = vunpack.c.h.b16 %v545
      %v841 = vunpack.c.l.b16 %v546
      %v842 = vunpack.c.h.b16 %v546
      %v843 = vunpack.c.l.b16 %v547
      %v844 = vunpack.c.h.b16 %v547
      %v845 = vunpack.c.l.b16 %v548
      %v846 = vunpack.c.h.b16 %v548
      %v847 = vunpack.c.l.b16 %v549
      %v848 = vunpack.c.h.b16 %v549
      %v849 = vunpack.c.l.b16 %v550
      %v850 = vunpack.c.h.b16 %v550
      %v851 = vunpack.c.l.b16 %v551
      %v852 = vunpack.c.h.b16 %v551
      %v853 = vunpack.c.l.b16 %v552
      %v854 = vunpack.c.h.b16 %v552
      %v855 = vpack.c.b16 %v665, %v663
      %v856 = vpack.c.b16 %v666, %v664
      %v857 = vpack.c.b16 %v669, %v667
      %v858 = vpack.c.b16 %v670, %v668
      %v859 = vpack.c.b16 %v673, %v671
      %v860 = vpack.c.b16 %v674, %v672
      %v861 = vpack.c.b16 %v677, %v675
      %v862 = vpack.c.b16 %v678, %v676
      %v863 = vpack.c.b16 %v681, %v679
      %v864 = vpack.c.b16 %v682, %v680
      %v865 = vpack.c.b16 %v685, %v683
      %v866 = vpack.c.b16 %v686, %v684
      %v867 = vpack.c.b16 %v689, %v687
      %v868 = vpack.c.b16 %v690, %v688
      %v869 = vpack.c.b16 %v693, %v691
      %v870 = vpack.c.b16 %v694, %v692
      %v871 = vpack.c.b16 %v697, %v695
      %v872 = vpack.c.b16 %v698, %v696
      %v873 = vpack.c.b16 %v701, %v699
      %v874 = vpack.c.b16 %v702, %v700
      %v875 = vpack.c.b16 %v705, %v703
      %v876 = vpack.c.b16 %v706, %v704
      %v877 = vpack.c.b16 %v709, %v707
      %v878 = vpack.c.b16 %v710, %v708
      %v879 = vpack.c.b16 %v713, %v711
      %v880 = vpack.c.b16 %v714, %v712
      %v881 = vpack.c.b16 %v717, %v715
      %v882 = vpack.c.b16 %v718, %v716
      %v883 = vpack.c.b16 %v721, %v719
      %v884 = vpack.c.b16 %v722, %v720
      %v885 = vpack.c.b16 %v725, %v723
      %v886 = vpack.c.b16 %v726, %v724
      %v887 = vpack.c.b16 %v729, %v727
      %v888 = vpack.c.b16 %v730, %v728
      %v889 = vpack.c.b16 %v733, %v731
      %v890 = vpack.c.b16 %v734, %v732
      %v891 = vpack.c.b16 %v737, %v735
      %v892 = vpack.c.b16 %v738, %v736
      %v893 = vpack.c.b16 %v741, %v739
      %v894 = vpack.c.b16 %v742, %v740
      %v895 = vpack.c.b16 %v745, %v743
      %v896 = vpack.c.b16 %v746, %v744
      %v897 = vpack.c.b16 %v749, %v747
      %v898 = vpack.c.b16 %v750, %v748
      %v899 = vpack.c.b16 %v753, %v751
      %v900 = vpack.c.b16 %v754, %v752
      %v901 = vpack.c.b16 %v757, %v755
      %v902 = vpack.c.b16 %v758, %v756
      %v903 = vpack.c.b16 %v761, %v759
      %v904 = vpack.c.b16 %v762, %v760
      %v905 = vpack.c.b16 %v765, %v763
      %v906 = vpack.c.b16 %v766, %v764
      %v907 = vpack.c.b16 %v769, %v767
      %v908 = vpack.c.b16 %v770, %v768
      %v909 = vpack.c.b16 %v773, %v771
      %v910 = vpack.c.b16 %v774, %v772
      %v911 = vpack.c.b16 %v777, %v775
      %v912 = vpack.c.b16 %v778, %v776
      %v913 = vpack.c.b16 %v781, %v779
      %v914 = vpack.c.b16 %v782, %v780
      %v915 = vpack.c.b16 %v785, %v783
      %v916 = vpack.c.b16 %v786, %v784
      %v917 = vpack.c.b16 %v789, %v787
      %v918 = vpack.c.b16 %v790, %v788
      %v919 = vpack.c.b16 %v793, %v791
      %v920 = vpack.c.b16 %v794, %v792
      %v921 = vpack.c.b16 %v797, %v795
      %v922 = vpack.c.b16 %v798, %v796
      %v923 = vpack.c.b16 %v801, %v799
      %v924 = vpack.c.b16 %v802, %v800
      %v925 = vpack.c.b16 %v805, %v803
      %v926 = vpack.c.b16 %v806, %v804
      %v927 = vpack.c.b16 %v809, %v807
      %v928 = vpack.c.b16 %v810, %v808
      %v929 = vpack.c.b16 %v813, %v811
      %v930 = vpack.c.b16 %v814, %v812
      %v931 = vpack.c.b16 %v817, %v815
      %v932 = vpack.c.b16 %v818, %v816
      %v933 = vpack.c.b16 %v821, %v819
      %v934 = vpack.c.b16 %v822, %v820
      %v935 = vpack.c.b16 %v825, %v823
      %v936 = vpack.c.b16 %v826, %v824
      %v937 = vpack.c.b16 %v829, %v827
      %v938 = vpack.c.b16 %v830, %v828
      %v939 = vpack.c.b16 %v833, %v831
      %v940 = vpack.c.b16 %v834, %v832
      %v941 = vpack.c.b16 %v837, %v835
      %v942 = vpack.c.b16 %v838, %v836
      %v943 = vpack.c.b16 %v841, %v839
      %v944 = vpack.c.b16 %v842, %v840
      %v945 = vpack.c.b16 %v845, %v843
      %v946 = vpack.c.b16 %v846, %v844
      %v947 = vpack.c.b16 %v849, %v847
      %v948 = vpack.c.b16 %v850, %v848
      %v949 = vpack.c.b16 %v853, %v851
      %v950 = vpack.c.b16 %v854, %v852
      %1047 = vmatpush.bf16.xpose.msra.mxu0 %v869
      %1048 = vmatpush.bf16.xpose.msra.mxu0 %v867
      %1049 = vmatpush.bf16.xpose.msra.mxu0 %v865
      %1050 = vmatpush.bf16.xpose.msra.mxu0 %v863
      %1051 = vmatpush.bf16.xpose.msra.mxu0 %v861
      %1052 = vmatpush.bf16.xpose.msra.mxu0 %v859
      %1053 = vmatpush.bf16.xpose.msra.mxu0 %v857
      %1054 = vmatpush.bf16.xpose.msra.mxu0 %v855
      %1055 = vmatmul.bf16.gmra.mxu0 %v455
      %v1056 = vpop.f32.mrf.mxu0
      %v1057 = vadd.f32 %v555, %v1056
      %v1058 = vpop.f32.mrf.mxu0
      %v1059 = vadd.f32 %v555, %v1058
      %1060 = vdwg.mxu0
      %1061 = vmatpush.bf16.xpose.msra.mxu0 %v870
      %1062 = vmatpush.bf16.xpose.msra.mxu0 %v868
      %1063 = vmatpush.bf16.xpose.msra.mxu0 %v866
      %1064 = vmatpush.bf16.xpose.msra.mxu0 %v864
      %1065 = vmatpush.bf16.xpose.msra.mxu0 %v862
      %1066 = vmatpush.bf16.xpose.msra.mxu0 %v860
      %1067 = vmatpush.bf16.xpose.msra.mxu0 %v858
      %1068 = vmatpush.bf16.xpose.msra.mxu0 %v856
      %1069 = vmatmul.bf16.gmra.mxu0 %v456
      %v1070 = vpop.f32.mrf.mxu0
      %v1071 = vadd.f32 %v1057, %v1070
      %v1072 = vpop.f32.mrf.mxu0
      %v1073 = vadd.f32 %v1059, %v1072
      %1074 = vdwg.mxu0
      %1075 = vmatpush.bf16.xpose.msra.mxu0 %v885
      %1076 = vmatpush.bf16.xpose.msra.mxu0 %v883
      %1077 = vmatpush.bf16.xpose.msra.mxu0 %v881
      %1078 = vmatpush.bf16.xpose.msra.mxu0 %v879
      %1079 = vmatpush.bf16.xpose.msra.mxu0 %v877
      %1080 = vmatpush.bf16.xpose.msra.mxu0 %v875
      %1081 = vmatpush.bf16.xpose.msra.mxu0 %v873
      %1082 = vmatpush.bf16.xpose.msra.mxu0 %v871
      %1083 = vmatmul.bf16.gmra.mxu0 %v455
      %v1084 = vpop.f32.mrf.mxu0
      %v1085 = vadd.f32 %v556, %v1084
      %v1086 = vpop.f32.mrf.mxu0
      %v1087 = vadd.f32 %v556, %v1086
      %1088 = vdwg.mxu0
      %1089 = vmatpush.bf16.xpose.msra.mxu0 %v886
      %1090 = vmatpush.bf16.xpose.msra.mxu0 %v884
      %1091 = vmatpush.bf16.xpose.msra.mxu0 %v882
      %1092 = vmatpush.bf16.xpose.msra.mxu0 %v880
      %1093 = vmatpush.bf16.xpose.msra.mxu0 %v878
      %1094 = vmatpush.bf16.xpose.msra.mxu0 %v876
      %1095 = vmatpush.bf16.xpose.msra.mxu0 %v874
      %1096 = vmatpush.bf16.xpose.msra.mxu0 %v872
      %1097 = vmatmul.bf16.gmra.mxu0 %v456
      %v1098 = vpop.f32.mrf.mxu0
      %v1099 = vadd.f32 %v1085, %v1098
      %v1100 = vpop.f32.mrf.mxu0
      %v1101 = vadd.f32 %v1087, %v1100
      %1102 = vdwg.mxu0
      %1103 = vmatpush.bf16.xpose.msra.mxu0 %v901
      %1104 = vmatpush.bf16.xpose.msra.mxu0 %v899
      %1105 = vmatpush.bf16.xpose.msra.mxu0 %v897
      %1106 = vmatpush.bf16.xpose.msra.mxu0 %v895
      %1107 = vmatpush.bf16.xpose.msra.mxu0 %v893
      %1108 = vmatpush.bf16.xpose.msra.mxu0 %v891
      %1109 = vmatpush.bf16.xpose.msra.mxu0 %v889
      %1110 = vmatpush.bf16.xpose.msra.mxu0 %v887
      %1111 = vmatmul.bf16.gmra.mxu0 %v455
      %v1112 = vpop.f32.mrf.mxu0
      %v1113 = vadd.f32 %v557, %v1112
      %v1114 = vpop.f32.mrf.mxu0
      %v1115 = vadd.f32 %v557, %v1114
      %1116 = vdwg.mxu0
      %1117 = vmatpush.bf16.xpose.msra.mxu0 %v902
      %1118 = vmatpush.bf16.xpose.msra.mxu0 %v900
      %1119 = vmatpush.bf16.xpose.msra.mxu0 %v898
      %1120 = vmatpush.bf16.xpose.msra.mxu0 %v896
      %1121 = vmatpush.bf16.xpose.msra.mxu0 %v894
      %1122 = vmatpush.bf16.xpose.msra.mxu0 %v892
      %1123 = vmatpush.bf16.xpose.msra.mxu0 %v890
      %1124 = vmatpush.bf16.xpose.msra.mxu0 %v888
      %1125 = vmatmul.bf16.gmra.mxu0 %v456
      %v1126 = vpop.f32.mrf.mxu0
      %v1127 = vadd.f32 %v1113, %v1126
      %v1128 = vpop.f32.mrf.mxu0
      %v1129 = vadd.f32 %v1115, %v1128
      %1130 = vdwg.mxu0
      %1131 = vmatpush.bf16.xpose.msra.mxu0 %v917
      %1132 = vmatpush.bf16.xpose.msra.mxu0 %v915
      %1133 = vmatpush.bf16.xpose.msra.mxu0 %v913
      %1134 = vmatpush.bf16.xpose.msra.mxu0 %v911
      %1135 = vmatpush.bf16.xpose.msra.mxu0 %v909
      %1136 = vmatpush.bf16.xpose.msra.mxu0 %v907
      %1137 = vmatpush.bf16.xpose.msra.mxu0 %v905
      %1138 = vmatpush.bf16.xpose.msra.mxu0 %v903
      %1139 = vmatmul.bf16.gmra.mxu0 %v455
      %v1140 = vpop.f32.mrf.mxu0
      %v1141 = vadd.f32 %v558, %v1140
      %v1142 = vpop.f32.mrf.mxu0
      %v1143 = vadd.f32 %v558, %v1142
      %1144 = vdwg.mxu0
      %1145 = vmatpush.bf16.xpose.msra.mxu0 %v918
      %1146 = vmatpush.bf16.xpose.msra.mxu0 %v916
      %1147 = vmatpush.bf16.xpose.msra.mxu0 %v914
      %1148 = vmatpush.bf16.xpose.msra.mxu0 %v912
      %1149 = vmatpush.bf16.xpose.msra.mxu0 %v910
      %1150 = vmatpush.bf16.xpose.msra.mxu0 %v908
      %1151 = vmatpush.bf16.xpose.msra.mxu0 %v906
      %1152 = vmatpush.bf16.xpose.msra.mxu0 %v904
      %1153 = vmatmul.bf16.gmra.mxu0 %v456
      %v1154 = vpop.f32.mrf.mxu0
      %v1155 = vadd.f32 %v1141, %v1154
      %v1156 = vpop.f32.mrf.mxu0
      %v1157 = vadd.f32 %v1143, %v1156
      %1158 = vdwg.mxu0
      %1159 = vmatpush.bf16.xpose.msra.mxu0 %v933
      %1160 = vmatpush.bf16.xpose.msra.mxu0 %v931
      %1161 = vmatpush.bf16.xpose.msra.mxu0 %v929
      %1162 = vmatpush.bf16.xpose.msra.mxu0 %v927
      %1163 = vmatpush.bf16.xpose.msra.mxu0 %v925
      %1164 = vmatpush.bf16.xpose.msra.mxu0 %v923
      %1165 = vmatpush.bf16.xpose.msra.mxu0 %v921
      %1166 = vmatpush.bf16.xpose.msra.mxu0 %v919
      %1167 = vmatmul.bf16.gmra.mxu0 %v455
      %v1168 = vpop.f32.mrf.mxu0
      %v1169 = vadd.f32 %v559, %v1168
      %v1170 = vpop.f32.mrf.mxu0
      %v1171 = vadd.f32 %v559, %v1170
      %1172 = vdwg.mxu0
      %1173 = vmatpush.bf16.xpose.msra.mxu0 %v934
      %1174 = vmatpush.bf16.xpose.msra.mxu0 %v932
      %1175 = vmatpush.bf16.xpose.msra.mxu0 %v930
      %1176 = vmatpush.bf16.xpose.msra.mxu0 %v928
      %1177 = vmatpush.bf16.xpose.msra.mxu0 %v926
      %1178 = vmatpush.bf16.xpose.msra.mxu0 %v924
      %1179 = vmatpush.bf16.xpose.msra.mxu0 %v922
      %1180 = vmatpush.bf16.xpose.msra.mxu0 %v920
      %1181 = vmatmul.bf16.gmra.mxu0 %v456
      %v1182 = vpop.f32.mrf.mxu0
      %v1183 = vadd.f32 %v1169, %v1182
      %v1184 = vpop.f32.mrf.mxu0
      %v1185 = vadd.f32 %v1171, %v1184
      %1186 = vdwg.mxu0
      %1187 = vmatpush.bf16.xpose.msra.mxu0 %v949
      %1188 = vmatpush.bf16.xpose.msra.mxu0 %v947
      %1189 = vmatpush.bf16.xpose.msra.mxu0 %v945
      %1190 = vmatpush.bf16.xpose.msra.mxu0 %v943
      %1191 = vmatpush.bf16.xpose.msra.mxu0 %v941
      %1192 = vmatpush.bf16.xpose.msra.mxu0 %v939
      %1193 = vmatpush.bf16.xpose.msra.mxu0 %v937
      %1194 = vmatpush.bf16.xpose.msra.mxu0 %v935
      %1195 = vmatmul.bf16.gmra.mxu0 %v455
      %v1196 = vpop.f32.mrf.mxu0
      %v1197 = vadd.f32 %v560, %v1196
      %v1198 = vpop.f32.mrf.mxu0
      %v1199 = vadd.f32 %v560, %v1198
      %1200 = vdwg.mxu0
      %1201 = vmatpush.bf16.xpose.msra.mxu0 %v950
      %1202 = vmatpush.bf16.xpose.msra.mxu0 %v948
      %1203 = vmatpush.bf16.xpose.msra.mxu0 %v946
      %1204 = vmatpush.bf16.xpose.msra.mxu0 %v944
      %1205 = vmatpush.bf16.xpose.msra.mxu0 %v942
      %1206 = vmatpush.bf16.xpose.msra.mxu0 %v940
      %1207 = vmatpush.bf16.xpose.msra.mxu0 %v938
      %1208 = vmatpush.bf16.xpose.msra.mxu0 %v936
      %1209 = vmatmul.bf16.gmra.mxu0 %v456
      %v1210 = vpop.f32.mrf.mxu0
      %v1211 = vadd.f32 %v1197, %v1210
      %v1212 = vpop.f32.mrf.mxu0
      %v1213 = vadd.f32 %v1199, %v1212
      %1214 = vdwg.mxu0
      %v1215 = vpack.c.bf16 %v1099, %v1071
      %v1216 = vpack.c.bf16 %v1155, %v1127
      %v1217 = vpack.c.bf16 %v1211, %v1183
      %v1218 = vpack.c.bf16 %v1101, %v1073
      %v1219 = vpack.c.bf16 %v1157, %v1129
      %v1220 = vpack.c.bf16 %v1213, %v1185
      %1221 = vst [vmem:[%s350] sm:$0xff] %v1215
      %1222 = vst [vmem:[%s350 + $0x8] sm:$0xff] %v1218
      %1223 = vst [vmem:[%s361] sm:$0xff] %v1216
      %1224 = vst [vmem:[%s361 + $0x8] sm:$0xff] %v1219
      %1225 = vst [vmem:[%s372] sm:$0xff] %v1217
      %1226 = vst [vmem:[%s372 + $0x8] sm:$0xff] %v1220
      %s1227 = smul.u32 2, %s24
      %p1228 = scmp.lt.s32.totalorder %s23, 1
      %s1229 = scalar_select %p1228, %s23, 1
      %p1230 = scmp.lt.s32.totalorder %s1227, 1
      %s1231 = scalar_select %p1230, %s1227, 1
      %s1232 = smul.addr %s1231, 2
      %s1233 = smul.addr %s1229, 4
      %s1234 = sadd.s32 %s1232, %s1233
      %s1235 = smul.addr %s1234, 4
      %s1236 = scalar_lea.vmem %s5, %s1235
      %s1237 = smul.u32 2, %s24
      %p1238 = scmp.lt.s32.totalorder %s23, 1
      %s1239 = scalar_select %p1238, %s23, 1
      %p1240 = scmp.lt.s32.totalorder %s1237, 1
      %s1241 = scalar_select %p1240, %s1237, 1
      %s1242 = smul.addr %s1241, 2
      %s1243 = smul.addr %s1239, 4
      %s1244 = sadd.s32 %s1242, %s1243
      %s1245 = smul.addr %s1244, 4
      %s1246 = scalar_lea.vmem %s6, %s1245
      %s1247 = smul.u32 2, %s24
      %p1248 = scmp.lt.s32.totalorder %s23, 1
      %s1249 = scalar_select %p1248, %s23, 1
      %p1250 = scmp.lt.s32.totalorder %s1247, 1
      %s1251 = scalar_select %p1250, %s1247, 1
      %s1252 = smul.addr %s1251, 2
      %s1253 = smul.addr %s1249, 4
      %s1254 = sadd.s32 %s1252, %s1253
      %s1255 = smul.addr %s1254, 4
      %s1256 = scalar_lea.vmem %s7, %s1255
      // Predicated region
      $region41: #{encoder_block.3} parent=39 // pred_check
        %p1257 = pneg %p163
      $region42: #{encoder_block.3} parent=39 // pred_check_branch
        %1259 = sbr.rel (%p1257) target = $region44
      $region43: #{encoder_block.3} parent=39 // pred_region
        %s1260 = smul.u32 2, %s24
      $region44: #{encoder_block.3} parent=39 // pred_fallthru
        _
      // Predicated region
      $region45: #{encoder_block.3} parent=39 // pred_check
        %p1261 = pneg %p191
      $region46: #{encoder_block.3} parent=39 // pred_check_branch
        %1263 = sbr.rel (%p1261) target = $region48
      $region47: #{encoder_block.3} parent=39 // pred_region
        %s1264 = smul.u32 2, %s24
      $region48: #{encoder_block.3} parent=39 // pred_fallthru
        _
      // Predicated region
      $region49: #{encoder_block.3} parent=39 // pred_check
        %p1265 = pneg %p219
      $region50: #{encoder_block.3} parent=39 // pred_check_branch
        %1267 = sbr.rel (%p1265) target = $region52
      $region51: #{encoder_block.3} parent=39 // pred_region
        %s1268 = smul.u32 2, %s24
      $region52: #{encoder_block.3} parent=39 // pred_fallthru
        _
    $region40: #{encoder_block.3} parent=5 // pred_fallthru
      _
    %p1269 = scmp.le.s32.totalorder 2, %s14
    // Predicated region
    $region53: #{encoder_block.3} parent=5 // pred_check
      %p1270 = pneg %p1269
    $region54: #{encoder_block.3} parent=5 // pred_check_branch
      %1272 = sbr.rel (%p1270) target = $region56
    $region55: #{encoder_block.3} parent=5 // pred_region
      %s1273 = ssub.s32 %s14, 2
      // Predicated region
      $region57: #{encoder_block.3} parent=55 // pred_check
        %p1274 = pneg %p169
      $region58: #{encoder_block.3} parent=55 // pred_check_branch
        %1276 = sbr.rel (%p1274) target = $region60
      $region59: #{encoder_block.3} parent=55 // pred_region
        %s1277 = smul.u32 2, %s26
        %p1278 = scmp.lt.s32.totalorder %s25, 1
        %s1279 = scalar_select %p1278, %s25, 1
        %p1280 = scmp.lt.s32.totalorder %s1277, 1
        %s1281 = scalar_select %p1280, %s1277, 1
        %s1282 = smul.addr %s1281, 2
        %s1283 = smul.addr %s1279, 4
        %s1284 = sadd.s32 %s1282, %s1283
        %s1285 = smul.addr %s1284, 4
        %s1286 = scalar_lea.vmem %s5, %s1285
      $region60: #{encoder_block.3} parent=55 // pred_fallthru
        _
      // Predicated region
      $region61: #{encoder_block.3} parent=55 // pred_check
        %p1287 = pneg %p197
      $region62: #{encoder_block.3} parent=55 // pred_check_branch
        %1289 = sbr.rel (%p1287) target = $region64
      $region63: #{encoder_block.3} parent=55 // pred_region
        %s1290 = smul.u32 2, %s26
        %p1291 = scmp.lt.s32.totalorder %s25, 1
        %s1292 = scalar_select %p1291, %s25, 1
        %p1293 = scmp.lt.s32.totalorder %s1290, 1
        %s1294 = scalar_select %p1293, %s1290, 1
        %s1295 = smul.addr %s1294, 2
        %s1296 = smul.addr %s1292, 4
        %s1297 = sadd.s32 %s1295, %s1296
        %s1298 = smul.addr %s1297, 4
        %s1299 = scalar_lea.vmem %s6, %s1298
      $region64: #{encoder_block.3} parent=55 // pred_fallthru
        _
      // Predicated region
      $region65: #{encoder_block.3} parent=55 // pred_check
        %p1300 = pneg %p225
      $region66: #{encoder_block.3} parent=55 // pred_check_branch
        %1302 = sbr.rel (%p1300) target = $region68
      $region67: #{encoder_block.3} parent=55 // pred_region
        %s1303 = smul.u32 2, %s26
        %p1304 = scmp.lt.s32.totalorder %s25, 1
        %s1305 = scalar_select %p1304, %s25, 1
        %p1306 = scmp.lt.s32.totalorder %s1303, 1
        %s1307 = scalar_select %p1306, %s1303, 1
        %s1308 = smul.addr %s1307, 2
        %s1309 = smul.addr %s1305, 4
        %s1310 = sadd.s32 %s1308, %s1309
        %s1311 = smul.addr %s1310, 4
        %s1312 = scalar_lea.vmem %s7, %s1311
      $region68: #{encoder_block.3} parent=55 // pred_fallthru
        _
    $region56: #{encoder_block.3} parent=5 // pred_fallthru
      _
  $region6: #{encoder_block.3} parent=0 // loop_footer
    %s18 = sadd.s32 1, %s14
  $region7: #{encoder_block.3} parent=0 // loop_footer_branch
    %13 = sbr.rel target = $region3
  $region8: #{encoder_block.3} parent=0 // loop_exit
    _

// kernel: encoder_block.5
$region0: #{encoder_block.5}
  #allocation0 [shape = 'u32[]', space=smem, size = 0x4, offset = 0x4, fixed_abs, tag = 'smem constant byte address 0x4 - core index']
  #allocation1 [shape = 'u32[72,128]{1,0:T(1,128)}', space=vmem, size = 0x9000, scoped, tag = 'internal scratch']
  %s0 = inlined_call_operand.vmem [shape: bf16[2,16,256], index: 0, kind: input, shape index: {}]
  %s1 = inlined_call_operand.vmem [shape: f32[2,16,256], index: 1, kind: input, shape index: {}]
  %s2 = inlined_call_operand.vmem [shape: bf16[256,256], index: 2, kind: input, shape index: {}]
  %s3 = inlined_call_operand.vmem [shape: f32[1,256], index: 3, kind: input, shape index: {}]
  %s4 = inlined_call_operand.vmem [shape: f32[1,256], index: 4, kind: input, shape index: {}]
  %s5 = inlined_call_operand.vmem [shape: f32[1,256], index: 5, kind: input, shape index: {}]
  %s6 = inlined_call_operand.vmem [shape: bf16[512,256], index: 6, kind: input, shape index: {}]
  %s7 = inlined_call_operand.vmem [shape: f32[1,512], index: 7, kind: input, shape index: {}]
  %s8 = inlined_call_operand.vmem [shape: bf16[256,512], index: 8, kind: input, shape index: {}]
  %s9 = inlined_call_operand.vmem [shape: f32[1,256], index: 9, kind: input, shape index: {}]
  %s10 = inlined_call_operand.hbm [shape: f32[2,16,256], index: 10, kind: output, shape index: {}]
  %s11 = sld [smem:[#allocation0]]
  $region73: #{encoder_block.5} parent=0
    _
  %s13 = ssub.s32 1, %s11
  %s14 = scalar_select 0, %s13, %s11
  $region1: #{encoder_block.5} parent=0
    #allocation2 [shape = 'u8[32768]{0}', space=vmem, size = 0x8000, scoped, tag = 'output window, operand 0']
    #allocation3 [shape = 's32[2]{0}', space=sflag, size = 0x8, scoped, tag = 'scoped memory for encoder_block.5']
    %15 = vsyncpa [#allocation3], 0
    %s16 = scalar_lea.sflag [#allocation3], 1
    %17 = vsyncpa %s16, 0
    loop: start=0, step=1, limit=4
    $region2: #{encoder_block.5} parent=1 // loop_pre_header
      _
    $region3: #{encoder_block.5} parent=1 // loop_header
      %s19 = sphi 0, %s23
      %p20 = scmp.ge.s32.totalorder %s19, 4
      %s26 = sphi 0, %s38
      %s27 = sphi 0, %s34
      %s28 = sphi 0, %s26
      %s29 = sphi 0, %s27
      %s30 = sphi 0, %s28
      %s31 = sphi 0, %s29
      %s43 = sphi 0, %s45
      %s46 = sphi 0, %s43
      %s47 = sphi 0, %s46
      %s63 = sphi 0, %s47
      %s71 = sphi 0, %s73
      %s74 = sphi 0, %s71
      %s75 = sphi 0, %s74
      %s91 = sphi 0, %s75
      %s95 = sphi 0, %s95
      %s97 = sphi 0, %s95
      %s98 = sphi 0, %s97
      %s112 = sphi 0, %s98
      %s116 = sphi 0, %s116
      %s118 = sphi 0, %s116
      %s119 = sphi 0, %s118
      %s133 = sphi 0, %s119
      %s137 = sphi 0, %s137
      %s139 = sphi 0, %s137
      %s140 = sphi 0, %s139
      %s154 = sphi 0, %s140
      %s158 = sphi 0, %s158
      %s160 = sphi 0, %s158
      %s161 = sphi 0, %s160
      %s175 = sphi 0, %s161
      %s179 = sphi 0, %s179
      %s181 = sphi 0, %s179
      %s182 = sphi 0, %s181
      %s196 = sphi 0, %s182
      %s200 = sphi 0, %s200
      %s202 = sphi 0, %s200
      %s203 = sphi 0, %s202
      %s217 = sphi 0, %s203
      %s221 = sphi 0, %s221
      %s223 = sphi 0, %s221
      %s224 = sphi 0, %s223
      %s238 = sphi 0, %s224
      %s242 = sphi 0, %s242
      %s244 = sphi 0, %s242
      %s245 = sphi 0, %s244
      %s259 = sphi 0, %s245
      %s267 = sphi 0, %s269
      %s270 = sphi 0, %s267
      %s271 = sphi 0, %s270
      %s287 = sphi 0, %s271
    $region4: #{encoder_block.5} parent=1 // loop_header_branch
      %22 = sbr.rel (%p20) target = $region8
    $region5: #{encoder_block.5} parent=1 // loop_body
      %s24 = ssub.s32 %s19, 1
      %s25 = ssub.s32 %s19, 2
      %s32 = sadd.s32 1, %s27
      %p33 = scmp.ge.s32.totalorder %s32, 1
      %s34 = scalar_select %p33, 0, %s32
      %s35 = sadd.s32 1, %s26
      %s36 = scalar_select %p33, %s35, %s26
      %p37 = scmp.ge.s32.totalorder %s36, 2
      %s38 = scalar_select %p37, 0, %s36
      %s39 = ssub.s32 %s26, %s38
      %s40 = ssub.s32 %s27, %s34
      %s41 = sor.u32 %s39, %s40
      %p42 = scmp.eq.s32.totalorder %s41, 0
      %s44 = sadd.s32 %s43, 1
      %s45 = scalar_select %p42, %s43, %s44
      %p48 = pneg %p42
      %p49 = scmp.eq.s32.totalorder %s19, 1
      %p50 = por %p48, %p49
      %p51 = scmp.ne.s32.totalorder %s43, %s46
      %p52 = scmp.eq.s32.totalorder %s19, 0
      %p53 = por %p51, %p52
      %p54 = scmp.ne.s32.totalorder %s43, %s46
      %p55 = scmp.eq.s32.totalorder %s24, 1
      %p56 = por %p54, %p55
      %p57 = scmp.ne.s32.totalorder %s46, %s47
      %p58 = scmp.eq.s32.totalorder %s24, 0
      %p59 = por %p57, %p58
      %p60 = scmp.ne.s32.totalorder %s46, %s47
      %p61 = scmp.eq.s32.totalorder %s25, 1
      %p62 = por %p60, %p61
      %p64 = scmp.ne.s32.totalorder %s47, %s63
      %p65 = scmp.eq.s32.totalorder %s25, 0
      %p66 = por %p64, %p65
      %s67 = ssub.s32 %s26, %s38
      %s68 = ssub.s32 %s27, %s34
      %s69 = sor.u32 %s67, %s68
      %p70 = scmp.eq.s32.totalorder %s69, 0
      %s72 = sadd.s32 %s71, 1
      %s73 = scalar_select %p70, %s71, %s72
      %p76 = pneg %p70
      %p77 = scmp.eq.s32.totalorder %s19, 1
      %p78 = por %p76, %p77
      %p79 = scmp.ne.s32.totalorder %s71, %s74
      %p80 = scmp.eq.s32.totalorder %s19, 0
      %p81 = por %p79, %p80
      %p82 = scmp.ne.s32.totalorder %s71, %s74
      %p83 = scmp.eq.s32.totalorder %s24, 1
      %p84 = por %p82, %p83
      %p85 = scmp.ne.s32.totalorder %s74, %s75
      %p86 = scmp.eq.s32.totalorder %s24, 0
      %p87 = por %p85, %p86
      %p88 = scmp.ne.s32.totalorder %s74, %s75
      %p89 = scmp.eq.s32.totalorder %s25, 1
      %p90 = por %p88, %p89
      %p92 = scmp.ne.s32.totalorder %s75, %s91
      %p93 = scmp.eq.s32.totalorder %s25, 0
      %p94 = por %p92, %p93
      %s96 = sadd.s32 %s95, 1
      %p99 = scmp.eq.s32.totalorder %s19, 1
      %p100 = scmp.ne.s32.totalorder %s95, %s97
      %p101 = scmp.eq.s32.totalorder %s19, 0
      %p102 = por %p100, %p101
      %p103 = scmp.ne.s32.totalorder %s95, %s97
      %p104 = scmp.eq.s32.totalorder %s24, 1
      %p105 = por %p103, %p104
      %p106 = scmp.ne.s32.totalorder %s97, %s98
      %p107 = scmp.eq.s32.totalorder %s24, 0
      %p108 = por %p106, %p107
      %p109 = scmp.ne.s32.totalorder %s97, %s98
      %p110 = scmp.eq.s32.totalorder %s25, 1
      %p111 = por %p109, %p110
      %p113 = scmp.ne.s32.totalorder %s98, %s112
      %p114 = scmp.eq.s32.totalorder %s25, 0
      %p115 = por %p113, %p114
      %s117 = sadd.s32 %s116, 1
      %p120 = scmp.eq.s32.totalorder %s19, 1
      %p121 = scmp.ne.s32.totalorder %s116, %s118
      %p122 = scmp.eq.s32.totalorder %s19, 0
      %p123 = por %p121, %p122
      %p124 = scmp.ne.s32.totalorder %s116, %s118
      %p125 = scmp.eq.s32.totalorder %s24, 1
      %p126 = por %p124, %p125
      %p127 = scmp.ne.s32.totalorder %s118, %s119
      %p128 = scmp.eq.s32.totalorder %s24, 0
      %p129 = por %p127, %p128
      %p130 = scmp.ne.s32.totalorder %s118, %s119
      %p131 = scmp.eq.s32.totalorder %s25, 1
      %p132 = por %p130, %p131
      %p134 = scmp.ne.s32.totalorder %s119, %s133
      %p135 = scmp.eq.s32.totalorder %s25, 0
      %p136 = por %p134, %p135
      %s138 = sadd.s32 %s137, 1
      %p141 = scmp.eq.s32.totalorder %s19, 1
      %p142 = scmp.ne.s32.totalorder %s137, %s139
      %p143 = scmp.eq.s32.totalorder %s19, 0
      %p144 = por %p142, %p143
      %p145 = scmp.ne.s32.totalorder %s137, %s139
      %p146 = scmp.eq.s32.totalorder %s24, 1
      %p147 = por %p145, %p146
      %p148 = scmp.ne.s32.totalorder %s139, %s140
      %p149 = scmp.eq.s32.totalorder %s24, 0
      %p150 = por %p148, %p149
      %p151 = scmp.ne.s32.totalorder %s139, %s140
      %p152 = scmp.eq.s32.totalorder %s25, 1
      %p153 = por %p151, %p152
      %p155 = scmp.ne.s32.totalorder %s140, %s154
      %p156 = scmp.eq.s32.totalorder %s25, 0
      %p157 = por %p155, %p156
      %s159 = sadd.s32 %s158, 1
      %p162 = scmp.eq.s32.totalorder %s19, 1
      %p163 = scmp.ne.s32.totalorder %s158, %s160
      %p164 = scmp.eq.s32.totalorder %s19, 0
      %p165 = por %p163, %p164
      %p166 = scmp.ne.s32.totalorder %s158, %s160
      %p167 = scmp.eq.s32.totalorder %s24, 1
      %p168 = por %p166, %p167
      %p169 = scmp.ne.s32.totalorder %s160, %s161
      %p170 = scmp.eq.s32.totalorder %s24, 0
      %p171 = por %p169, %p170
      %p172 = scmp.ne.s32.totalorder %s160, %s161
      %p173 = scmp.eq.s32.totalorder %s25, 1
      %p174 = por %p172, %p173
      %p176 = scmp.ne.s32.totalorder %s161, %s175
      %p177 = scmp.eq.s32.totalorder %s25, 0
      %p178 = por %p176, %p177
      %s180 = sadd.s32 %s179, 1
      %p183 = scmp.eq.s32.totalorder %s19, 1
      %p184 = scmp.ne.s32.totalorder %s179, %s181
      %p185 = scmp.eq.s32.totalorder %s19, 0
      %p186 = por %p184, %p185
      %p187 = scmp.ne.s32.totalorder %s179, %s181
      %p188 = scmp.eq.s32.totalorder %s24, 1
      %p189 = por %p187, %p188
      %p190 = scmp.ne.s32.totalorder %s181, %s182
      %p191 = scmp.eq.s32.totalorder %s24, 0
      %p192 = por %p190, %p191
      %p193 = scmp.ne.s32.totalorder %s181, %s182
      %p194 = scmp.eq.s32.totalorder %s25, 1
      %p195 = por %p193, %p194
      %p197 = scmp.ne.s32.totalorder %s182, %s196
      %p198 = scmp.eq.s32.totalorder %s25, 0
      %p199 = por %p197, %p198
      %s201 = sadd.s32 %s200, 1
      %p204 = scmp.eq.s32.totalorder %s19, 1
      %p205 = scmp.ne.s32.totalorder %s200, %s202
      %p206 = scmp.eq.s32.totalorder %s19, 0
      %p207 = por %p205, %p206
      %p208 = scmp.ne.s32.totalorder %s200, %s202
      %p209 = scmp.eq.s32.totalorder %s24, 1
      %p210 = por %p208, %p209
      %p211 = scmp.ne.s32.totalorder %s202, %s203
      %p212 = scmp.eq.s32.totalorder %s24, 0
      %p213 = por %p211, %p212
      %p214 = scmp.ne.s32.totalorder %s202, %s203
      %p215 = scmp.eq.s32.totalorder %s25, 1
      %p216 = por %p214, %p215
      %p218 = scmp.ne.s32.totalorder %s203, %s217
      %p219 = scmp.eq.s32.totalorder %s25, 0
      %p220 = por %p218, %p219
      %s222 = sadd.s32 %s221, 1
      %p225 = scmp.eq.s32.totalorder %s19, 1
      %p226 = scmp.ne.s32.totalorder %s221, %s223
      %p227 = scmp.eq.s32.totalorder %s19, 0
      %p228 = por %p226, %p227
      %p229 = scmp.ne.s32.totalorder %s221, %s223
      %p230 = scmp.eq.s32.totalorder %s24, 1
      %p231 = por %p229, %p230
      %p232 = scmp.ne.s32.totalorder %s223, %s224
      %p233 = scmp.eq.s32.totalorder %s24, 0
      %p234 = por %p232, %p233
      %p235 = scmp.ne.s32.totalorder %s223, %s224
      %p236 = scmp.eq.s32.totalorder %s25, 1
      %p237 = por %p235, %p236
      %p239 = scmp.ne.s32.totalorder %s224, %s238
      %p240 = scmp.eq.s32.totalorder %s25, 0
      %p241 = por %p239, %p240
      %s243 = sadd.s32 %s242, 1
      %p246 = scmp.eq.s32.totalorder %s19, 1
      %p247 = scmp.ne.s32.totalorder %s242, %s244
      %p248 = scmp.eq.s32.totalorder %s19, 0
      %p249 = por %p247, %p248
      %p250 = scmp.ne.s32.totalorder %s242, %s244
      %p251 = scmp.eq.s32.totalorder %s24, 1
      %p252 = por %p250, %p251
      %p253 = scmp.ne.s32.totalorder %s244, %s245
      %p254 = scmp.eq.s32.totalorder %s24, 0
      %p255 = por %p253, %p254
      %p256 = scmp.ne.s32.totalorder %s244, %s245
      %p257 = scmp.eq.s32.totalorder %s25, 1
      %p258 = por %p256, %p257
      %p260 = scmp.ne.s32.totalorder %s245, %s259
      %p261 = scmp.eq.s32.totalorder %s25, 0
      %p262 = por %p260, %p261
      %s263 = ssub.s32 %s26, %s38
      %s264 = ssub.s32 %s27, %s34
      %s265 = sor.u32 %s263, %s264
      %p266 = scmp.eq.s32.totalorder %s265, 0
      %s268 = sadd.s32 %s267, 1
      %s269 = scalar_select %p266, %s267, %s268
      %p272 = pneg %p266
      %p273 = scmp.eq.s32.totalorder %s19, 1
      %p274 = por %p272, %p273
      %p275 = scmp.ne.s32.totalorder %s267, %s270
      %p276 = scmp.eq.s32.totalorder %s19, 0
      %p277 = por %p275, %p276
      %p278 = scmp.ne.s32.totalorder %s267, %s270
      %p279 = scmp.eq.s32.totalorder %s24, 1
      %p280 = por %p278, %p279
      %p281 = scmp.ne.s32.totalorder %s270, %s271
      %p282 = scmp.eq.s32.totalorder %s24, 0
      %p283 = por %p281, %p282
      %p284 = scmp.ne.s32.totalorder %s270, %s271
      %p285 = scmp.eq.s32.totalorder %s25, 1
      %p286 = por %p284, %p285
      %p288 = scmp.ne.s32.totalorder %s271, %s287
      %p289 = scmp.eq.s32.totalorder %s25, 0
      %p290 = por %p288, %p289
      %p291 = scmp.le.s32.totalorder 1, %s19
      %p292 = scmp.lt.s32.totalorder %s19, 3
      %p293 = pnand %p291, %p292
      %p294 = pneg %p293
      // Predicated region
      $region9: #{encoder_block.5} parent=5 // pred_check
        _
      $region10: #{encoder_block.5} parent=5 // pred_check_branch
        %296 = sbr.rel (%p293) target = $region12
      $region11: #{encoder_block.5} parent=5 // pred_region
        %s297 = ssub.s32 %s19, 1
        // Predicated region
        $region13: #{encoder_block.5} parent=11 // pred_check
          %p298 = pneg %p108
        $region14: #{encoder_block.5} parent=11 // pred_check_branch
          %300 = sbr.rel (%p298) target = $region16
        $region15: #{encoder_block.5} parent=11 // pred_region
          _
        $region16: #{encoder_block.5} parent=11 // pred_fallthru
          _
        // Predicated region
        $region17: #{encoder_block.5} parent=11 // pred_check
          %p301 = pneg %p129
        $region18: #{encoder_block.5} parent=11 // pred_check_branch
          %303 = sbr.rel (%p301) target = $region20
        $region19: #{encoder_block.5} parent=11 // pred_region
          _
        $region20: #{encoder_block.5} parent=11 // pred_fallthru
          _
        // Predicated region
        $region21: #{encoder_block.5} parent=11 // pred_check
          %p304 = pneg %p150
        $region22: #{encoder_block.5} parent=11 // pred_check_branch
          %306 = sbr.rel (%p304) target = $region24
        $region23: #{encoder_block.5} parent=11 // pred_region
          _
        $region24: #{encoder_block.5} parent=11 // pred_fallthru
          _
        // Predicated region
        $region25: #{encoder_block.5} parent=11 // pred_check
          %p307 = pneg %p171
        $region26: #{encoder_block.5} parent=11 // pred_check_branch
          %309 = sbr.rel (%p307) target = $region28
        $region27: #{encoder_block.5} parent=11 // pred_region
          _
        $region28: #{encoder_block.5} parent=11 // pred_fallthru
          _
        // Predicated region
        $region29: #{encoder_block.5} parent=11 // pred_check
          %p310 = pneg %p192
        $region30: #{encoder_block.5} parent=11 // pred_check_branch
          %312 = sbr.rel (%p310) target = $region32
        $region31: #{encoder_block.5} parent=11 // pred_region
          _
        $region32: #{encoder_block.5} parent=11 // pred_fallthru
          _
        // Predicated region
        $region33: #{encoder_block.5} parent=11 // pred_check
          %p313 = pneg %p213
        $region34: #{encoder_block.5} parent=11 // pred_check_branch
          %315 = sbr.rel (%p313) target = $region36
        $region35: #{encoder_block.5} parent=11 // pred_region
          _
        $region36: #{encoder_block.5} parent=11 // pred_fallthru
          _
        // Predicated region
        $region37: #{encoder_block.5} parent=11 // pred_check
          %p316 = pneg %p234
        $region38: #{encoder_block.5} parent=11 // pred_check_branch
          %318 = sbr.rel (%p316) target = $region40
        $region39: #{encoder_block.5} parent=11 // pred_region
          _
        $region40: #{encoder_block.5} parent=11 // pred_fallthru
          _
        // Predicated region
        $region41: #{encoder_block.5} parent=11 // pred_check
          %p319 = pneg %p255
        $region42: #{encoder_block.5} parent=11 // pred_check_branch
          %321 = sbr.rel (%p319) target = $region44
        $region43: #{encoder_block.5} parent=11 // pred_region
          _
        $region44: #{encoder_block.5} parent=11 // pred_fallthru
          _
      $region12: #{encoder_block.5} parent=5 // pred_fallthru
        _
      %p322 = scmp.lt.s32.totalorder %s19, 2
      // Predicated region
      $region45: #{encoder_block.5} parent=5 // pred_check
        %p323 = pneg %p322
      $region46: #{encoder_block.5} parent=5 // pred_check_branch
        %325 = sbr.rel (%p323) target = $region48
      $region47: #{encoder_block.5} parent=5 // pred_region
        // Predicated region
        $region49: #{encoder_block.5} parent=47 // pred_check
          %p326 = pneg %p53
        $region50: #{encoder_block.5} parent=47 // pred_check_branch
          %328 = sbr.rel (%p326) target = $region52
        $region51: #{encoder_block.5} parent=47 // pred_region
          %s329 = smul.u32 2, %s27
          %p330 = scmp.lt.s32.totalorder %s26, 1
          %s331 = scalar_select %p330, %s26, 1
          %p332 = scmp.lt.s32.totalorder %s329, 1
          %s333 = scalar_select %p332, %s329, 1
          %s334 = smul.addr %s333, 2
          %s335 = smul.addr %s331, 4
          %s336 = sadd.s32 %s334, %s335
          %s337 = smul.addr %s336, 4
          %s338 = scalar_lea.vmem %s0, %s337
          %s339 = smul.u32 2, %s27
        $region52: #{encoder_block.5} parent=47 // pred_fallthru
          _
        // Predicated region
        $region53: #{encoder_block.5} parent=47 // pred_check
          %p340 = pneg %p81
        $region54: #{encoder_block.5} parent=47 // pred_check_branch
          %342 = sbr.rel (%p340) target = $region56
        $region55: #{encoder_block.5} parent=47 // pred_region
          %s343 = smul.u32 2, %s27
          %p344 = scmp.lt.s32.totalorder %s26, 1
          %s345 = scalar_select %p344, %s26, 1
          %p346 = scmp.lt.s32.totalorder %s343, 1
          %s347 = scalar_select %p346, %s343, 1
          %s348 = smul.addr %s347, 2
          %s349 = smul.addr %s345, 4
          %s350 = sadd.s32 %s348, %s349
          %s351 = smul.addr %s350, 8
          %s352 = scalar_lea.vmem %s1, %s351
          %s353 = smul.u32 2, %s27
        $region56: #{encoder_block.5} parent=47 // pred_fallthru
          _
      $region48: #{encoder_block.5} parent=5 // pred_fallthru
        _
      %p354 = scmp.le.s32.totalorder 1, %s19
      %p355 = scmp.lt.s32.totalorder %s19, 3
      %p356 = pnand %p354, %p355
      %p357 = pneg %p356
      // Predicated region
      $region57: #{encoder_block.5} parent=5 // pred_check
        _
      $region58: #{encoder_block.5} parent=5 // pred_check_branch
        %359 = sbr.rel (%p356) target = $region60
      $region59: #{encoder_block.5} parent=5 // pred_region
        %s360 = ssub.s32 %s19, 1
        %s361 = smul.u32 2, %s29
        %p362 = scmp.lt.s32.totalorder %s28, 1
        %s363 = scalar_select %p362, %s28, 1
        %p364 = scmp.lt.s32.totalorder %s361, 1
        %s365 = scalar_select %p364, %s361, 1
        %s366 = smul.addr %s365, 2
        %s367 = smul.addr %s363, 4
        %s368 = sadd.s32 %s366, %s367
        %s369 = smul.addr %s368, 4
        %s370 = scalar_lea.vmem %s0, %s369
        %p371 = pneg %p59
        %p372 = pneg %p56
        %s373 = smul.u32 2, %s29
        %p374 = scmp.lt.s32.totalorder %s28, 1
        %s375 = scalar_select %p374, %s28, 1
        %p376 = scmp.lt.s32.totalorder %s373, 1
        %s377 = scalar_select %p376, %s373, 1
        %s378 = smul.addr %s377, 2
        %s379 = smul.addr %s375, 4
        %s380 = sadd.s32 %s378, %s379
        %s381 = smul.addr %s380, 8
        %s382 = scalar_lea.vmem %s1, %s381
        %p383 = pneg %p87
        %p384 = pneg %p84
        %p385 = pneg %p108
        %p386 = pneg %p105
        %p387 = pneg %p129
        %p388 = pneg %p126
        %p389 = pneg %p150
        %p390 = pneg %p147
        %p391 = pneg %p171
        %p392 = pneg %p168
        %p393 = pneg %p192
        %p394 = pneg %p189
        %p395 = pneg %p213
        %p396 = pneg %p210
        %p397 = pneg %p234
        %p398 = pneg %p231
        %p399 = pneg %p255
        %p400 = pneg %p252
        %p401 = pneg %p283
        %p402 = pneg %p280
        %s403 = sand.u32 %s270, 1
        %s404 = scalar_lea.sflag [#allocation3], %s403
        %s405 = sand.u32 %s270, 1
        %s406 = smul.addr %s405, 32
        %s407 = scalar_lea.vmem [#allocation2], %s406
        %s408 = smul.u32 2, %s29
        %p409 = scmp.lt.s32.totalorder %s28, 1
        %s410 = scalar_select %p409, %s28, 1
        %p411 = scmp.lt.s32.totalorder %s408, 1
        %s412 = scalar_select %p411, %s408, 1
        %s413 = smul.addr %s412, 2
        %s414 = smul.addr %s410, 4
        %s415 = sadd.s32 %s413, %s414
        %s416 = smul.addr %s415, 4
        %s417 = scalar_lea.vmem %s0, %s416
        %s418 = smul.u32 2, %s29
        %s419 = smul.u32 2, %s29
        %p420 = scmp.lt.s32.totalorder %s28, 1
        %s421 = scalar_select %p420, %s28, 1
        %p422 = scmp.lt.s32.totalorder %s419, 1
        %s423 = scalar_select %p422, %s419, 1
        %s424 = smul.addr %s423, 2
        %s425 = smul.addr %s421, 4
        %s426 = sadd.s32 %s424, %s425
        %s427 = smul.addr %s426, 8
        %s428 = scalar_lea.vmem %s1, %s427
        %s429 = smul.u32 2, %s29
        %s430 = smul.u32 2, %s29
        %v431 = vld [vmem:[%s417] sm:$0xff]
        %v432 = vld [vmem:[%s417 + $0x8] sm:$0xff]
        %v433 = vld [vmem:[%s2] sm:$0xff]
        %v434 = vld [vmem:[%s2 + $0x8] sm:$0xff]
        %v435 = vld [vmem:[%s2 + $0x10] sm:$0xff]
        %v436 = vld [vmem:[%s2 + $0x18] sm:$0xff]
        %v437 = vld [vmem:[%s2 + $0x20] sm:$0xff]
        %v438 = vld [vmem:[%s2 + $0x28] sm:$0xff]
        %v439 = vld [vmem:[%s2 + $0x30] sm:$0xff]
        %v440 = vld [vmem:[%s2 + $0x38] sm:$0xff]
        %v441 = vld [vmem:[%s2 + $0x40] sm:$0xff]
        %v442 = vld [vmem:[%s2 + $0x48] sm:$0xff]
        %v443 = vld [vmem:[%s2 + $0x50] sm:$0xff]
        %v444 = vld [vmem:[%s2 + $0x58] sm:$0xff]
        %v445 = vld [vmem:[%s2 + $0x60] sm:$0xff]
        %v446 = vld [vmem:[%s2 + $0x68] sm:$0xff]
        %v447 = vld [vmem:[%s2 + $0x70] sm:$0xff]
        %v448 = vld [vmem:[%s2 + $0x78] sm:$0xff]
        %v449 = vld [vmem:[%s2 + $0x80] sm:$0xff]
        %v450 = vld [vmem:[%s2 + $0x88] sm:$0xff]
        %v451 = vld [vmem:[%s2 + $0x90] sm:$0xff]
        %v452 = vld [vmem:[%s2 + $0x98] sm:$0xff]
        %v453 = vld [vmem:[%s2 + $0xa0] sm:$0xff]
        %v454 = vld [vmem:[%s2 + $0xa8] sm:$0xff]
        %v455 = vld [vmem:[%s2 + $0xb0] sm:$0xff]
        %v456 = vld [vmem:[%s2 + $0xb8] sm:$0xff]
        %v457 = vld [vmem:[%s2 + $0xc0] sm:$0xff]
        %v458 = vld [vmem:[%s2 + $0xc8] sm:$0xff]
        %v459 = vld [vmem:[%s2 + $0xd0] sm:$0xff]
        %v460 = vld [vmem:[%s2 + $0xd8] sm:$0xff]
        %v461 = vld [vmem:[%s2 + $0xe0] sm:$0xff]
        %v462 = vld [vmem:[%s2 + $0xe8] sm:$0xff]
        %v463 = vld [vmem:[%s2 + $0xf0] sm:$0xff]
        %v464 = vld [vmem:[%s2 + $0xf8] sm:$0xff]
        %v465 = vld [vmem:[%s3] sm:$0x3]
        %v467 = vperm.slane %v465, 0
        %v468 = vperm.slane %v465, 1
        %v473 = vunpack.c.l.b16 %v431
        %v474 = vunpack.c.h.b16 %v431
        %v475 = vunpack.c.l.b16 %v432
        %v476 = vunpack.c.h.b16 %v432
        %v477 = vpack.c.b16 %v475, %v473
        %v478 = vpack.c.b16 %v476, %v474
        %v513 = vunpack.c.l.b16 %v433
        %v514 = vunpack.c.h.b16 %v433
        %v515 = vunpack.c.l.b16 %v434
        %v516 = vunpack.c.h.b16 %v434
        %v517 = vunpack.c.l.b16 %v435
        %v518 = vunpack.c.h.b16 %v435
        %v519 = vunpack.c.l.b16 %v436
        %v520 = vunpack.c.h.b16 %v436
        %v521 = vunpack.c.l.b16 %v437
        %v522 = vunpack.c.h.b16 %v437
        %v523 = vunpack.c.l.b16 %v438
        %v524 = vunpack.c.h.b16 %v438
        %v525 = vunpack.c.l.b16 %v439
        %v526 = vunpack.c.h.b16 %v439
        %v527 = vunpack.c.l.b16 %v440
        %v528 = vunpack.c.h.b16 %v440
        %v529 = vunpack.c.l.b16 %v441
        %v530 = vunpack.c.h.b16 %v441
        %v531 = vunpack.c.l.b16 %v442
        %v532 = vunpack.c.h.b16 %v442
        %v533 = vunpack.c.l.b16 %v443
        %v534 = vunpack.c.h.b16 %v443
        %v535 = vunpack.c.l.b16 %v444
        %v536 = vunpack.c.h.b16 %v444
        %v537 = vunpack.c.l.b16 %v445
        %v538 = vunpack.c.h.b16 %v445
        %v539 = vunpack.c.l.b16 %v446
        %v540 = vunpack.c.h.b16 %v446
        %v541 = vunpack.c.l.b16 %v447
        %v542 = vunpack.c.h.b16 %v447
        %v543 = vunpack.c.l.b16 %v448
        %v544 = vunpack.c.h.b16 %v448
        %v545 = vunpack.c.l.b16 %v449
        %v546 = vunpack.c.h.b16 %v449
        %v547 = vunpack.c.l.b16 %v450
        %v548 = vunpack.c.h.b16 %v450
        %v549 = vunpack.c.l.b16 %v451
        %v550 = vunpack.c.h.b16 %v451
        %v551 = vunpack.c.l.b16 %v452
        %v552 = vunpack.c.h.b16 %v452
        %v553 = vunpack.c.l.b16 %v453
        %v554 = vunpack.c.h.b16 %v453
        %v555 = vunpack.c.l.b16 %v454
        %v556 = vunpack.c.h.b16 %v454
        %v557 = vunpack.c.l.b16 %v455
        %v558 = vunpack.c.h.b16 %v455
        %v559 = vunpack.c.l.b16 %v456
        %v560 = vunpack.c.h.b16 %v456
        %v561 = vunpack.c.l.b16 %v457
        %v562 = vunpack.c.h.b16 %v457
        %v563 = vunpack.c.l.b16 %v458
        %v564 = vunpack.c.h.b16 %v458
        %v565 = vunpack.c.l.b16 %v459
        %v566 = vunpack.c.h.b16 %v459
        %v567 = vunpack.c.l.b16 %v460
        %v568 = vunpack.c.h.b16 %v460
        %v569 = vunpack.c.l.b16 %v461
        %v570 = vunpack.c.h.b16 %v461
        %v571 = vunpack.c.l.b16 %v462
        %v572 = vunpack.c.h.b16 %v462
        %v573 = vunpack.c.l.b16 %v463
        %v574 = vunpack.c.h.b16 %v463
        %v575 = vunpack.c.l.b16 %v464
        %v576 = vunpack.c.h.b16 %v464
        %v577 = vpack.c.b16 %v515, %v513
        %v578 = vpack.c.b16 %v516, %v514
        %v579 = vpack.c.b16 %v519, %v517
        %v580 = vpack.c.b16 %v520, %v518
        %v581 = vpack.c.b16 %v523, %v521
        %v582 = vpack.c.b16 %v524, %v522
        %v583 = vpack.c.b16 %v527, %v525
        %v584 = vpack.c.b16 %v528, %v526
        %v585 = vpack.c.b16 %v531, %v529
        %v586 = vpack.c.b16 %v532, %v530
        %v587 = vpack.c.b16 %v535, %v533
        %v588 = vpack.c.b16 %v536, %v534
        %v589 = vpack.c.b16 %v539, %v537
        %v590 = vpack.c.b16 %v540, %v538
        %v591 = vpack.c.b16 %v543, %v541
        %v592 = vpack.c.b16 %v544, %v542
        %v593 = vpack.c.b16 %v547, %v545
        %v594 = vpack.c.b16 %v548, %v546
        %v595 = vpack.c.b16 %v551, %v549
        %v596 = vpack.c.b16 %v552, %v550
        %v597 = vpack.c.b16 %v555, %v553
        %v598 = vpack.c.b16 %v556, %v554
        %v599 = vpack.c.b16 %v559, %v557
        %v600 = vpack.c.b16 %v560, %v558
        %v601 = vpack.c.b16 %v563, %v561
        %v602 = vpack.c.b16 %v564, %v562
        %v603 = vpack.c.b16 %v567, %v565
        %v604 = vpack.c.b16 %v568, %v566
        %v605 = vpack.c.b16 %v571, %v569
        %v606 = vpack.c.b16 %v572, %v570
        %v607 = vpack.c.b16 %v575, %v573
        %v608 = vpack.c.b16 %v576, %v574
        %641 = vmatpush.bf16.xpose.msra.mxu0 %v591
        %642 = vmatpush.bf16.xpose.msra.mxu0 %v589
        %643 = vmatpush.bf16.xpose.msra.mxu0 %v587
        %644 = vmatpush.bf16.xpose.msra.mxu0 %v585
        %645 = vmatpush.bf16.xpose.msra.mxu0 %v583
        %646 = vmatpush.bf16.xpose.msra.mxu0 %v581
        %647 = vmatpush.bf16.xpose.msra.mxu0 %v579
        %648 = vmatpush.bf16.xpose.msra.mxu0 %v577
        %649 = vmatmul.bf16.gmra.mxu0 %v477
        %v650 = vpop.f32.mrf.mxu0
        %v651 = vadd.f32 %v467, %v650
        %v652 = vpop.f32.mrf.mxu0
        %v653 = vadd.f32 %v467, %v652
        %654 = vdwg.mxu0
        %655 = vmatpush.bf16.xpose.msra.mxu0 %v592
        %656 = vmatpush.bf16.xpose.msra.mxu0 %v590
        %657 = vmatpush.bf16.xpose.msra.mxu0 %v588
        %658 = vmatpush.bf16.xpose.msra.mxu0 %v586
        %659 = vmatpush.bf16.xpose.msra.mxu0 %v584
        %660 = vmatpush.bf16.xpose.msra.mxu0 %v582
        %661 = vmatpush.bf16.xpose.msra.mxu0 %v580
        %662 = vmatpush.bf16.xpose.msra.mxu0 %v578
        %663 = vmatmul.bf16.gmra.mxu0 %v478
        %v664 = vpop.f32.mrf.mxu0
        %v665 = vadd.f32 %v651, %v664
        %v666 = vpop.f32.mrf.mxu0
        %v667 = vadd.f32 %v653, %v666
        %668 = vdwg.mxu0
        %669 = vmatpush.bf16.xpose.msra.mxu0 %v607
        %670 = vmatpush.bf16.xpose.msra.mxu0 %v605
        %671 = vmatpush.bf16.xpose.msra.mxu0 %v603
        %672 = vmatpush.bf16.xpose.msra.mxu0 %v601
        %673 = vmatpush.bf16.xpose.msra.mxu0 %v599
        %674 = vmatpush.bf16.xpose.msra.mxu0 %v597
        %675 = vmatpush.bf16.xpose.msra.mxu0 %v595
        %676 = vmatpush.bf16.xpose.msra.mxu0 %v593
        %677 = vmatmul.bf16.gmra.mxu0 %v477
        %v678 = vpop.f32.mrf.mxu0
        %v679 = vadd.f32 %v468, %v678
        %v680 = vpop.f32.mrf.mxu0
        %v681 = vadd.f32 %v468, %v680
        %682 = vdwg.mxu0
        %683 = vmatpush.bf16.xpose.msra.mxu0 %v608
        %684 = vmatpush.bf16.xpose.msra.mxu0 %v606
        %685 = vmatpush.bf16.xpose.msra.mxu0 %v604
        %686 = vmatpush.bf16.xpose.msra.mxu0 %v602
        %687 = vmatpush.bf16.xpose.msra.mxu0 %v600
        %688 = vmatpush.bf16.xpose.msra.mxu0 %v598
        %689 = vmatpush.bf16.xpose.msra.mxu0 %v596
        %690 = vmatpush.bf16.xpose.msra.mxu0 %v594
        %691 = vmatmul.bf16.gmra.mxu0 %v478
        %v692 = vpop.f32.mrf.mxu0
        %v693 = vadd.f32 %v679, %v692
        %v694 = vpop.f32.mrf.mxu0
        %v695 = vadd.f32 %v681, %v694
        %696 = vdwg.mxu0
        %v697 = vld [vmem:[%s428] sm:$0xff]
        %v698 = vld [vmem:[%s428 + $0x8] sm:$0xff]
        %v699 = vld [vmem:[%s428 + $0x10] sm:$0xff]
        %v700 = vld [vmem:[%s428 + $0x18] sm:$0xff]
        %v701 = vadd.f32 %v665, %v697
        %v702 = vadd.f32 %v693, %v698
        %v703 = vadd.f32 %v667, %v699
        %v704 = vadd.f32 %v695, %v700
        %v705 = vld [vmem:[%s4] sm:$0x3]
        %v706 = vld [vmem:[%s5] sm:$0x3]
        %v707 = vadd.f32 %v701, %v702
        %708 = vadd.xlane.f32.xlu0 %v707
        %v709 = vpop.xlane.xlu0 %708
        %v710 = vadd.f32 %v703, %v704
        %711 = vadd.xlane.f32.xlu0 %v710
        %v712 = vpop.xlane.xlu0 %711
        %v713 = vrcp.pop 256.0
        %v714 = vmul.f32 256.0, %v713
        %v715 = vsub.f32 1.0, %v714
        %v716 = vmul.f32 %v713, %v715
        %v717 = vadd.f32 %v713, %v716
        %vm718 = vweird.f32 %v713
        %v719 = vsel %vm718, %v713, %v717
        %v720 = vmul.f32 %v709, %v719
        %v721 = vmul.f32 %v712, %v719
        %v722 = vsub.f32 %v701, %v720
        %v723 = vsub.f32 %v702, %v720
        %v724 = vsub.f32 %v703, %v721
        %v725 = vsub.f32 %v704, %v721
        %v726 = vmul.f32 %v722, %v722
        %v727 = vmul.f32 %v723, %v723
        %v728 = vmul.f32 %v724, %v724
        %v729 = vmul.f32 %v725, %v725
        %v730 = vadd.f32 %v726, %v727
        %731 = vadd.xlane.f32.xlu0 %v730
        %v732 = vpop.xlane.xlu0 %731
        %v733 = vadd.f32 %v728, %v729
        %734 = vadd.xlane.f32.xlu0 %v733
        %v735 = vpop.xlane.xlu0 %734
        %v736 = vmul.f32 %v732, %v719
        %v737 = vmul.f32 %v735, %v719
        %v738 = vadd.f32 %v736, 1e-05
        %v739 = vadd.f32 %v737, 1e-05
        %v740 = vrsqrt.pop %v738
        %v741 = vmul.f32 %v740, %v738
        %v742 = vmul.f32 %v741, %v740
        %v743 = vmul.f32 0.5, %v742
        %v744 = vsub.f32 1.5, %v743
        %v745 = vmul.f32 %v740, %v744
        %vm746 = vweird.f32 %v738
        %vm747 = vweird.f32 %v740
        %vm748 = vmor %vm746, %vm747
        %v749 = vsel %vm748, %v740, %v745
        %v750 = vrsqrt.pop %v739
        %v751 = vmul.f32 %v750, %v739
        %v752 = vmul.f32 %v751, %v750
        %v753 = vmul.f32 0.5, %v752
        %v754 = vsub.f32 1.5, %v753
        %v755 = vmul.f32 %v750, %v754
        %vm756 = vweird.f32 %v739
        %vm757 = vweird.f32 %v750
        %vm758 = vmor %vm756, %vm757
        %v759 = vsel %vm758, %v750, %v755
        %v760 = vmul.f32 %v722, %v749
        %v761 = vmul.f32 %v723, %v749
        %v762 = vmul.f32 %v724, %v759
        %v763 = vmul.f32 %v725, %v759
        %v765 = vperm.slane %v705, 0
        %v766 = vperm.slane %v705, 1
        %v769 = vmul.f32 %v760, %v765
        %v770 = vmul.f32 %v761, %v766
        %v771 = vmul.f32 %v762, %v765
        %v772 = vmul.f32 %v763, %v766
        %v774 = vperm.slane %v706, 0
        %v775 = vperm.slane %v706, 1
        %v778 = vadd.f32 %v769, %v774
        %v779 = vadd.f32 %v770, %v775
        %v780 = vadd.f32 %v771, %v774
        %v781 = vadd.f32 %v772, %v775
        %v782 = vpack.c.bf16 %v780, %v778
        %v783 = vpack.c.bf16 %v781, %v779
        %v784 = vld [vmem:[%s6] sm:$0xff]
        %v785 = vld [vmem:[%s6 + $0x8] sm:$0xff]
        %v786 = vld [vmem:[%s6 + $0x10] sm:$0xff]
        %v787 = vld [vmem:[%s6 + $0x18] sm:$0xff]
        %v788 = vld [vmem:[%s6 + $0x20] sm:$0xff]
        %v789 = vld [vmem:[%s6 + $0x28] sm:$0xff]
        %v790 = vld [vmem:[%s6 + $0x30] sm:$0xff]
        %v791 = vld [vmem:[%s6 + $0x38] sm:$0xff]
        %v792 = vld [vmem:[%s6 + $0x40] sm:$0xff]
        %v793 = vld [vmem:[%s6 + $0x48] sm:$0xff]
        %v794 = vld [vmem:[%s6 + $0x50] sm:$0xff]
        %v795 = vld [vmem:[%s6 + $0x58] sm:$0xff]
        %v796 = vld [vmem:[%s6 + $0x60] sm:$0xff]
        %v797 = vld [vmem:[%s6 + $0x68] sm:$0xff]
        %v798 = vld [vmem:[%s6 + $0x70] sm:$0xff]
        %v799 = vld [vmem:[%s6 + $0x78] sm:$0xff]
        %v800 = vld [vmem:[%s6 + $0x80] sm:$0xff]
        %v801 = vld [vmem:[%s6 + $0x88] sm:$0xff]
        %v802 = vld [vmem:[%s6 + $0x90] sm:$0xff]
        %v803 = vld [vmem:[%s6 + $0x98] sm:$0xff]
        %v804 = vld [vmem:[%s6 + $0xa0] sm:$0xff]
        %v805 = vld [vmem:[%s6 + $0xa8] sm:$0xff]
        %v806 = vld [vmem:[%s6 + $0xb0] sm:$0xff]
        %v807 = vld [vmem:[%s6 + $0xb8] sm:$0xff]
        %v808 = vld [vmem:[%s6 + $0xc0] sm:$0xff]
        %v809 = vld [vmem:[%s6 + $0xc8] sm:$0xff]
        %v810 = vld [vmem:[%s6 + $0xd0] sm:$0xff]
        %v811 = vld [vmem:[%s6 + $0xd8] sm:$0xff]
        %v812 = vld [vmem:[%s6 + $0xe0] sm:$0xff]
        %v813 = vld [vmem:[%s6 + $0xe8] sm:$0xff]
        %v814 = vld [vmem:[%s6 + $0xf0] sm:$0xff]
        %v815 = vld [vmem:[%s6 + $0xf8] sm:$0xff]
        %v816 = vld [vmem:[%s6 + $0x100] sm:$0xff]
        %v817 = vld [vmem:[%s6 + $0x108] sm:$0xff]
        %v818 = vld [vmem:[%s6 + $0x110] sm:$0xff]
        %v819 = vld [vmem:[%s6 + $0x118] sm:$0xff]
        %v820 = vld [vmem:[%s6 + $0x120] sm:$0xff]
        %v821 = vld [vmem:[%s6 + $0x128] sm:$0xff]
        %v822 = vld [vmem:[%s6 + $0x130] sm:$0xff]
        %v823 = vld [vmem:[%s6 + $0x138] sm:$0xff]
        %v824 = vld [vmem:[%s6 + $0x140] sm:$0xff]
        %v825 = vld [vmem:[%s6 + $0x148] sm:$0xff]
        %v826 = vld [vmem:[%s6 + $0x150] sm:$0xff]
        %v827 = vld [vmem:[%s6 + $0x158] sm:$0xff]
        %v828 = vld [vmem:[%s6 + $0x160] sm:$0xff]
        %v829 = vld [vmem:[%s6 + $0x168] sm:$0xff]
        %v830 = vld [vmem:[%s6 + $0x170] sm:$0xff]
        %v831 = vld [vmem:[%s6 + $0x178] sm:$0xff]
        %v832 = vld [vmem:[%s6 + $0x180] sm:$0xff]
        %v833 = vld [vmem:[%s6 + $0x188] sm:$0xff]
        %v834 = vld [vmem:[%s6 + $0x190] sm:$0xff]
        %v835 = vld [vmem:[%s6 + $0x198] sm:$0xff]
        %v836 = vld [vmem:[%s6 + $0x1a0] sm:$0xff]
        %v837 = vld [vmem:[%s6 + $0x1a8] sm:$0xff]
        %v838 = vld [vmem:[%s6 + $0x1b0] sm:$0xff]
        %v839 = vld [vmem:[%s6 + $0x1b8] sm:$0xff]
        %v840 = vld [vmem:[%s6 + $0x1c0] sm:$0xff]
        %v841 = vld [vmem:[%s6 + $0x1c8] sm:$0xff]
        %v842 = vld [vmem:[%s6 + $0x1d0] sm:$0xff]
        %v843 = vld [vmem:[%s6 + $0x1d8] sm:$0xff]
        %v844 = vld [vmem:[%s6 + $0x1e0] sm:$0xff]
        %v845 = vld [vmem:[%s6 + $0x1e8] sm:$0xff]
        %v846 = vld [vmem:[%s6 + $0x1f0] sm:$0xff]
        %v847 = vld [vmem:[%s6 + $0x1f8] sm:$0xff]
        %v848 = vld [vmem:[%s7] sm:$0xf]
        %v850 = vperm.slane %v848, 0
        %v851 = vperm.slane %v848, 1
        %v852 = vperm.slane %v848, 2
        %v853 = vperm.slane %v848, 3
        %v922 = vunpack.c.l.b16 %v784
        %v923 = vunpack.c.h.b16 %v784
        %v924 = vunpack.c.l.b16 %v785
        %v925 = vunpack.c.h.b16 %v785
        %v926 = vunpack.c.l.b16 %v786
        %v927 = vunpack.c.h.b16 %v786
        %v928 = vunpack.c.l.b16 %v787
        %v929 = vunpack.c.h.b16 %v787
        %v930 = vunpack.c.l.b16 %v788
        %v931 = vunpack.c.h.b16 %v788
        %v932 = vunpack.c.l.b16 %v789
        %v933 = vunpack.c.h.b16 %v789
        %v934 = vunpack.c.l.b16 %v790
        %v935 = vunpack.c.h.b16 %v790
        %v936 = vunpack.c.l.b16 %v791
        %v937 = vunpack.c.h.b16 %v791
        %v938 = vunpack.c.l.b16 %v792
        %v939 = vunpack.c.h.b16 %v792
        %v940 = vunpack.c.l.b16 %v793
        %v941 = vunpack.c.h.b16 %v793
        %v942 = vunpack.c.l.b16 %v794
        %v943 = vunpack.c.h.b16 %v794
        %v944 = vunpack.c.l.b16 %v795
        %v945 = vunpack.c.h.b16 %v795
        %v946 = vunpack.c.l.b16 %v796
        %v947 = vunpack.c.h.b16 %v796
        %v948 = vunpack.c.l.b16 %v797
        %v949 = vunpack.c.h.b16 %v797
        %v950 = vunpack.c.l.b16 %v798
        %v951 = vunpack.c.h.b16 %v798
        %v952 = vunpack.c.l.b16 %v799
        %v953 = vunpack.c.h.b16 %v799
        %v954 = vunpack.c.l.b16 %v800
        %v955 = vunpack.c.h.b16 %v800
        %v956 = vunpack.c.l.b16 %v801
        %v957 = vunpack.c.h.b16 %v801
        %v958 = vunpack.c.l.b16 %v802
        %v959 = vunpack.c.h.b16 %v802
        %v960 = vunpack.c.l.b16 %v803
        %v961 = vunpack.c.h.b16 %v803
        %v962 = vunpack.c.l.b16 %v804
        %v963 = vunpack.c.h.b16 %v804
        %v964 = vunpack.c.l.b16 %v805
        %v965 = vunpack.c.h.b16 %v805
        %v966 = vunpack.c.l.b16 %v806
        %v967 = vunpack.c.h.b16 %v806
        %v968 = vunpack.c.l.b16 %v807
        %v969 = vunpack.c.h.b16 %v807
        %v970 = vunpack.c.l.b16 %v808
        %v971 = vunpack.c.h.b16 %v808
        %v972 = vunpack.c.l.b16 %v809
        %v973 = vunpack.c.h.b16 %v809
        %v974 = vunpack.c.l.b16 %v810
        %v975 = vunpack.c.h.b16 %v810
        %v976 = vunpack.c.l.b16 %v811
        %v977 = vunpack.c.h.b16 %v811
        %v978 = vunpack.c.l.b16 %v812
        %v979 = vunpack.c.h.b16 %v812
        %v980 = vunpack.c.l.b16 %v813
        %v981 = vunpack.c.h.b16 %v813
        %v982 = vunpack.c.l.b16 %v814
        %v983 = vunpack.c.h.b16 %v814
        %v984 = vunpack.c.l.b16 %v815
        %v985 = vunpack.c.h.b16 %v815
        %v986 = vunpack.c.l.b16 %v816
        %v987 = vunpack.c.h.b16 %v816
        %v988 = vunpack.c.l.b16 %v817
        %v989 = vunpack.c.h.b16 %v817
        %v990 = vunpack.c.l.b16 %v818
        %v991 = vunpack.c.h.b16 %v818
        %v992 = vunpack.c.l.b16 %v819
        %v993 = vunpack.c.h.b16 %v819
        %v994 = vunpack.c.l.b16 %v820
        %v995 = vunpack.c.h.b16 %v820
        %v996 = vunpack.c.l.b16 %v821
        %v997 = vunpack.c.h.b16 %v821
        %v998 = vunpack.c.l.b16 %v822
        %v999 = vunpack.c.h.b16 %v822
        %v1000 = vunpack.c.l.b16 %v823
        %v1001 = vunpack.c.h.b16 %v823
        %v1002 = vunpack.c.l.b16 %v824
        %v1003 = vunpack.c.h.b16 %v824
        %v1004 = vunpack.c.l.b16 %v825
        %v1005 = vunpack.c.h.b16 %v825
        %v1006 = vunpack.c.l.b16 %v826
        %v1007 = vunpack.c.h.b16 %v826
        %v1008 = vunpack.c.l.b16 %v827
        %v1009 = vunpack.c.h.b16 %v827
        %v1010 = vunpack.c.l.b16 %v828
        %v1011 = vunpack.c.h.b16 %v828
        %v1012 = vunpack.c.l.b16 %v829
        %v1013 = vunpack.c.h.b16 %v829
        %v1014 = vunpack.c.l.b16 %v830
        %v1015 = vunpack.c.h.b16 %v830
        %v1016 = vunpack.c.l.b16 %v831
        %v1017 = vunpack.c.h.b16 %v831
        %v1018 = vunpack.c.l.b16 %v832
        %v1019 = vunpack.c.h.b16 %v832
        %v1020 = vunpack.c.l.b16 %v833
        %v1021 = vunpack.c.h.b16 %v833
        %v1022 = vunpack.c.l.b16 %v834
        %v1023 = vunpack.c.h.b16 %v834
        %v1024 = vunpack.c.l.b16 %v835
        %v1025 = vunpack.c.h.b16 %v835
        %v1026 = vunpack.c.l.b16 %v836
        %v1027 = vunpack.c.h.b16 %v836
        %v1028 = vunpack.c.l.b16 %v837
        %v1029 = vunpack.c.h.b16 %v837
        %v1030 = vunpack.c.l.b16 %v838
        %v1031 = vunpack.c.h.b16 %v838
        %v1032 = vunpack.c.l.b16 %v839
        %v1033 = vunpack.c.h.b16 %v839
        %v1034 = vunpack.c.l.b16 %v840
        %v1035 = vunpack.c.h.b16 %v840
        %v1036 = vunpack.c.l.b16 %v841
        %v1037 = vunpack.c.h.b16 %v841
        %v1038 = vunpack.c.l.b16 %v842
        %v1039 = vunpack.c.h.b16 %v842
        %v1040 = vunpack.c.l.b16 %v843
        %v1041 = vunpack.c.h.b16 %v843
        %v1042 = vunpack.c.l.b16 %v844
        %v1043 = vunpack.c.h.b16 %v844
        %v1044 = vunpack.c.l.b16 %v845
        %v1045 = vunpack.c.h.b16 %v845
        %v1046 = vunpack.c.l.b16 %v846
        %v1047 = vunpack.c.h.b16 %v846
        %v1048 = vunpack.c.l.b16 %v847
        %v1049 = vunpack.c.h.b16 %v847
        %v1050 = vpack.c.b16 %v924, %v922
        %v1051 = vpack.c.b16 %v925, %v923
        %v1052 = vpack.c.b16 %v928, %v926
        %v1053 = vpack.c.b16 %v929, %v927
        %v1054 = vpack.c.b16 %v932, %v930
        %v1055 = vpack.c.b16 %v933, %v931
        %v1056 = vpack.c.b16 %v936, %v934
        %v1057 = vpack.c.b16 %v937, %v935
        %v1058 = vpack.c.b16 %v940, %v938
        %v1059 = vpack.c.b16 %v941, %v939
        %v1060 = vpack.c.b16 %v944, %v942
        %v1061 = vpack.c.b16 %v945, %v943
        %v1062 = vpack.c.b16 %v948, %v946
        %v1063 = vpack.c.b16 %v949, %v947
        %v1064 = vpack.c.b16 %v952, %v950
        %v1065 = vpack.c.b16 %v953, %v951
        %v1066 = vpack.c.b16 %v956, %v954
        %v1067 = vpack.c.b16 %v957, %v955
        %v1068 = vpack.c.b16 %v960, %v958
        %v1069 = vpack.c.b16 %v961, %v959
        %v1070 = vpack.c.b16 %v964, %v962
        %v1071 = vpack.c.b16 %v965, %v963
        %v1072 = vpack.c.b16 %v968, %v966
        %v1073 = vpack.c.b16 %v969, %v967
        %v1074 = vpack.c.b16 %v972, %v970
        %v1075 = vpack.c.b16 %v973, %v971
        %v1076 = vpack.c.b16 %v976, %v974
        %v1077 = vpack.c.b16 %v977, %v975
        %v1078 = vpack.c.b16 %v980, %v978
        %v1079 = vpack.c.b16 %v981, %v979
        %v1080 = vpack.c.b16 %v984, %v982
        %v1081 = vpack.c.b16 %v985, %v983
        %v1082 = vpack.c.b16 %v988, %v986
        %v1083 = vpack.c.b16 %v989, %v987
        %v1084 = vpack.c.b16 %v992, %v990
        %v1085 = vpack.c.b16 %v993, %v991
        %v1086 = vpack.c.b16 %v996, %v994
        %v1087 = vpack.c.b16 %v997, %v995
        %v1088 = vpack.c.b16 %v1000, %v998
        %v1089 = vpack.c.b16 %v1001, %v999
        %v1090 = vpack.c.b16 %v1004, %v1002
        %v1091 = vpack.c.b16 %v1005, %v1003
        %v1092 = vpack.c.b16 %v1008, %v1006
        %v1093 = vpack.c.b16 %v1009, %v1007
        %v1094 = vpack.c.b16 %v1012, %v1010
        %v1095 = vpack.c.b16 %v1013, %v1011
        %v1096 = vpack.c.b16 %v1016, %v1014
        %v1097 = vpack.c.b16 %v1017, %v1015
        %v1098 = vpack.c.b16 %v1020, %v1018
        %v1099 = vpack.c.b16 %v1021, %v1019
        %v1100 = vpack.c.b16 %v1024, %v1022
        %v1101 = vpack.c.b16 %v1025, %v1023
        %v1102 = vpack.c.b16 %v1028, %v1026
        %v1103 = vpack.c.b16 %v1029, %v1027
        %v1104 = vpack.c.b16 %v1032, %v1030
        %v1105 = vpack.c.b16 %v1033, %v1031
        %v1106 = vpack.c.b16 %v1036, %v1034
        %v1107 = vpack.c.b16 %v1037, %v1035
        %v1108 = vpack.c.b16 %v1040, %v1038
        %v1109 = vpack.c.b16 %v1041, %v1039
        %v1110 = vpack.c.b16 %v1044, %v1042
        %v1111 = vpack.c.b16 %v1045, %v1043
        %v1112 = vpack.c.b16 %v1048, %v1046
        %v1113 = vpack.c.b16 %v1049, %v1047
        %1178 = vmatpush.bf16.xpose.msra.mxu0 %v1064
        %1179 = vmatpush.bf16.xpose.msra.mxu0 %v1062
        %1180 = vmatpush.bf16.xpose.msra.mxu0 %v1060
        %1181 = vmatpush.bf16.xpose.msra.mxu0 %v1058
        %1182 = vmatpush.bf16.xpose.msra.mxu0 %v1056
        %1183 = vmatpush.bf16.xpose.msra.mxu0 %v1054
        %1184 = vmatpush.bf16.xpose.msra.mxu0 %v1052
        %1185 = vmatpush.bf16.xpose.msra.mxu0 %v1050
        %1186 = vmatmul.bf16.gmra.mxu0 %v782
        %v1187 = vpop.f32.mrf.mxu0
        %v1188 = vadd.f32 %v850, %v1187
        %v1189 = vpop.f32.mrf.mxu0
        %v1190 = vadd.f32 %v850, %v1189
        %1191 = vdwg.mxu0
        %1192 = vmatpush.bf16.xpose.msra.mxu0 %v1065
        %1193 = vmatpush.bf16.xpose.msra.mxu0 %v1063
        %1194 = vmatpush.bf16.xpose.msra.mxu0 %v1061
        %1195 = vmatpush.bf16.xpose.msra.mxu0 %v1059
        %1196 = vmatpush.bf16.xpose.msra.mxu0 %v1057
        %1197 = vmatpush.bf16.xpose.msra.mxu0 %v1055
        %1198 = vmatpush.bf16.xpose.msra.mxu0 %v1053
        %1199 = vmatpush.bf16.xpose.msra.mxu0 %v1051
        %1200 = vmatmul.bf16.gmra.mxu0 %v783
        %v1201 = vpop.f32.mrf.mxu0
        %v1202 = vadd.f32 %v1188, %v1201
        %v1203 = vpop.f32.mrf.mxu0
        %v1204 = vadd.f32 %v1190, %v1203
        %1205 = vdwg.mxu0
        %1206 = vmatpush.bf16.xpose.msra.mxu0 %v1080
        %1207 = vmatpush.bf16.xpose.msra.mxu0 %v1078
        %1208 = vmatpush.bf16.xpose.msra.mxu0 %v1076
        %1209 = vmatpush.bf16.xpose.msra.mxu0 %v1074
        %1210 = vmatpush.bf16.xpose.msra.mxu0 %v1072
        %1211 = vmatpush.bf16.xpose.msra.mxu0 %v1070
        %1212 = vmatpush.bf16.xpose.msra.mxu0 %v1068
        %1213 = vmatpush.bf16.xpose.msra.mxu0 %v1066
        %1214 = vmatmul.bf16.gmra.mxu0 %v782
        %v1215 = vpop.f32.mrf.mxu0
        %v1216 = vadd.f32 %v851, %v1215
        %v1217 = vpop.f32.mrf.mxu0
        %v1218 = vadd.f32 %v851, %v1217
        %1219 = vdwg.mxu0
        %1220 = vmatpush.bf16.xpose.msra.mxu0 %v1081
        %1221 = vmatpush.bf16.xpose.msra.mxu0 %v1079
        %1222 = vmatpush.bf16.xpose.msra.mxu0 %v1077
        %1223 = vmatpush.bf16.xpose.msra.mxu0 %v1075
        %1224 = vmatpush.bf16.xpose.msra.mxu0 %v1073
        %1225 = vmatpush.bf16.xpose.msra.mxu0 %v1071
        %1226 = vmatpush.bf16.xpose.msra.mxu0 %v1069
        %1227 = vmatpush.bf16.xpose.msra.mxu0 %v1067
        %1228 = vmatmul.bf16.gmra.mxu0 %v783
        %v1229 = vpop.f32.mrf.mxu0
        %v1230 = vadd.f32 %v1216, %v1229
        %v1231 = vpop.f32.mrf.mxu0
        %v1232 = vadd.f32 %v1218, %v1231
        %1233 = vdwg.mxu0
        %1234 = vmatpush.bf16.xpose.msra.mxu0 %v1096
        %1235 = vmatpush.bf16.xpose.msra.mxu0 %v1094
        %1236 = vmatpush.bf16.xpose.msra.mxu0 %v1092
        %1237 = vmatpush.bf16.xpose.msra.mxu0 %v1090
        %1238 = vmatpush.bf16.xpose.msra.mxu0 %v1088
        %1239 = vmatpush.bf16.xpose.msra.mxu0 %v1086
        %1240 = vmatpush.bf16.xpose.msra.mxu0 %v1084
        %1241 = vmatpush.bf16.xpose.msra.mxu0 %v1082
        %1242 = vmatmul.bf16.gmra.mxu0 %v782
        %v1243 = vpop.f32.mrf.mxu0
        %v1244 = vadd.f32 %v852, %v1243
        %v1245 = vpop.f32.mrf.mxu0
        %v1246 = vadd.f32 %v852, %v1245
        %1247 = vdwg.mxu0
        %1248 = vmatpush.bf16.xpose.msra.mxu0 %v1097
        %1249 = vmatpush.bf16.xpose.msra.mxu0 %v1095
        %1250 = vmatpush.bf16.xpose.msra.mxu0 %v1093
        %1251 = vmatpush.bf16.xpose.msra.mxu0 %v1091
        %1252 = vmatpush.bf16.xpose.msra.mxu0 %v1089
        %1253 = vmatpush.bf16.xpose.msra.mxu0 %v1087
        %1254 = vmatpush.bf16.xpose.msra.mxu0 %v1085
        %1255 = vmatpush.bf16.xpose.msra.mxu0 %v1083
        %1256 = vmatmul.bf16.gmra.mxu0 %v783
        %v1257 = vpop.f32.mrf.mxu0
        %v1258 = vadd.f32 %v1244, %v1257
        %v1259 = vpop.f32.mrf.mxu0
        %v1260 = vadd.f32 %v1246, %v1259
        %1261 = vdwg.mxu0
        %1262 = vmatpush.bf16.xpose.msra.mxu0 %v1112
        %1263 = vmatpush.bf16.xpose.msra.mxu0 %v1110
        %1264 = vmatpush.bf16.xpose.msra.mxu0 %v1108
        %1265 = vmatpush.bf16.xpose.msra.mxu0 %v1106
        %1266 = vmatpush.bf16.xpose.msra.mxu0 %v1104
        %1267 = vmatpush.bf16.xpose.msra.mxu0 %v1102
        %1268 = vmatpush.bf16.xpose.msra.mxu0 %v1100
        %1269 = vmatpush.bf16.xpose.msra.mxu0 %v1098
        %1270 = vmatmul.bf16.gmra.mxu0 %v782
        %v1271 = vpop.f32.mrf.mxu0
        %v1272 = vadd.f32 %v853, %v1271
        %v1273 = vpop.f32.mrf.mxu0
        %v1274 = vadd.f32 %v853, %v1273
        %1275 = vdwg.mxu0
        %1276 = vmatpush.bf16.xpose.msra.mxu0 %v1113
        %1277 = vmatpush.bf16.xpose.msra.mxu0 %v1111
        %1278 = vmatpush.bf16.xpose.msra.mxu0 %v1109
        %1279 = vmatpush.bf16.xpose.msra.mxu0 %v1107
        %1280 = vmatpush.bf16.xpose.msra.mxu0 %v1105
        %1281 = vmatpush.bf16.xpose.msra.mxu0 %v1103
        %1282 = vmatpush.bf16.xpose.msra.mxu0 %v1101
        %1283 = vmatpush.bf16.xpose.msra.mxu0 %v1099
        %1284 = vmatmul.bf16.gmra.mxu0 %v783
        %v1285 = vpop.f32.mrf.mxu0
        %v1286 = vadd.f32 %v1272, %v1285
        %v1287 = vpop.f32.mrf.mxu0
        %v1288 = vadd.f32 %v1274, %v1287
        %1289 = vdwg.mxu0
        %v1290 = vmul.f32 %v1202, 0.5
        %v1291 = vmul.f32 %v1230, 0.5
        %v1292 = vmul.f32 %v1258, 0.5
        %v1293 = vmul.f32 %v1286, 0.5
        %v1294 = vmul.f32 %v1204, 0.5
        %v1295 = vmul.f32 %v1232, 0.5
        %v1296 = vmul.f32 %v1260, 0.5
        %v1297 = vmul.f32 %v1288, 0.5
        %v1298 = vmul.f32 %v1202, %v1202
        %v1299 = vmul.f32 %v1230, %v1230
        %v1300 = vmul.f32 %v1258, %v1258
        %v1301 = vmul.f32 %v1286, %v1286
        %v1302 = vmul.f32 %v1204, %v1204
        %v1303 = vmul.f32 %v1232, %v1232
        %v1304 = vmul.f32 %v1260, %v1260
        %v1305 = vmul.f32 %v1288, %v1288
        %v1306 = vmul.f32 %v1298, %v1202
        %v1307 = vmul.f32 %v1299, %v1230
        %v1308 = vmul.f32 %v1300, %v1258
        %v1309 = vmul.f32 %v1301, %v1286
        %v1310 = vmul.f32 %v1302, %v1204
        %v1311 = vmul.f32 %v1303, %v1232
        %v1312 = vmul.f32 %v1304, %v1260
        %v1313 = vmul.f32 %v1305, %v1288
        %v1314 = vmul.f32 %v1306, 0.044715
        %v1315 = vmul.f32 %v1307, 0.044715
        %v1316 = vmul.f32 %v1308, 0.044715
        %v1317 = vmul.f32 %v1309, 0.044715
        %v1318 = vmul.f32 %v1310, 0.044715
        %v1319 = vmul.f32 %v1311, 0.044715
        %v1320 = vmul.f32 %v1312, 0.044715
        %v1321 = vmul.f32 %v1313, 0.044715
        %v1322 = vadd.f32 %v1202, %v1314
        %v1323 = vadd.f32 %v1230, %v1315
        %v1324 = vadd.f32 %v1258, %v1316
        %v1325 = vadd.f32 %v1286, %v1317
        %v1326 = vadd.f32 %v1204, %v1318
        %v1327 = vadd.f32 %v1232, %v1319
        %v1328 = vadd.f32 %v1260, %v1320
        %v1329 = vadd.f32 %v1288, %v1321
        %v1330 = vmul.f32 %v1322, 0.7978846
        %v1331 = vmul.f32 %v1323, 0.7978846
        %v1332 = vmul.f32 %v1324, 0.7978846
        %v1333 = vmul.f32 %v1325, 0.7978846
        %v1334 = vmul.f32 %v1326, 0.7978846
        %v1335 = vmul.f32 %v1327, 0.7978846
        %v1336 = vmul.f32 %v1328, 0.7978846
        %v1337 = vmul.f32 %v1329, 0.7978846
        %v1338 = vtanh.pop %v1330
        %v1339 = vtanh.pop %v1331
        %v1340 = vtanh.pop %v1332
        %v1341 = vtanh.pop %v1333
        %v1342 = vtanh.pop %v1334
        %v1343 = vtanh.pop %v1335
        %v1344 = vtanh.pop %v1336
        %v1345 = vtanh.pop %v1337
        %v1346 = vadd.f32 %v1338, 1.0
        %v1347 = vadd.f32 %v1339, 1.0
        %v1348 = vadd.f32 %v1340, 1.0
        %v1349 = vadd.f32 %v1341, 1.0
        %v1350 = vadd.f32 %v1342, 1.0
        %v1351 = vadd.f32 %v1343, 1.0
        %v1352 = vadd.f32 %v1344, 1.0
        %v1353 = vadd.f32 %v1345, 1.0
        %v1354 = vmul.f32 %v1290, %v1346
        %v1355 = vmul.f32 %v1291, %v1347
        %v1356 = vmul.f32 %v1292, %v1348
        %v1357 = vmul.f32 %v1293, %v1349
        %v1358 = vmul.f32 %v1294, %v1350
        %v1359 = vmul.f32 %v1295, %v1351
        %v1360 = vmul.f32 %v1296, %v1352
        %v1361 = vmul.f32 %v1297, %v1353
        %v1362 = vpack.c.bf16 %v1358, %v1354
        %v1363 = vpack.c.bf16 %v1359, %v1355
        %v1364 = vpack.c.bf16 %v1360, %v1356
        %v1365 = vpack.c.bf16 %v1361, %v1357
        %v1366 = vld [vmem:[%s8] sm:$0xff]
        %v1367 = vld [vmem:[%s8 + $0x8] sm:$0xff]
        %v1368 = vld [vmem:[%s8 + $0x10] sm:$0xff]
        %v1369 = vld [vmem:[%s8 + $0x18] sm:$0xff]
        %v1370 = vld [vmem:[%s8 + $0x20] sm:$0xff]
        %v1371 = vld [vmem:[%s8 + $0x28] sm:$0xff]
        %v1372 = vld [vmem:[%s8 + $0x30] sm:$0xff]
        %v1373 = vld [vmem:[%s8 + $0x38] sm:$0xff]
        %v1374 = vld [vmem:[%s8 + $0x40] sm:$0xff]
        %v1375 = vld [vmem:[%s8 + $0x48] sm:$0xff]
        %v1376 = vld [vmem:[%s8 + $0x50] sm:$0xff]
        %v1377 = vld [vmem:[%s8 + $0x58] sm:$0xff]
        %v1378 = vld [vmem:[%s8 + $0x60] sm:$0xff]
        %v1379 = vld [vmem:[%s8 + $0x68] sm:$0xff]
        %v1380 = vld [vmem:[%s8 + $0x70] sm:$0xff]
        %v1381 = vld [vmem:[%s8 + $0x78] sm:$0xff]
        %v1382 = vld [vmem:[%s8 + $0x80] sm:$0xff]
        %v1383 = vld [vmem:[%s8 + $0x88] sm:$0xff]
        %v1384 = vld [vmem:[%s8 + $0x90] sm:$0xff]
        %v1385 = vld [vmem:[%s8 + $0x98] sm:$0xff]
        %v1386 = vld [vmem:[%s8 + $0xa0] sm:$0xff]
        %v1387 = vld [vmem:[%s8 + $0xa8] sm:$0xff]
        %v1388 = vld [vmem:[%s8 + $0xb0] sm:$0xff]
        %v1389 = vld [vmem:[%s8 + $0xb8] sm:$0xff]
        %v1390 = vld [vmem:[%s8 + $0xc0] sm:$0xff]
        %v1391 = vld [vmem:[%s8 + $0xc8] sm:$0xff]
        %v1392 = vld [vmem:[%s8 + $0xd0] sm:$0xff]
        %v1393 = vld [vmem:[%s8 + $0xd8] sm:$0xff]
        %v1394 = vld [vmem:[%s8 + $0xe0] sm:$0xff]
        %v1395 = vld [vmem:[%s8 + $0xe8] sm:$0xff]
        %v1396 = vld [vmem:[%s8 + $0xf0] sm:$0xff]
        %v1397 = vld [vmem:[%s8 + $0xf8] sm:$0xff]
        %v1398 = vld [vmem:[%s8 + $0x100] sm:$0xff]
        %v1399 = vld [vmem:[%s8 + $0x108] sm:$0xff]
        %v1400 = vld [vmem:[%s8 + $0x110] sm:$0xff]
        %v1401 = vld [vmem:[%s8 + $0x118] sm:$0xff]
        %v1402 = vld [vmem:[%s8 + $0x120] sm:$0xff]
        %v1403 = vld [vmem:[%s8 + $0x128] sm:$0xff]
        %v1404 = vld [vmem:[%s8 + $0x130] sm:$0xff]
        %v1405 = vld [vmem:[%s8 + $0x138] sm:$0xff]
        %v1406 = vld [vmem:[%s8 + $0x140] sm:$0xff]
        %v1407 = vld [vmem:[%s8 + $0x148] sm:$0xff]
        %v1408 = vld [vmem:[%s8 + $0x150] sm:$0xff]
        %v1409 = vld [vmem:[%s8 + $0x158] sm:$0xff]
        %v1410 = vld [vmem:[%s8 + $0x160] sm:$0xff]
        %v1411 = vld [vmem:[%s8 + $0x168] sm:$0xff]
        %v1412 = vld [vmem:[%s8 + $0x170] sm:$0xff]
        %v1413 = vld [vmem:[%s8 + $0x178] sm:$0xff]
        %v1414 = vld [vmem:[%s8 + $0x180] sm:$0xff]
        %v1415 = vld [vmem:[%s8 + $0x188] sm:$0xff]
        %v1416 = vld [vmem:[%s8 + $0x190] sm:$0xff]
        %v1417 = vld [vmem:[%s8 + $0x198] sm:$0xff]
        %v1418 = vld [vmem:[%s8 + $0x1a0] sm:$0xff]
        %v1419 = vld [vmem:[%s8 + $0x1a8] sm:$0xff]
        %v1420 = vld [vmem:[%s8 + $0x1b0] sm:$0xff]
        %v1421 = vld [vmem:[%s8 + $0x1b8] sm:$0xff]
        %v1422 = vld [vmem:[%s8 + $0x1c0] sm:$0xff]
        %v1423 = vld [vmem:[%s8 + $0x1c8] sm:$0xff]
        %v1424 = vld [vmem:[%s8 + $0x1d0] sm:$0xff]
        %v1425 = vld [vmem:[%s8 + $0x1d8] sm:$0xff]
        %v1426 = vld [vmem:[%s8 + $0x1e0] sm:$0xff]
        %v1427 = vld [vmem:[%s8 + $0x1e8] sm:$0xff]
        %v1428 = vld [vmem:[%s8 + $0x1f0] sm:$0xff]
        %v1429 = vld [vmem:[%s8 + $0x1f8] sm:$0xff]
        %v1430 = vld [vmem:[%s9] sm:$0x3]
        %v1432 = vperm.slane %v1430, 0
        %v1433 = vperm.slane %v1430, 1
        %v1500 = vunpack.c.l.b16 %v1366
        %v1501 = vunpack.c.h.b16 %v1366
        %v1502 = vunpack.c.l.b16 %v1367
        %v1503 = vunpack.c.h.b16 %v1367
        %v1504 = vunpack.c.l.b16 %v1368
        %v1505 = vunpack.c.h.b16 %v1368
        %v1506 = vunpack.c.l.b16 %v1369
        %v1507 = vunpack.c.h.b16 %v1369
        %v1508 = vunpack.c.l.b16 %v1370
        %v1509 = vunpack.c.h.b16 %v1370
        %v1510 = vunpack.c.l.b16 %v1371
        %v1511 = vunpack.c.h.b16 %v1371
        %v1512 = vunpack.c.l.b16 %v1372
        %v1513 = vunpack.c.h.b16 %v1372
        %v1514 = vunpack.c.l.b16 %v1373
        %v1515 = vunpack.c.h.b16 %v1373
        %v1516 = vunpack.c.l.b16 %v1374
        %v1517 = vunpack.c.h.b16 %v1374
        %v1518 = vunpack.c.l.b16 %v1375
        %v1519 = vunpack.c.h.b16 %v1375
        %v1520 = vunpack.c.l.b16 %v1376
        %v1521 = vunpack.c.h.b16 %v1376
        %v1522 = vunpack.c.l.b16 %v1377
        %v1523 = vunpack.c.h.b16 %v1377
        %v1524 = vunpack.c.l.b16 %v1378
        %v1525 = vunpack.c.h.b16 %v1378
        %v1526 = vunpack.c.l.b16 %v1379
        %v1527 = vunpack.c.h.b16 %v1379
        %v1528 = vunpack.c.l.b16 %v1380
        %v1529 = vunpack.c.h.b16 %v1380
        %v1530 = vunpack.c.l.b16 %v1381
        %v1531 = vunpack.c.h.b16 %v1381
        %v1532 = vunpack.c.l.b16 %v1382
        %v1533 = vunpack.c.h.b16 %v1382
        %v1534 = vunpack.c.l.b16 %v1383
        %v1535 = vunpack.c.h.b16 %v1383
        %v1536 = vunpack.c.l.b16 %v1384
        %v1537 = vunpack.c.h.b16 %v1384
        %v1538 = vunpack.c.l.b16 %v1385
        %v1539 = vunpack.c.h.b16 %v1385
        %v1540 = vunpack.c.l.b16 %v1386
        %v1541 = vunpack.c.h.b16 %v1386
        %v1542 = vunpack.c.l.b16 %v1387
        %v1543 = vunpack.c.h.b16 %v1387
        %v1544 = vunpack.c.l.b16 %v1388
        %v1545 = vunpack.c.h.b16 %v1388
        %v1546 = vunpack.c.l.b16 %v1389
        %v1547 = vunpack.c.h.b16 %v1389
        %v1548 = vunpack.c.l.b16 %v1390
        %v1549 = vunpack.c.h.b16 %v1390
        %v1550 = vunpack.c.l.b16 %v1391
        %v1551 = vunpack.c.h.b16 %v1391
        %v1552 = vunpack.c.l.b16 %v1392
        %v1553 = vunpack.c.h.b16 %v1392
        %v1554 = vunpack.c.l.b16 %v1393
        %v1555 = vunpack.c.h.b16 %v1393
        %v1556 = vunpack.c.l.b16 %v1394
        %v1557 = vunpack.c.h.b16 %v1394
        %v1558 = vunpack.c.l.b16 %v1395
        %v1559 = vunpack.c.h.b16 %v1395
        %v1560 = vunpack.c.l.b16 %v1396
        %v1561 = vunpack.c.h.b16 %v1396
        %v1562 = vunpack.c.l.b16 %v1397
        %v1563 = vunpack.c.h.b16 %v1397
        %v1564 = vunpack.c.l.b16 %v1398
        %v1565 = vunpack.c.h.b16 %v1398
        %v1566 = vunpack.c.l.b16 %v1399
        %v1567 = vunpack.c.h.b16 %v1399
        %v1568 = vunpack.c.l.b16 %v1400
        %v1569 = vunpack.c.h.b16 %v1400
        %v1570 = vunpack.c.l.b16 %v1401
        %v1571 = vunpack.c.h.b16 %v1401
        %v1572 = vunpack.c.l.b16 %v1402
        %v1573 = vunpack.c.h.b16 %v1402
        %v1574 = vunpack.c.l.b16 %v1403
        %v1575 = vunpack.c.h.b16 %v1403
        %v1576 = vunpack.c.l.b16 %v1404
        %v1577 = vunpack.c.h.b16 %v1404
        %v1578 = vunpack.c.l.b16 %v1405
        %v1579 = vunpack.c.h.b16 %v1405
        %v1580 = vunpack.c.l.b16 %v1406
        %v1581 = vunpack.c.h.b16 %v1406
        %v1582 = vunpack.c.l.b16 %v1407
        %v1583 = vunpack.c.h.b16 %v1407
        %v1584 = vunpack.c.l.b16 %v1408
        %v1585 = vunpack.c.h.b16 %v1408
        %v1586 = vunpack.c.l.b16 %v1409
        %v1587 = vunpack.c.h.b16 %v1409
        %v1588 = vunpack.c.l.b16 %v1410
        %v1589 = vunpack.c.h.b16 %v1410
        %v1590 = vunpack.c.l.b16 %v1411
        %v1591 = vunpack.c.h.b16 %v1411
        %v1592 = vunpack.c.l.b16 %v1412
        %v1593 = vunpack.c.h.b16 %v1412
        %v1594 = vunpack.c.l.b16 %v1413
        %v1595 = vunpack.c.h.b16 %v1413
        %v1596 = vunpack.c.l.b16 %v1414
        %v1597 = vunpack.c.h.b16 %v1414
        %v1598 = vunpack.c.l.b16 %v1415
        %v1599 = vunpack.c.h.b16 %v1415
        %v1600 = vunpack.c.l.b16 %v1416
        %v1601 = vunpack.c.h.b16 %v1416
        %v1602 = vunpack.c.l.b16 %v1417
        %v1603 = vunpack.c.h.b16 %v1417
        %v1604 = vunpack.c.l.b16 %v1418
        %v1605 = vunpack.c.h.b16 %v1418
        %v1606 = vunpack.c.l.b16 %v1419
        %v1607 = vunpack.c.h.b16 %v1419
        %v1608 = vunpack.c.l.b16 %v1420
        %v1609 = vunpack.c.h.b16 %v1420
        %v1610 = vunpack.c.l.b16 %v1421
        %v1611 = vunpack.c.h.b16 %v1421
        %v1612 = vunpack.c.l.b16 %v1422
        %v1613 = vunpack.c.h.b16 %v1422
        %v1614 = vunpack.c.l.b16 %v1423
        %v1615 = vunpack.c.h.b16 %v1423
        %v1616 = vunpack.c.l.b16 %v1424
        %v1617 = vunpack.c.h.b16 %v1424
        %v1618 = vunpack.c.l.b16 %v1425
        %v1619 = vunpack.c.h.b16 %v1425
        %v1620 = vunpack.c.l.b16 %v1426
        %v1621 = vunpack.c.h.b16 %v1426
        %v1622 = vunpack.c.l.b16 %v1427
        %v1623 = vunpack.c.h.b16 %v1427
        %v1624 = vunpack.c.l.b16 %v1428
        %v1625 = vunpack.c.h.b16 %v1428
        %v1626 = vunpack.c.l.b16 %v1429
        %v1627 = vunpack.c.h.b16 %v1429
        %v1628 = vpack.c.b16 %v1504, %v1500
        %v1629 = vpack.c.b16 %v1505, %v1501
        %v1630 = vpack.c.b16 %v1506, %v1502
        %v1631 = vpack.c.b16 %v1507, %v1503
        %v1632 = vpack.c.b16 %v1512, %v1508
        %v1633 = vpack.c.b16 %v1513, %v1509
        %v1634 = vpack.c.b16 %v1514, %v1510
        %v1635 = vpack.c.b16 %v1515, %v1511
        %v1636 = vpack.c.b16 %v1520, %v1516
        %v1637 = vpack.c.b16 %v1521, %v1517
        %v1638 = vpack.c.b16 %v1522, %v1518
        %v1639 = vpack.c.b16 %v1523, %v1519
        %v1640 = vpack.c.b16 %v1528, %v1524
        %v1641 = vpack.c.b16 %v1529, %v1525
        %v1642 = vpack.c.b16 %v1530, %v1526
        %v1643 = vpack.c.b16 %v1531, %v1527
        %v1644 = vpack.c.b16 %v1536, %v1532
        %v1645 = vpack.c.b16 %v1537, %v1533
        %v1646 = vpack.c.b16 %v1538, %v1534
        %v1647 = vpack.c.b16 %v1539, %v1535
        %v1648 = vpack.c.b16 %v1544, %v1540
        %v1649 = vpack.c.b16 %v1545, %v1541
        %v1650 = vpack.c.b16 %v1546, %v1542
        %v1651 = vpack.c.b16 %v1547, %v1543
        %v1652 = vpack.c.b16 %v1552, %v1548
        %v1653 = vpack.c.b16 %v1553, %v1549
        %v1654 = vpack.c.b16 %v1554, %v1550
        %v1655 = vpack.c.b16 %v1555, %v1551
        %v1656 = vpack.c.b16 %v1560, %v1556
        %v1657 = vpack.c.b16 %v1561, %v1557
        %v1658 = vpack.c.b16 %v1562, %v1558
        %v1659 = vpack.c.b16 %v1563, %v1559
        %v1660 = vpack.c.b16 %v1568, %v1564
        %v1661 = vpack.c.b16 %v1569, %v1565
        %v1662 = vpack.c.b16 %v1570, %v1566
        %v1663 = vpack.c.b16 %v1571, %v1567
        %v1664 = vpack.c.b16 %v1576, %v1572
        %v1665 = vpack.c.b16 %v1577, %v1573
        %v1666 = vpack.c.b16 %v1578, %v1574
        %v1667 = vpack.c.b16 %v1579, %v1575
        %v1668 = vpack.c.b16 %v1584, %v1580
        %v1669 = vpack.c.b16 %v1585, %v1581
        %v1670 = vpack.c.b16 %v1586, %v1582
        %v1671 = vpack.c.b16 %v1587, %v1583
        %v1672 = vpack.c.b16 %v1592, %v1588
        %v1673 = vpack.c.b16 %v1593, %v1589
        %v1674 = vpack.c.b16 %v1594, %v1590
        %v1675 = vpack.c.b16 %v1595, %v1591
        %v1676 = vpack.c.b16 %v1600, %v1596
        %v1677 = vpack.c.b16 %v1601, %v1597
        %v1678 = vpack.c.b16 %v1602, %v1598
        %v1679 = vpack.c.b16 %v1603, %v1599
        %v1680 = vpack.c.b16 %v1608, %v1604
        %v1681 = vpack.c.b16 %v1609, %v1605
        %v1682 = vpack.c.b16 %v1610, %v1606
        %v1683 = vpack.c.b16 %v1611, %v1607
        %v1684 = vpack.c.b16 %v1616, %v1612
        %v1685 = vpack.c.b16 %v1617, %v1613
        %v1686 = vpack.c.b16 %v1618, %v1614
        %v1687 = vpack.c.b16 %v1619, %v1615
        %v1688 = vpack.c.b16 %v1624, %v1620
        %v1689 = vpack.c.b16 %v1625, %v1621
        %v1690 = vpack.c.b16 %v1626, %v1622
        %v1691 = vpack.c.b16 %v1627, %v1623
        %1756 = vmatpush.bf16.xpose.msra.mxu0 %v1656
        %1757 = vmatpush.bf16.xpose.msra.mxu0 %v1652
        %1758 = vmatpush.bf16.xpose.msra.mxu0 %v1648
        %1759 = vmatpush.bf16.xpose.msra.mxu0 %v1644
        %1760 = vmatpush.bf16.xpose.msra.mxu0 %v1640
        %1761 = vmatpush.bf16.xpose.msra.mxu0 %v1636
        %1762 = vmatpush.bf16.xpose.msra.mxu0 %v1632
        %1763 = vmatpush.bf16.xpose.msra.mxu0 %v1628
        %1764 = vmatmul.bf16.gmra.mxu0 %v1362
        %v1765 = vpop.f32.mrf.mxu0
        %v1766 = vadd.f32 %v1432, %v1765
        %v1767 = vpop.f32.mrf.mxu0
        %v1768 = vadd.f32 %v1432, %v1767
        %1769 = vdwg.mxu0
        %1770 = vmatpush.bf16.xpose.msra.mxu0 %v1657
        %1771 = vmatpush.bf16.xpose.msra.mxu0 %v1653
        %1772 = vmatpush.bf16.xpose.msra.mxu0 %v1649
        %1773 = vmatpush.bf16.xpose.msra.mxu0 %v1645
        %1774 = vmatpush.bf16.xpose.msra.mxu0 %v1641
        %1775 = vmatpush.bf16.xpose.msra.mxu0 %v1637
        %1776 = vmatpush.bf16.xpose.msra.mxu0 %v1633
        %1777 = vmatpush.bf16.xpose.msra.mxu0 %v1629
        %1778 = vmatmul.bf16.gmra.mxu0 %v1363
        %v1779 = vpop.f32.mrf.mxu0
        %v1780 = vadd.f32 %v1766, %v1779
        %v1781 = vpop.f32.mrf.mxu0
        %v1782 = vadd.f32 %v1768, %v1781
        %1783 = vdwg.mxu0
        %1784 = vmatpush.bf16.xpose.msra.mxu0 %v1658
        %1785 = vmatpush.bf16.xpose.msra.mxu0 %v1654
        %1786 = vmatpush.bf16.xpose.msra.mxu0 %v1650
        %1787 = vmatpush.bf16.xpose.msra.mxu0 %v1646
        %1788 = vmatpush.bf16.xpose.msra.mxu0 %v1642
        %1789 = vmatpush.bf16.xpose.msra.mxu0 %v1638
        %1790 = vmatpush.bf16.xpose.msra.mxu0 %v1634
        %1791 = vmatpush.bf16.xpose.msra.mxu0 %v1630
        %1792 = vmatmul.bf16.gmra.mxu0 %v1364
        %v1793 = vpop.f32.mrf.mxu0
        %v1794 = vadd.f32 %v1780, %v1793
        %v1795 = vpop.f32.mrf.mxu0
        %v1796 = vadd.f32 %v1782, %v1795
        %1797 = vdwg.mxu0
        %1798 = vmatpush.bf16.xpose.msra.mxu0 %v1659
        %1799 = vmatpush.bf16.xpose.msra.mxu0 %v1655
        %1800 = vmatpush.bf16.xpose.msra.mxu0 %v1651
        %1801 = vmatpush.bf16.xpose.msra.mxu0 %v1647
        %1802 = vmatpush.bf16.xpose.msra.mxu0 %v1643
        %1803 = vmatpush.bf16.xpose.msra.mxu0 %v1639
        %1804 = vmatpush.bf16.xpose.msra.mxu0 %v1635
        %1805 = vmatpush.bf16.xpose.msra.mxu0 %v1631
        %1806 = vmatmul.bf16.gmra.mxu0 %v1365
        %v1807 = vpop.f32.mrf.mxu0
        %v1808 = vadd.f32 %v1794, %v1807
        %v1809 = vpop.f32.mrf.mxu0
        %v1810 = vadd.f32 %v1796, %v1809
        %1811 = vdwg.mxu0
        %1812 = vmatpush.bf16.xpose.msra.mxu0 %v1688
        %1813 = vmatpush.bf16.xpose.msra.mxu0 %v1684
        %1814 = vmatpush.bf16.xpose.msra.mxu0 %v1680
        %1815 = vmatpush.bf16.xpose.msra.mxu0 %v1676
        %1816 = vmatpush.bf16.xpose.msra.mxu0 %v1672
        %1817 = vmatpush.bf16.xpose.msra.mxu0 %v1668
        %1818 = vmatpush.bf16.xpose.msra.mxu0 %v1664
        %1819 = vmatpush.bf16.xpose.msra.mxu0 %v1660
        %1820 = vmatmul.bf16.gmra.mxu0 %v1362
        %v1821 = vpop.f32.mrf.mxu0
        %v1822 = vadd.f32 %v1433, %v1821
        %v1823 = vpop.f32.mrf.mxu0
        %v1824 = vadd.f32 %v1433, %v1823
        %1825 = vdwg.mxu0
        %1826 = vmatpush.bf16.xpose.msra.mxu0 %v1689
        %1827 = vmatpush.bf16.xpose.msra.mxu0 %v1685
        %1828 = vmatpush.bf16.xpose.msra.mxu0 %v1681
        %1829 = vmatpush.bf16.xpose.msra.mxu0 %v1677
        %1830 = vmatpush.bf16.xpose.msra.mxu0 %v1673
        %1831 = vmatpush.bf16.xpose.msra.mxu0 %v1669
        %1832 = vmatpush.bf16.xpose.msra.mxu0 %v1665
        %1833 = vmatpush.bf16.xpose.msra.mxu0 %v1661
        %1834 = vmatmul.bf16.gmra.mxu0 %v1363
        %v1835 = vpop.f32.mrf.mxu0
        %v1836 = vadd.f32 %v1822, %v1835
        %v1837 = vpop.f32.mrf.mxu0
        %v1838 = vadd.f32 %v1824, %v1837
        %1839 = vdwg.mxu0
        %1840 = vmatpush.bf16.xpose.msra.mxu0 %v1690
        %1841 = vmatpush.bf16.xpose.msra.mxu0 %v1686
        %1842 = vmatpush.bf16.xpose.msra.mxu0 %v1682
        %1843 = vmatpush.bf16.xpose.msra.mxu0 %v1678
        %1844 = vmatpush.bf16.xpose.msra.mxu0 %v1674
        %1845 = vmatpush.bf16.xpose.msra.mxu0 %v1670
        %1846 = vmatpush.bf16.xpose.msra.mxu0 %v1666
        %1847 = vmatpush.bf16.xpose.msra.mxu0 %v1662
        %1848 = vmatmul.bf16.gmra.mxu0 %v1364
        %v1849 = vpop.f32.mrf.mxu0
        %v1850 = vadd.f32 %v1836, %v1849
        %v1851 = vpop.f32.mrf.mxu0
        %v1852 = vadd.f32 %v1838, %v1851
        %1853 = vdwg.mxu0
        %1854 = vmatpush.bf16.xpose.msra.mxu0 %v1691
        %1855 = vmatpush.bf16.xpose.msra.mxu0 %v1687
        %1856 = vmatpush.bf16.xpose.msra.mxu0 %v1683
        %1857 = vmatpush.bf16.xpose.msra.mxu0 %v1679
        %1858 = vmatpush.bf16.xpose.msra.mxu0 %v1675
        %1859 = vmatpush.bf16.xpose.msra.mxu0 %v1671
        %1860 = vmatpush.bf16.xpose.msra.mxu0 %v1667
        %1861 = vmatpush.bf16.xpose.msra.mxu0 %v1663
        %1862 = vmatmul.bf16.gmra.mxu0 %v1365
        %v1863 = vpop.f32.mrf.mxu0
        %v1864 = vadd.f32 %v1850, %v1863
        %v1865 = vpop.f32.mrf.mxu0
        %v1866 = vadd.f32 %v1852, %v1865
        %1867 = vdwg.mxu0
        %v1868 = vadd.f32 %v1808, %v701
        %v1869 = vadd.f32 %v1864, %v702
        %v1870 = vadd.f32 %v1810, %v703
        %v1871 = vadd.f32 %v1866, %v704
        %1872 = vst [vmem:[%s407] sm:$0xff] %v1868
        %1873 = vst [vmem:[%s407 + $0x8] sm:$0xff] %v1869
        %1874 = vst [vmem:[%s407 + $0x10] sm:$0xff] %v1870
        %1875 = vst [vmem:[%s407 + $0x18] sm:$0xff] %v1871
        %s1876 = sand.u32 %s270, 1
        %s1877 = scalar_lea.sflag [#allocation3], %s1876
        %s1878 = sand.u32 %s270, 1
        %s1879 = smul.addr %s1878, 32
        %s1880 = scalar_lea.vmem [#allocation2], %s1879
        // Predicated region
        $region61: #{encoder_block.5} parent=59 // pred_check
          %p1881 = pneg %p280
        $region62: #{encoder_block.5} parent=59 // pred_check_branch
          %1883 = sbr.rel (%p1881) target = $region64
        $region63: #{encoder_block.5} parent=59 // pred_region
          %s1884 = smul.u32 2, %s29
          %1886 = vsyncadd %s1877, 0
          %s1887 = smul.addr %s1884, 2
          %s1888 = smul.addr %s28, 4
          %s1889 = sadd.s32 %s1887, %s1888
          %s1890 = smul.addr %s1889, 8
          %s1891 = scalar_lea.hbm %s10, %s1890
          %s1892 = sshll.u32 %s1880, 4
          %s1893 = int_to_ptr.vmem [resolvable:$true] %s1892
          %s1894 = sshll.u32 %s1891, 4
          %s1895 = int_to_ptr.hbm [resolvable:$true] %s1894
          %1900 = dma.vmem_to_hbm [thread:$0]  %s1893, 512, %s1895, %s1877, 256, 256, 16
        $region64: #{encoder_block.5} parent=59 // pred_fallthru
          _
      $region60: #{encoder_block.5} parent=5 // pred_fallthru
        _
      %p1901 = scmp.le.s32.totalorder 2, %s19
      // Predicated region
      $region65: #{encoder_block.5} parent=5 // pred_check
        %p1902 = pneg %p1901
      $region66: #{encoder_block.5} parent=5 // pred_check_branch
        %1904 = sbr.rel (%p1902) target = $region68
      $region67: #{encoder_block.5} parent=5 // pred_region
        %s1905 = ssub.s32 %s19, 2
        // Predicated region
        $region69: #{encoder_block.5} parent=67 // pred_check
          %p1906 = pneg %p286
        $region70: #{encoder_block.5} parent=67 // pred_check_branch
          %1908 = sbr.rel (%p1906) target = $region72
        $region71: #{encoder_block.5} parent=67 // pred_region
          %s1909 = sand.u32 %s271, 1
          %s1910 = scalar_lea.sflag [#allocation3], %s1909
          %s1911 = sand.u32 %s271, 1
          %s1912 = smul.addr %s1911, 32
          %s1913 = scalar_lea.vmem [#allocation2], %s1912
          %1915 = dma.done %s1910, 512
        $region72: #{encoder_block.5} parent=67 // pred_fallthru
          _
      $region68: #{encoder_block.5} parent=5 // pred_fallthru
        _
    $region6: #{encoder_block.5} parent=1 // loop_footer
      %s23 = sadd.s32 1, %s19
    $region7: #{encoder_block.5} parent=1 // loop_footer_branch
      %18 = sbr.rel target = $region3
    $region8: #{encoder_block.5} parent=1 // loop_exit
      _
    %1916 = vsyncpa [#allocation3], 1
    %s1917 = scalar_lea.sflag [#allocation3], 1
    %1918 = vsyncpa %s1917, 1

</llo_original>
